<compile_context>
chip_gen: v5e
topology: v5e:2x2
jax: 0.10.0
libtpu: 0.0.40
codegen_flags: <defaults>
</compile_context>

<pallas_src>
import math

import jax
import jax.numpy as jnp
from jax.experimental import pallas as pl
from jax.experimental.pallas import tpu as pltpu


IN_F = 4
HID_F = 32
OUT_F = 4
LANE_BATCH = 128 // IN_F          # 32 batch elements interleaved per 128 lanes
BIG_IN = LANE_BATCH * IN_F        # 128
BIG_HID = LANE_BATCH * HID_F      # 1024

_HIGHEST = jax.lax.Precision.HIGHEST


def mlp_kernel(x_ref, w1_ref, b1_ref, w2_ref, b2_ref, o_ref):
    # x_ref : (R, 128)    32 batch elems x 4 features interleaved per row
    # w1_ref: (128, 1024) 0.5 * blockdiag_32(w1)           (VMEM-resident)
    # b1_ref: (1, 1024)   0.5 * tile(b1, 32)               (VMEM-resident)
    # w2_ref: (1024, 128) 0.5 * blockdiag_32(w2)           (VMEM-resident)
    # b2_ref: (1, 128)    tile(b2 + 0.5*colsum(w2), 32)    (VMEM-resident)
    # o_ref : (R, 128)    32 batch elems x 4 outputs interleaved per row
    z = jnp.dot(x_ref[...], w1_ref[...],
                preferred_element_type=jnp.float32,
                precision=_HIGHEST) + b1_ref[...]          # z = 0.5*(x@w1 + b1)
    t = jnp.tanh(z)                                        # single EUP op
    # sigmoid = 0.5*t + 0.5 ; the 0.5 scale and the constant term are folded
    # into w2_ref / b2_ref in the wrapper, so layer 2 is a plain dot + bias.
    y = jnp.dot(t, w2_ref[...],
                preferred_element_type=jnp.float32,
                precision=_HIGHEST) + b2_ref[...]
    o_ref[...] = jnp.maximum(y, 0.0)                       # ReLU


def _fold_params(w1, b1, w2, b2):
    """Build block-diagonal, sigmoid-folded parameters (all tiny, one-time)."""
    w1 = w1.astype(jnp.float32)
    b1 = b1.astype(jnp.float32)
    w2 = w2.astype(jnp.float32)
    b2 = b2.astype(jnp.float32)
    eye = jnp.eye(LANE_BATCH, dtype=jnp.float32)
    # W1_big[4a+k, 32b+j] = w1[k, j] if a == b else 0
    w1_big = jnp.einsum("ab,kj->akbj", eye, w1).reshape(BIG_IN, BIG_HID)
    # W2_big[32a+j, 4b+k] = w2[j, k] if a == b else 0
    w2_big = jnp.einsum("ab,jk->ajbk", eye, w2).reshape(BIG_HID, BIG_IN)
    b1_big = jnp.tile(b1, LANE_BATCH).reshape(1, BIG_HID)
    # Fold sigmoid(z) = 0.5*tanh(z/2) + 0.5:
    #   tanh argument -> 0.5*(x@W1 + b1)      (scale W1, b1 by 0.5)
    #   layer 2       -> t @ (0.5*W2) + (b2 + 0.5*colsum(w2))
    w1_f = 0.5 * w1_big
    b1_f = 0.5 * b1_big
    w2_f = 0.5 * w2_big
    b2_f = jnp.tile(b2 + 0.5 * w2.sum(axis=0), LANE_BATCH).reshape(1, BIG_IN)
    return w1_f, b1_f, w2_f, b2_f


def test_model_forward(x, w1, b1, w2, b2, *, rows_per_tile=1024):
    """Forward pass of TestModel.

    x  : (B, 4)  float32  (PyTorch Linear input layout)
    w1 : (4, 32) float32  (in, out) == PyTorch weight transposed
    b1 : (32,)   float32
    w2 : (32, 4) float32  (in, out)
    b2 : (4,)    float32
    returns (B, 4) float32

    rows_per_tile: rows of the interleaved (rows, 128) view per grid step;
    each row holds 32 batch elements (default 1024 rows = 32768 elems/step).
    """
    assert rows_per_tile > 0 and rows_per_tile % 8 == 0, \
        "rows_per_tile must be a positive multiple of 8 (sublane width)"
    B = x.shape[0]
    x = x.astype(jnp.float32)

    rows_needed = pl.cdiv(B, LANE_BATCH)
    # Shrink the tile for small batches (keep a multiple of 8 sublanes).
    tile_rows = min(rows_per_tile, ((rows_needed + 7) // 8) * 8)
    n_tiles = pl.cdiv(rows_needed, tile_rows)
    rows_pad = n_tiles * tile_rows
    b_pad = rows_pad * LANE_BATCH

    if b_pad != B:
        # Zero-pad the ragged tail; padded columns compute garbage that is
        # trimmed below (no in-kernel masking needed).
        x = jnp.pad(x, ((0, b_pad - B), (0, 0)))
    # Zero-copy interleaved, lane-dense view: row r = batch elems 32r..32r+31.
    x_tiled = x.reshape(rows_pad, BIG_IN)

    w1_f, b1_f, w2_f, b2_f = _fold_params(w1, b1, w2, b2)

    param_bytes = 4 * (BIG_IN * BIG_HID + BIG_HID + BIG_HID * BIG_IN + BIG_IN)
    cost = pl.CostEstimate(
        flops=4 * rows_pad * BIG_IN * BIG_HID,        # two (.,128)x(.,1024) dots
        transcendentals=rows_pad * BIG_HID,           # one tanh per hidden value
        bytes_accessed=2 * rows_pad * BIG_IN * 4 + param_bytes,
    )

    out_tiled = pl.pallas_call(
        mlp_kernel,
        out_shape=jax.ShapeDtypeStruct((rows_pad, BIG_IN), jnp.float32),
        grid_spec=pltpu.PrefetchScalarGridSpec(
            num_scalar_prefetch=0,
            grid=(n_tiles,),
            in_specs=[
                pl.BlockSpec((tile_rows, BIG_IN), lambda i: (i, 0)),   # x (streamed)
                pl.BlockSpec((BIG_IN, BIG_HID), lambda i: (0, 0)),     # W1 (resident)
                pl.BlockSpec((1, BIG_HID), lambda i: (0, 0)),          # b1 (resident)
                pl.BlockSpec((BIG_HID, BIG_IN), lambda i: (0, 0)),     # W2 (resident)
                pl.BlockSpec((1, BIG_IN), lambda i: (0, 0)),           # b2 (resident)
            ],
            out_specs=pl.BlockSpec((tile_rows, BIG_IN), lambda i: (i, 0)),
        ),
        compiler_params=pltpu.CompilerParams(
            dimension_semantics=("parallel",),          # megacore split on v7x
            vmem_limit_bytes=32 * 1024 * 1024,          # ~13 MiB working set @1024 rows
        ),
        cost_estimate=cost,
    )(x_tiled, w1_f, b1_f, w2_f, b2_f)

    out = out_tiled.reshape(b_pad, OUT_F)               # zero-copy view back
    return out[:B] if b_pad != B else out


def init_params(key):
    """Deterministic init mirroring PyTorch's default Linear init
    (uniform in +-1/sqrt(fan_in)), with weights stored as (in, out)."""
    k1, k2, k3, k4 = jax.random.split(key, 4)
    bound1 = 1.0 / math.sqrt(IN_F)
    bound2 = 1.0 / math.sqrt(HID_F)
    w1 = jax.random.uniform(k1, (IN_F, HID_F), jnp.float32, -bound1, bound1)
    b1 = jax.random.uniform(k2, (HID_F,), jnp.float32, -bound1, bound1)
    w2 = jax.random.uniform(k3, (HID_F, OUT_F), jnp.float32, -bound2, bound2)
    b2 = jax.random.uniform(k4, (OUT_F,), jnp.float32, -bound2, bound2)
    return w1, b1, w2, b2


def _reference(x, w1, b1, w2, b2):
    # Full-precision JAX reference (HIGHEST so XLA doesn't use bf16 MXU passes).
    h = jax.nn.sigmoid(jnp.dot(x, w1, precision=_HIGHEST) + b1)
    y = jnp.dot(h, w2, precision=_HIGHEST) + b2
    return jnp.maximum(y, 0.0)


if __name__ == "__main__":
    key = jax.random.PRNGKey(0)
    k_x1, k_x2, k_p = jax.random.split(key, 3)
    w1, b1, w2, b2 = init_params(k_p)

    # Small batch (single tile, padded) in the module's (B, 4) layout.
    x_small = jax.random.normal(k_x1, (8, IN_F), dtype=jnp.float32)
    out_small = jax.block_until_ready(test_model_forward(x_small, w1, b1, w2, b2))
    ref_small = _reference(x_small, w1, b1, w2, b2)
    assert out_small.shape == (8, OUT_F)
    err_small = float(jnp.max(jnp.abs(out_small - ref_small)))
    assert jnp.allclose(out_small, ref_small, atol=2e-5, rtol=2e-5), err_small

    # Ragged batch exercising a multi-step grid:
    # rows_per_tile=8 -> 256 batch elements per grid step -> 3 grid steps.
    x_big = jax.random.normal(k_x2, (600, IN_F), dtype=jnp.float32)
    out_big = jax.block_until_ready(
        test_model_forward(x_big, w1, b1, w2, b2, rows_per_tile=8)
    )
    ref_big = _reference(x_big, w1, b1, w2, b2)
    assert out_big.shape == (600, OUT_F)
    err_big = float(jnp.max(jnp.abs(out_big - ref_big)))
    assert jnp.allclose(out_big, ref_big, atol=2e-5, rtol=2e-5), err_big

    print("KERNEL_OK")
</pallas_src>

<mosaic_0001>
module attributes {stable_mosaic.version = 11 : i64} {
  func.func @mlp_kernel(%arg0: i32, %arg1: memref<8x128xf32, #tpu.memory_space<vmem>>, %arg2: memref<128x1024xf32, #tpu.memory_space<vmem>>, %arg3: memref<1x1024xf32, #tpu.memory_space<vmem>>, %arg4: memref<1024x128xf32, #tpu.memory_space<vmem>>, %arg5: memref<1x128xf32, #tpu.memory_space<vmem>>, %arg6: memref<8x128xf32, #tpu.memory_space<vmem>>) attributes {dimension_semantics = [#tpu.dimension_semantics<parallel>], iteration_bounds = array<i64: 1>, scalar_prefetch = 0 : i64, scratch_operands = 0 : i64, tpu.core_type = #tpu.core_type<tc>, window_params = [{transform_indices = @transform_0, window_bounds = array<i64: 8, 128>}, {pipeline_mode = #tpu.pipeline_mode<synchronous>, transform_indices = @transform_1, window_bounds = array<i64: 128, 1024>}, {pipeline_mode = #tpu.pipeline_mode<synchronous>, transform_indices = @transform_2, window_bounds = array<i64: 1, 1024>}, {pipeline_mode = #tpu.pipeline_mode<synchronous>, transform_indices = @transform_3, window_bounds = array<i64: 1024, 128>}, {pipeline_mode = #tpu.pipeline_mode<synchronous>, transform_indices = @transform_4, window_bounds = array<i64: 1, 128>}, {transform_indices = @transform_5, window_bounds = array<i64: 8, 128>}]} {
    %c0 = arith.constant 0 : index
    %c0_0 = arith.constant 0 : index
    %0 = vector.load %arg1[%c0, %c0_0] : memref<8x128xf32, #tpu.memory_space<vmem>>, vector<8x128xf32>
    %c0_1 = arith.constant 0 : index
    %c0_2 = arith.constant 0 : index
    %1 = vector.load %arg2[%c0_1, %c0_2] : memref<128x1024xf32, #tpu.memory_space<vmem>>, vector<128x1024xf32>
    %cst = arith.constant dense<0.000000e+00> : vector<8x1024xf32>
    %2 = tpu.matmul %0, %1, %cst {dimension_numbers = #tpu.dot_dimension_numbers<[1], [0], [0], [1], [0, 0, 1, 1], [], []>, precision = #tpu.contract_precision<fp32>} : vector<8x128xf32>, vector<128x1024xf32>, vector<8x1024xf32> -> vector<8x1024xf32>
    %c0_3 = arith.constant 0 : index
    %c0_4 = arith.constant 0 : index
    %3 = vector.load %arg3[%c0_3, %c0_4] : memref<1x1024xf32, #tpu.memory_space<vmem>>, vector<1x1024xf32>
    %4 = vector.broadcast %3 : vector<1x1024xf32> to vector<8x1024xf32>
    %5 = arith.addf %2, %4 : vector<8x1024xf32>
    %6 = math.tanh %5 : vector<8x1024xf32>
    %c0_5 = arith.constant 0 : index
    %c0_6 = arith.constant 0 : index
    %7 = vector.load %arg4[%c0_5, %c0_6] : memref<1024x128xf32, #tpu.memory_space<vmem>>, vector<1024x128xf32>
    %cst_7 = arith.constant dense<0.000000e+00> : vector<8x128xf32>
    %8 = tpu.matmul %6, %7, %cst_7 {dimension_numbers = #tpu.dot_dimension_numbers<[1], [0], [0], [1], [0, 0, 1, 1], [], []>, precision = #tpu.contract_precision<fp32>} : vector<8x1024xf32>, vector<1024x128xf32>, vector<8x128xf32> -> vector<8x128xf32>
    %c0_8 = arith.constant 0 : index
    %c0_9 = arith.constant 0 : index
    %9 = vector.load %arg5[%c0_8, %c0_9] : memref<1x128xf32, #tpu.memory_space<vmem>>, vector<1x128xf32>
    %10 = vector.broadcast %9 : vector<1x128xf32> to vector<8x128xf32>
    %11 = arith.addf %8, %10 : vector<8x128xf32>
    %cst_10 = arith.constant 0.000000e+00 : f32
    %12 = vector.broadcast %cst_10 : f32 to vector<8x128xf32>
    %13 = arith.maximumf %11, %12 : vector<8x128xf32>
    %c0_11 = arith.constant 0 : index
    %c0_12 = arith.constant 0 : index
    %14 = vector.load %arg6[%c0_11, %c0_12] : memref<8x128xf32, #tpu.memory_space<vmem>>, vector<8x128xf32>
    tpu.vector_store %arg6[%c0_11, %c0_12], %13 {strides = array<i32>} : memref<8x128xf32, #tpu.memory_space<vmem>>, vector<8x128xf32>,
    return
  }
  func.func @transform_0(%arg0: i32) -> (i32, i32) {
    %c0_i32 = arith.constant 0 : i32
    %c0_i32_0 = arith.constant 0 : i32
    return %arg0, %c0_i32 : i32, i32
  }
  func.func @transform_1(%arg0: i32) -> (i32, i32) {
    %c0_i32 = arith.constant 0 : i32
    %c0_i32_0 = arith.constant 0 : i32
    %c0_i32_1 = arith.constant 0 : i32
    return %c0_i32, %c0_i32_0 : i32, i32
  }
  func.func @transform_2(%arg0: i32) -> (i32, i32) {
    %c0_i32 = arith.constant 0 : i32
    %c0_i32_0 = arith.constant 0 : i32
    %c0_i32_1 = arith.constant 0 : i32
    return %c0_i32, %c0_i32_0 : i32, i32
  }
  func.func @transform_3(%arg0: i32) -> (i32, i32) {
    %c0_i32 = arith.constant 0 : i32
    %c0_i32_0 = arith.constant 0 : i32
    %c0_i32_1 = arith.constant 0 : i32
    return %c0_i32, %c0_i32_0 : i32, i32
  }
  func.func @transform_4(%arg0: i32) -> (i32, i32) {
    %c0_i32 = arith.constant 0 : i32
    %c0_i32_0 = arith.constant 0 : i32
    %c0_i32_1 = arith.constant 0 : i32
    return %c0_i32, %c0_i32_0 : i32, i32
  }
  func.func @transform_5(%arg0: i32) -> (i32, i32) {
    %c0_i32 = arith.constant 0 : i32
    %c0_i32_0 = arith.constant 0 : i32
    return %arg0, %c0_i32 : i32, i32
  }
}

</mosaic_0001>

<llo_original>
// kernel: tpu_custom_call.1
$region0: #{tpu_custom_call.1}
  #allocation0 [shape = 'u32[]', space=smem, size = 0x4, offset = 0x4, fixed_abs, tag = 'smem constant byte address 0x4 - core index']
  #allocation1 [shape = 'u32[72,128]{1,0:T(1,128)}', space=vmem, size = 0x9000, scoped, tag = 'internal scratch']
  %s0 = inlined_call_operand.hbm [shape: f32[8,128], index: 0, kind: input, shape index: {}]
  %s1 = inlined_call_operand.hbm [shape: f32[128,1024], index: 1, kind: input, shape index: {}]
  %s2 = inlined_call_operand.hbm [shape: f32[1,1024], index: 2, kind: input, shape index: {}]
  %s3 = inlined_call_operand.hbm [shape: f32[1024,128], index: 3, kind: input, shape index: {}]
  %s4 = inlined_call_operand.vmem [shape: f32[1,128], index: 4, kind: input, shape index: {}]
  %s5 = inlined_call_operand.hbm [shape: f32[8,128], index: 5, kind: output, shape index: {}]
  %s6 = sld [smem:[#allocation0]]
  $region46: #{tpu_custom_call.1} parent=0
    _
  %s8 = ssub.s32 1, %s6
  %s9 = scalar_select 0, %s8, %s6
  $region1: #{tpu_custom_call.1} parent=0
    #allocation2 [shape = 'u8[4096]{0}', space=vmem, size = 0x1000, scoped, tag = 'input window, operand 0, single buffered']
    #allocation3 [shape = 's32[1]{0}', space=sflag, size = 0x4, scoped, tag = 'scoped memory for tpu_custom_call.1']
    #allocation4 [shape = 's32[1]{0}', space=sflag, size = 0x4, scoped, tag = 'scoped memory for tpu_custom_call.1']
    #allocation5 [shape = 'u8[524288]{0}', space=vmem, size = 0x80000, scoped, tag = 'input window, operand 1, single buffered']
    #allocation6 [shape = 's32[1]{0}', space=sflag, size = 0x4, scoped, tag = 'scoped memory for tpu_custom_call.1']
    #allocation7 [shape = 'u8[4096]{0}', space=vmem, size = 0x1000, scoped, tag = 'input window, operand 2, single buffered']
    #allocation8 [shape = 'u8[524288]{0}', space=vmem, size = 0x80000, scoped, tag = 'input window, operand 3, single buffered']
    #allocation9 [shape = 's32[1]{0}', space=sflag, size = 0x4, scoped, tag = 'scoped memory for tpu_custom_call.1']
    #allocation10 [shape = 'u8[4096]{0}', space=vmem, size = 0x1000, scoped, tag = 'output window, operand 0, single buffered']
    %10 = vsyncpa [#allocation3], 0
    %11 = vsyncpa [#allocation6], 0
    %12 = vsyncpa [#allocation9], 0
    %13 = vsyncpa [#allocation4], 0
    // Predicated region
    $region2: #{tpu_custom_call.1} parent=1 // pred_check
      _
    $region3: #{tpu_custom_call.1} parent=1 // pred_check_branch
      %15 = sbr.rel (0) target = $region5
    $region4: #{tpu_custom_call.1} parent=1 // pred_region
      %17 = vsyncadd [#allocation3], 0
      %s19 = sshll.u32 %s0, 4
      %s20 = int_to_ptr.hbm [resolvable:$true] %s19
      %s21 = sshll.u32 [#allocation2], 4
      %s22 = int_to_ptr.vmem [resolvable:$true] %s21
      %24 = dma.hbm_to_vmem [thread:$0]  %s20, 128, %s22, [#allocation3]
    $region5: #{tpu_custom_call.1} parent=1 // pred_fallthru
      _
    // Predicated region
    $region6: #{tpu_custom_call.1} parent=1 // pred_check
      _
    $region7: #{tpu_custom_call.1} parent=1 // pred_check_branch
      %26 = sbr.rel (0) target = $region9
    $region8: #{tpu_custom_call.1} parent=1 // pred_region
      %28 = vsyncadd [#allocation6], 0
      %s29 = sshll.u32 %s1, 4
      %s30 = int_to_ptr.hbm [resolvable:$true] %s29
      %s31 = sshll.u32 [#allocation5], 4
      %s32 = int_to_ptr.vmem [resolvable:$true] %s31
      %37 = dma.hbm_to_vmem [thread:$0]  %s30, 16384, %s32, [#allocation6], 1024, 1024, 64
    $region9: #{tpu_custom_call.1} parent=1 // pred_fallthru
      _
    // Predicated region
    $region10: #{tpu_custom_call.1} parent=1 // pred_check
      _
    $region11: #{tpu_custom_call.1} parent=1 // pred_check_branch
      %39 = sbr.rel (0) target = $region13
    $region12: #{tpu_custom_call.1} parent=1 // pred_region
      %41 = vsyncadd [#allocation6], 0
      %s43 = sshll.u32 %s2, 4
      %s44 = int_to_ptr.hbm [resolvable:$true] %s43
      %s45 = sshll.u32 [#allocation7], 4
      %s46 = int_to_ptr.vmem [resolvable:$true] %s45
      %48 = dma.hbm_to_vmem [thread:$0]  %s44, 128, %s46, [#allocation6]
    $region13: #{tpu_custom_call.1} parent=1 // pred_fallthru
      _
    // Predicated region
    $region14: #{tpu_custom_call.1} parent=1 // pred_check
      _
    $region15: #{tpu_custom_call.1} parent=1 // pred_check_branch
      %50 = sbr.rel (0) target = $region17
    $region16: #{tpu_custom_call.1} parent=1 // pred_region
      %52 = vsyncadd [#allocation9], 0
      %s53 = sshll.u32 %s3, 4
      %s54 = int_to_ptr.hbm [resolvable:$true] %s53
      %s55 = sshll.u32 [#allocation8], 4
      %s56 = int_to_ptr.vmem [resolvable:$true] %s55
      %61 = dma.hbm_to_vmem [thread:$0]  %s54, 16384, %s56, [#allocation9], 128, 128, 8
    $region17: #{tpu_custom_call.1} parent=1 // pred_fallthru
      _
    // Predicated region
    $region18: #{tpu_custom_call.1} parent=1 // pred_check
      _
    $region19: #{tpu_custom_call.1} parent=1 // pred_check_branch
      %63 = sbr.rel (0) target = $region21
    $region20: #{tpu_custom_call.1} parent=1 // pred_region
      _
    $region21: #{tpu_custom_call.1} parent=1 // pred_fallthru
      _
    // Predicated region
    $region22: #{tpu_custom_call.1} parent=1 // pred_check
      _
    $region23: #{tpu_custom_call.1} parent=1 // pred_check_branch
      %65 = sbr.rel (0) target = $region25
    $region24: #{tpu_custom_call.1} parent=1 // pred_region
      %67 = dma.done [#allocation3], 128
    $region25: #{tpu_custom_call.1} parent=1 // pred_fallthru
      _
    // Predicated region
    $region26: #{tpu_custom_call.1} parent=1 // pred_check
      _
    $region27: #{tpu_custom_call.1} parent=1 // pred_check_branch
      %69 = sbr.rel (0) target = $region29
    $region28: #{tpu_custom_call.1} parent=1 // pred_region
      %71 = dma.done [#allocation6], 16384
    $region29: #{tpu_custom_call.1} parent=1 // pred_fallthru
      _
    // Predicated region
    $region30: #{tpu_custom_call.1} parent=1 // pred_check
      _
    $region31: #{tpu_custom_call.1} parent=1 // pred_check_branch
      %73 = sbr.rel (0) target = $region33
    $region32: #{tpu_custom_call.1} parent=1 // pred_region
      %75 = dma.done [#allocation6], 128
    $region33: #{tpu_custom_call.1} parent=1 // pred_fallthru
      _
    // Predicated region
    $region34: #{tpu_custom_call.1} parent=1 // pred_check
      _
    $region35: #{tpu_custom_call.1} parent=1 // pred_check_branch
      %77 = sbr.rel (0) target = $region37
    $region36: #{tpu_custom_call.1} parent=1 // pred_region
      %79 = dma.done [#allocation9], 16384
    $region37: #{tpu_custom_call.1} parent=1 // pred_fallthru
      _
    %v80 = vld [vmem:[#allocation2] sm:$0xff]
    %v81 = vld [vmem:[#allocation5] sm:$0xff]
    %v82 = vld [vmem:[#allocation5 + $0x8] sm:$0xff]
    %v83 = vld [vmem:[#allocation5 + $0x10] sm:$0xff]
    %v84 = vld [vmem:[#allocation5 + $0x18] sm:$0xff]
    %v85 = vld [vmem:[#allocation5 + $0x20] sm:$0xff]
    %v86 = vld [vmem:[#allocation5 + $0x28] sm:$0xff]
    %v87 = vld [vmem:[#allocation5 + $0x30] sm:$0xff]
    %v88 = vld [vmem:[#allocation5 + $0x38] sm:$0xff]
    %v89 = vld [vmem:[#allocation5 + $0x40] sm:$0xff]
    %v90 = vld [vmem:[#allocation5 + $0x48] sm:$0xff]
    %v91 = vld [vmem:[#allocation5 + $0x50] sm:$0xff]
    %v92 = vld [vmem:[#allocation5 + $0x58] sm:$0xff]
    %v93 = vld [vmem:[#allocation5 + $0x60] sm:$0xff]
    %v94 = vld [vmem:[#allocation5 + $0x68] sm:$0xff]
    %v95 = vld [vmem:[#allocation5 + $0x70] sm:$0xff]
    %v96 = vld [vmem:[#allocation5 + $0x78] sm:$0xff]
    %v97 = vld [vmem:[#allocation5 + $0x80] sm:$0xff]
    %v98 = vld [vmem:[#allocation5 + $0x88] sm:$0xff]
    %v99 = vld [vmem:[#allocation5 + $0x90] sm:$0xff]
    %v100 = vld [vmem:[#allocation5 + $0x98] sm:$0xff]
    %v101 = vld [vmem:[#allocation5 + $0xa0] sm:$0xff]
    %v102 = vld [vmem:[#allocation5 + $0xa8] sm:$0xff]
    %v103 = vld [vmem:[#allocation5 + $0xb0] sm:$0xff]
    %v104 = vld [vmem:[#allocation5 + $0xb8] sm:$0xff]
    %v105 = vld [vmem:[#allocation5 + $0xc0] sm:$0xff]
    %v106 = vld [vmem:[#allocation5 + $0xc8] sm:$0xff]
    %v107 = vld [vmem:[#allocation5 + $0xd0] sm:$0xff]
    %v108 = vld [vmem:[#allocation5 + $0xd8] sm:$0xff]
    %v109 = vld [vmem:[#allocation5 + $0xe0] sm:$0xff]
    %v110 = vld [vmem:[#allocation5 + $0xe8] sm:$0xff]
    %v111 = vld [vmem:[#allocation5 + $0xf0] sm:$0xff]
    %v112 = vld [vmem:[#allocation5 + $0xf8] sm:$0xff]
    %v113 = vld [vmem:[#allocation5 + $0x100] sm:$0xff]
    %v114 = vld [vmem:[#allocation5 + $0x108] sm:$0xff]
    %v115 = vld [vmem:[#allocation5 + $0x110] sm:$0xff]
    %v116 = vld [vmem:[#allocation5 + $0x118] sm:$0xff]
    %v117 = vld [vmem:[#allocation5 + $0x120] sm:$0xff]
    %v118 = vld [vmem:[#allocation5 + $0x128] sm:$0xff]
    %v119 = vld [vmem:[#allocation5 + $0x130] sm:$0xff]
    %v120 = vld [vmem:[#allocation5 + $0x138] sm:$0xff]
    %v121 = vld [vmem:[#allocation5 + $0x140] sm:$0xff]
    %v122 = vld [vmem:[#allocation5 + $0x148] sm:$0xff]
    %v123 = vld [vmem:[#allocation5 + $0x150] sm:$0xff]
    %v124 = vld [vmem:[#allocation5 + $0x158] sm:$0xff]
    %v125 = vld [vmem:[#allocation5 + $0x160] sm:$0xff]
    %v126 = vld [vmem:[#allocation5 + $0x168] sm:$0xff]
    %v127 = vld [vmem:[#allocation5 + $0x170] sm:$0xff]
    %v128 = vld [vmem:[#allocation5 + $0x178] sm:$0xff]
    %v129 = vld [vmem:[#allocation5 + $0x180] sm:$0xff]
    %v130 = vld [vmem:[#allocation5 + $0x188] sm:$0xff]
    %v131 = vld [vmem:[#allocation5 + $0x190] sm:$0xff]
    %v132 = vld [vmem:[#allocation5 + $0x198] sm:$0xff]
    %v133 = vld [vmem:[#allocation5 + $0x1a0] sm:$0xff]
    %v134 = vld [vmem:[#allocation5 + $0x1a8] sm:$0xff]
    %v135 = vld [vmem:[#allocation5 + $0x1b0] sm:$0xff]
    %v136 = vld [vmem:[#allocation5 + $0x1b8] sm:$0xff]
    %v137 = vld [vmem:[#allocation5 + $0x1c0] sm:$0xff]
    %v138 = vld [vmem:[#allocation5 + $0x1c8] sm:$0xff]
    %v139 = vld [vmem:[#allocation5 + $0x1d0] sm:$0xff]
    %v140 = vld [vmem:[#allocation5 + $0x1d8] sm:$0xff]
    %v141 = vld [vmem:[#allocation5 + $0x1e0] sm:$0xff]
    %v142 = vld [vmem:[#allocation5 + $0x1e8] sm:$0xff]
    %v143 = vld [vmem:[#allocation5 + $0x1f0] sm:$0xff]
    %v144 = vld [vmem:[#allocation5 + $0x1f8] sm:$0xff]
    %v145 = vld [vmem:[#allocation5 + $0x200] sm:$0xff]
    %v146 = vld [vmem:[#allocation5 + $0x208] sm:$0xff]
    %v147 = vld [vmem:[#allocation5 + $0x210] sm:$0xff]
    %v148 = vld [vmem:[#allocation5 + $0x218] sm:$0xff]
    %v149 = vld [vmem:[#allocation5 + $0x220] sm:$0xff]
    %v150 = vld [vmem:[#allocation5 + $0x228] sm:$0xff]
    %v151 = vld [vmem:[#allocation5 + $0x230] sm:$0xff]
    %v152 = vld [vmem:[#allocation5 + $0x238] sm:$0xff]
    %v153 = vld [vmem:[#allocation5 + $0x240] sm:$0xff]
    %v154 = vld [vmem:[#allocation5 + $0x248] sm:$0xff]
    %v155 = vld [vmem:[#allocation5 + $0x250] sm:$0xff]
    %v156 = vld [vmem:[#allocation5 + $0x258] sm:$0xff]
    %v157 = vld [vmem:[#allocation5 + $0x260] sm:$0xff]
    %v158 = vld [vmem:[#allocation5 + $0x268] sm:$0xff]
    %v159 = vld [vmem:[#allocation5 + $0x270] sm:$0xff]
    %v160 = vld [vmem:[#allocation5 + $0x278] sm:$0xff]
    %v161 = vld [vmem:[#allocation5 + $0x280] sm:$0xff]
    %v162 = vld [vmem:[#allocation5 + $0x288] sm:$0xff]
    %v163 = vld [vmem:[#allocation5 + $0x290] sm:$0xff]
    %v164 = vld [vmem:[#allocation5 + $0x298] sm:$0xff]
    %v165 = vld [vmem:[#allocation5 + $0x2a0] sm:$0xff]
    %v166 = vld [vmem:[#allocation5 + $0x2a8] sm:$0xff]
    %v167 = vld [vmem:[#allocation5 + $0x2b0] sm:$0xff]
    %v168 = vld [vmem:[#allocation5 + $0x2b8] sm:$0xff]
    %v169 = vld [vmem:[#allocation5 + $0x2c0] sm:$0xff]
    %v170 = vld [vmem:[#allocation5 + $0x2c8] sm:$0xff]
    %v171 = vld [vmem:[#allocation5 + $0x2d0] sm:$0xff]
    %v172 = vld [vmem:[#allocation5 + $0x2d8] sm:$0xff]
    %v173 = vld [vmem:[#allocation5 + $0x2e0] sm:$0xff]
    %v174 = vld [vmem:[#allocation5 + $0x2e8] sm:$0xff]
    %v175 = vld [vmem:[#allocation5 + $0x2f0] sm:$0xff]
    %v176 = vld [vmem:[#allocation5 + $0x2f8] sm:$0xff]
    %v177 = vld [vmem:[#allocation5 + $0x300] sm:$0xff]
    %v178 = vld [vmem:[#allocation5 + $0x308] sm:$0xff]
    %v179 = vld [vmem:[#allocation5 + $0x310] sm:$0xff]
    %v180 = vld [vmem:[#allocation5 + $0x318] sm:$0xff]
    %v181 = vld [vmem:[#allocation5 + $0x320] sm:$0xff]
    %v182 = vld [vmem:[#allocation5 + $0x328] sm:$0xff]
    %v183 = vld [vmem:[#allocation5 + $0x330] sm:$0xff]
    %v184 = vld [vmem:[#allocation5 + $0x338] sm:$0xff]
    %v185 = vld [vmem:[#allocation5 + $0x340] sm:$0xff]
    %v186 = vld [vmem:[#allocation5 + $0x348] sm:$0xff]
    %v187 = vld [vmem:[#allocation5 + $0x350] sm:$0xff]
    %v188 = vld [vmem:[#allocation5 + $0x358] sm:$0xff]
    %v189 = vld [vmem:[#allocation5 + $0x360] sm:$0xff]
    %v190 = vld [vmem:[#allocation5 + $0x368] sm:$0xff]
    %v191 = vld [vmem:[#allocation5 + $0x370] sm:$0xff]
    %v192 = vld [vmem:[#allocation5 + $0x378] sm:$0xff]
    %v193 = vld [vmem:[#allocation5 + $0x380] sm:$0xff]
    %v194 = vld [vmem:[#allocation5 + $0x388] sm:$0xff]
    %v195 = vld [vmem:[#allocation5 + $0x390] sm:$0xff]
    %v196 = vld [vmem:[#allocation5 + $0x398] sm:$0xff]
    %v197 = vld [vmem:[#allocation5 + $0x3a0] sm:$0xff]
    %v198 = vld [vmem:[#allocation5 + $0x3a8] sm:$0xff]
    %v199 = vld [vmem:[#allocation5 + $0x3b0] sm:$0xff]
    %v200 = vld [vmem:[#allocation5 + $0x3b8] sm:$0xff]
    %v201 = vld [vmem:[#allocation5 + $0x3c0] sm:$0xff]
    %v202 = vld [vmem:[#allocation5 + $0x3c8] sm:$0xff]
    %v203 = vld [vmem:[#allocation5 + $0x3d0] sm:$0xff]
    %v204 = vld [vmem:[#allocation5 + $0x3d8] sm:$0xff]
    %v205 = vld [vmem:[#allocation5 + $0x3e0] sm:$0xff]
    %v206 = vld [vmem:[#allocation5 + $0x3e8] sm:$0xff]
    %v207 = vld [vmem:[#allocation5 + $0x3f0] sm:$0xff]
    %v208 = vld [vmem:[#allocation5 + $0x3f8] sm:$0xff]
    %v209 = vld [vmem:[#allocation7] sm:$0xff]
    %v211 = vperm.slane %v209, 0
    %v212 = vperm.slane %v209, 1
    %v213 = vperm.slane %v209, 2
    %v214 = vperm.slane %v209, 3
    %v215 = vperm.slane %v209, 4
    %v216 = vperm.slane %v209, 5
    %v217 = vperm.slane %v209, 6
    %v218 = vperm.slane %v209, 7
    %v227 = vand.u32 %v201, 4294901760
    %228 = vmatpush.msra.mxu0 %v227
    %v229 = vand.u32 %v193, 4294901760
    %230 = vmatpush.msra.mxu0 %v229
    %v231 = vand.u32 %v185, 4294901760
    %232 = vmatpush.msra.mxu0 %v231
    %v233 = vand.u32 %v177, 4294901760
    %234 = vmatpush.msra.mxu0 %v233
    %v235 = vand.u32 %v169, 4294901760
    %236 = vmatpush.msra.mxu0 %v235
    %v237 = vand.u32 %v161, 4294901760
    %238 = vmatpush.msra.mxu0 %v237
    %v239 = vand.u32 %v153, 4294901760
    %240 = vmatpush.msra.mxu0 %v239
    %v241 = vand.u32 %v145, 4294901760
    %242 = vmatpush.msra.mxu0 %v241
    %v243 = vand.u32 %v137, 4294901760
    %244 = vmatpush.msra.mxu0 %v243
    %v245 = vand.u32 %v129, 4294901760
    %246 = vmatpush.msra.mxu0 %v245
    %v247 = vand.u32 %v121, 4294901760
    %248 = vmatpush.msra.mxu0 %v247
    %v249 = vand.u32 %v113, 4294901760
    %250 = vmatpush.msra.mxu0 %v249
    %v251 = vand.u32 %v105, 4294901760
    %252 = vmatpush.msra.mxu0 %v251
    %v253 = vand.u32 %v97, 4294901760
    %254 = vmatpush.msra.mxu0 %v253
    %v255 = vand.u32 %v89, 4294901760
    %256 = vmatpush.msra.mxu0 %v255
    %v257 = vand.u32 %v81, 4294901760
    %258 = vmatpush.msra.mxu0 %v257
    %v259 = vand.u32 %v80, 4294901760
    %v260 = vsub.f32 %v80, %v259
    %v261 = vand.u32 %v260, 4294901760
    %v262 = vsub.f32 %v260, %v261
    %v263 = vand.u32 %v262, 4294901760
    %264 = vmatmul.f32.gmra.mxu0 %v263
    %v265 = vpop.f32.mrf.mxu0
    %v266 = vadd.f32 %v211, %v265
    %267 = vdwg.mxu0
    %v268 = vand.u32 %v201, 4294901760
    %v269 = vsub.f32 %v201, %v268
    %v270 = vand.u32 %v269, 4294901760
    %v271 = vsub.f32 %v269, %v270
    %v272 = vand.u32 %v271, 4294901760
    %273 = vmatpush.msra.mxu0 %v272
    %v274 = vand.u32 %v193, 4294901760
    %v275 = vsub.f32 %v193, %v274
    %v276 = vand.u32 %v275, 4294901760
    %v277 = vsub.f32 %v275, %v276
    %v278 = vand.u32 %v277, 4294901760
    %279 = vmatpush.msra.mxu0 %v278
    %v280 = vand.u32 %v185, 4294901760
    %v281 = vsub.f32 %v185, %v280
    %v282 = vand.u32 %v281, 4294901760
    %v283 = vsub.f32 %v281, %v282
    %v284 = vand.u32 %v283, 4294901760
    %285 = vmatpush.msra.mxu0 %v284
    %v286 = vand.u32 %v177, 4294901760
    %v287 = vsub.f32 %v177, %v286
    %v288 = vand.u32 %v287, 4294901760
    %v289 = vsub.f32 %v287, %v288
    %v290 = vand.u32 %v289, 4294901760
    %291 = vmatpush.msra.mxu0 %v290
    %v292 = vand.u32 %v169, 4294901760
    %v293 = vsub.f32 %v169, %v292
    %v294 = vand.u32 %v293, 4294901760
    %v295 = vsub.f32 %v293, %v294
    %v296 = vand.u32 %v295, 4294901760
    %297 = vmatpush.msra.mxu0 %v296
    %v298 = vand.u32 %v161, 4294901760
    %v299 = vsub.f32 %v161, %v298
    %v300 = vand.u32 %v299, 4294901760
    %v301 = vsub.f32 %v299, %v300
    %v302 = vand.u32 %v301, 4294901760
    %303 = vmatpush.msra.mxu0 %v302
    %v304 = vand.u32 %v153, 4294901760
    %v305 = vsub.f32 %v153, %v304
    %v306 = vand.u32 %v305, 4294901760
    %v307 = vsub.f32 %v305, %v306
    %v308 = vand.u32 %v307, 4294901760
    %309 = vmatpush.msra.mxu0 %v308
    %v310 = vand.u32 %v145, 4294901760
    %v311 = vsub.f32 %v145, %v310
    %v312 = vand.u32 %v311, 4294901760
    %v313 = vsub.f32 %v311, %v312
    %v314 = vand.u32 %v313, 4294901760
    %315 = vmatpush.msra.mxu0 %v314
    %v316 = vand.u32 %v137, 4294901760
    %v317 = vsub.f32 %v137, %v316
    %v318 = vand.u32 %v317, 4294901760
    %v319 = vsub.f32 %v317, %v318
    %v320 = vand.u32 %v319, 4294901760
    %321 = vmatpush.msra.mxu0 %v320
    %v322 = vand.u32 %v129, 4294901760
    %v323 = vsub.f32 %v129, %v322
    %v324 = vand.u32 %v323, 4294901760
    %v325 = vsub.f32 %v323, %v324
    %v326 = vand.u32 %v325, 4294901760
    %327 = vmatpush.msra.mxu0 %v326
    %v328 = vand.u32 %v121, 4294901760
    %v329 = vsub.f32 %v121, %v328
    %v330 = vand.u32 %v329, 4294901760
    %v331 = vsub.f32 %v329, %v330
    %v332 = vand.u32 %v331, 4294901760
    %333 = vmatpush.msra.mxu0 %v332
    %v334 = vand.u32 %v113, 4294901760
    %v335 = vsub.f32 %v113, %v334
    %v336 = vand.u32 %v335, 4294901760
    %v337 = vsub.f32 %v335, %v336
    %v338 = vand.u32 %v337, 4294901760
    %339 = vmatpush.msra.mxu0 %v338
    %v340 = vand.u32 %v105, 4294901760
    %v341 = vsub.f32 %v105, %v340
    %v342 = vand.u32 %v341, 4294901760
    %v343 = vsub.f32 %v341, %v342
    %v344 = vand.u32 %v343, 4294901760
    %345 = vmatpush.msra.mxu0 %v344
    %v346 = vand.u32 %v97, 4294901760
    %v347 = vsub.f32 %v97, %v346
    %v348 = vand.u32 %v347, 4294901760
    %v349 = vsub.f32 %v347, %v348
    %v350 = vand.u32 %v349, 4294901760
    %351 = vmatpush.msra.mxu0 %v350
    %v352 = vand.u32 %v89, 4294901760
    %v353 = vsub.f32 %v89, %v352
    %v354 = vand.u32 %v353, 4294901760
    %v355 = vsub.f32 %v353, %v354
    %v356 = vand.u32 %v355, 4294901760
    %357 = vmatpush.msra.mxu0 %v356
    %v358 = vand.u32 %v81, 4294901760
    %v359 = vsub.f32 %v81, %v358
    %v360 = vand.u32 %v359, 4294901760
    %v361 = vsub.f32 %v359, %v360
    %v362 = vand.u32 %v361, 4294901760
    %363 = vmatpush.msra.mxu0 %v362
    %v364 = vand.u32 %v80, 4294901760
    %365 = vmatmul.f32.gmra.mxu0 %v364
    %v366 = vpop.f32.mrf.mxu0
    %v367 = vadd.f32 %v266, %v366
    %368 = vdwg.mxu0
    %v369 = vand.u32 %v201, 4294901760
    %v370 = vsub.f32 %v201, %v369
    %371 = vmatpush.msra.mxu0 %v370
    %v372 = vand.u32 %v193, 4294901760
    %v373 = vsub.f32 %v193, %v372
    %374 = vmatpush.msra.mxu0 %v373
    %v375 = vand.u32 %v185, 4294901760
    %v376 = vsub.f32 %v185, %v375
    %377 = vmatpush.msra.mxu0 %v376
    %v378 = vand.u32 %v177, 4294901760
    %v379 = vsub.f32 %v177, %v378
    %380 = vmatpush.msra.mxu0 %v379
    %v381 = vand.u32 %v169, 4294901760
    %v382 = vsub.f32 %v169, %v381
    %383 = vmatpush.msra.mxu0 %v382
    %v384 = vand.u32 %v161, 4294901760
    %v385 = vsub.f32 %v161, %v384
    %386 = vmatpush.msra.mxu0 %v385
    %v387 = vand.u32 %v153, 4294901760
    %v388 = vsub.f32 %v153, %v387
    %389 = vmatpush.msra.mxu0 %v388
    %v390 = vand.u32 %v145, 4294901760
    %v391 = vsub.f32 %v145, %v390
    %392 = vmatpush.msra.mxu0 %v391
    %v393 = vand.u32 %v137, 4294901760
    %v394 = vsub.f32 %v137, %v393
    %395 = vmatpush.msra.mxu0 %v394
    %v396 = vand.u32 %v129, 4294901760
    %v397 = vsub.f32 %v129, %v396
    %398 = vmatpush.msra.mxu0 %v397
    %v399 = vand.u32 %v121, 4294901760
    %v400 = vsub.f32 %v121, %v399
    %401 = vmatpush.msra.mxu0 %v400
    %v402 = vand.u32 %v113, 4294901760
    %v403 = vsub.f32 %v113, %v402
    %404 = vmatpush.msra.mxu0 %v403
    %v405 = vand.u32 %v105, 4294901760
    %v406 = vsub.f32 %v105, %v405
    %407 = vmatpush.msra.mxu0 %v406
    %v408 = vand.u32 %v97, 4294901760
    %v409 = vsub.f32 %v97, %v408
    %410 = vmatpush.msra.mxu0 %v409
    %v411 = vand.u32 %v89, 4294901760
    %v412 = vsub.f32 %v89, %v411
    %413 = vmatpush.msra.mxu0 %v412
    %v414 = vand.u32 %v81, 4294901760
    %v415 = vsub.f32 %v81, %v414
    %416 = vmatpush.msra.mxu0 %v415
    %v417 = vand.u32 %v80, 4294901760
    %v418 = vsub.f32 %v80, %v417
    %419 = vmatmul.f32.gmra.mxu0 %v418
    %v420 = vpop.f32.mrf.mxu0
    %v421 = vadd.f32 %v367, %v420
    %422 = vdwg.mxu0
    %v423 = vand.u32 %v201, 4294901760
    %424 = vmatpush.msra.mxu0 %v423
    %v425 = vand.u32 %v193, 4294901760
    %426 = vmatpush.msra.mxu0 %v425
    %v427 = vand.u32 %v185, 4294901760
    %428 = vmatpush.msra.mxu0 %v427
    %v429 = vand.u32 %v177, 4294901760
    %430 = vmatpush.msra.mxu0 %v429
    %v431 = vand.u32 %v169, 4294901760
    %432 = vmatpush.msra.mxu0 %v431
    %v433 = vand.u32 %v161, 4294901760
    %434 = vmatpush.msra.mxu0 %v433
    %v435 = vand.u32 %v153, 4294901760
    %436 = vmatpush.msra.mxu0 %v435
    %v437 = vand.u32 %v145, 4294901760
    %438 = vmatpush.msra.mxu0 %v437
    %v439 = vand.u32 %v137, 4294901760
    %440 = vmatpush.msra.mxu0 %v439
    %v441 = vand.u32 %v129, 4294901760
    %442 = vmatpush.msra.mxu0 %v441
    %v443 = vand.u32 %v121, 4294901760
    %444 = vmatpush.msra.mxu0 %v443
    %v445 = vand.u32 %v113, 4294901760
    %446 = vmatpush.msra.mxu0 %v445
    %v447 = vand.u32 %v105, 4294901760
    %448 = vmatpush.msra.mxu0 %v447
    %v449 = vand.u32 %v97, 4294901760
    %450 = vmatpush.msra.mxu0 %v449
    %v451 = vand.u32 %v89, 4294901760
    %452 = vmatpush.msra.mxu0 %v451
    %v453 = vand.u32 %v81, 4294901760
    %454 = vmatpush.msra.mxu0 %v453
    %v455 = vand.u32 %v80, 4294901760
    %v456 = vsub.f32 %v80, %v455
    %v457 = vand.u32 %v456, 4294901760
    %458 = vmatmul.f32.gmra.mxu0 %v457
    %v459 = vpop.f32.mrf.mxu0
    %v460 = vadd.f32 %v421, %v459
    %461 = vdwg.mxu0
    %v462 = vand.u32 %v201, 4294901760
    %v463 = vsub.f32 %v201, %v462
    %v464 = vand.u32 %v463, 4294901760
    %465 = vmatpush.msra.mxu0 %v464
    %v466 = vand.u32 %v193, 4294901760
    %v467 = vsub.f32 %v193, %v466
    %v468 = vand.u32 %v467, 4294901760
    %469 = vmatpush.msra.mxu0 %v468
    %v470 = vand.u32 %v185, 4294901760
    %v471 = vsub.f32 %v185, %v470
    %v472 = vand.u32 %v471, 4294901760
    %473 = vmatpush.msra.mxu0 %v472
    %v474 = vand.u32 %v177, 4294901760
    %v475 = vsub.f32 %v177, %v474
    %v476 = vand.u32 %v475, 4294901760
    %477 = vmatpush.msra.mxu0 %v476
    %v478 = vand.u32 %v169, 4294901760
    %v479 = vsub.f32 %v169, %v478
    %v480 = vand.u32 %v479, 4294901760
    %481 = vmatpush.msra.mxu0 %v480
    %v482 = vand.u32 %v161, 4294901760
    %v483 = vsub.f32 %v161, %v482
    %v484 = vand.u32 %v483, 4294901760
    %485 = vmatpush.msra.mxu0 %v484
    %v486 = vand.u32 %v153, 4294901760
    %v487 = vsub.f32 %v153, %v486
    %v488 = vand.u32 %v487, 4294901760
    %489 = vmatpush.msra.mxu0 %v488
    %v490 = vand.u32 %v145, 4294901760
    %v491 = vsub.f32 %v145, %v490
    %v492 = vand.u32 %v491, 4294901760
    %493 = vmatpush.msra.mxu0 %v492
    %v494 = vand.u32 %v137, 4294901760
    %v495 = vsub.f32 %v137, %v494
    %v496 = vand.u32 %v495, 4294901760
    %497 = vmatpush.msra.mxu0 %v496
    %v498 = vand.u32 %v129, 4294901760
    %v499 = vsub.f32 %v129, %v498
    %v500 = vand.u32 %v499, 4294901760
    %501 = vmatpush.msra.mxu0 %v500
    %v502 = vand.u32 %v121, 4294901760
    %v503 = vsub.f32 %v121, %v502
    %v504 = vand.u32 %v503, 4294901760
    %505 = vmatpush.msra.mxu0 %v504
    %v506 = vand.u32 %v113, 4294901760
    %v507 = vsub.f32 %v113, %v506
    %v508 = vand.u32 %v507, 4294901760
    %509 = vmatpush.msra.mxu0 %v508
    %v510 = vand.u32 %v105, 4294901760
    %v511 = vsub.f32 %v105, %v510
    %v512 = vand.u32 %v511, 4294901760
    %513 = vmatpush.msra.mxu0 %v512
    %v514 = vand.u32 %v97, 4294901760
    %v515 = vsub.f32 %v97, %v514
    %v516 = vand.u32 %v515, 4294901760
    %517 = vmatpush.msra.mxu0 %v516
    %v518 = vand.u32 %v89, 4294901760
    %v519 = vsub.f32 %v89, %v518
    %v520 = vand.u32 %v519, 4294901760
    %521 = vmatpush.msra.mxu0 %v520
    %v522 = vand.u32 %v81, 4294901760
    %v523 = vsub.f32 %v81, %v522
    %v524 = vand.u32 %v523, 4294901760
    %525 = vmatpush.msra.mxu0 %v524
    %v526 = vand.u32 %v80, 4294901760
    %527 = vmatmul.f32.gmra.mxu0 %v526
    %v528 = vpop.f32.mrf.mxu0
    %v529 = vadd.f32 %v460, %v528
    %530 = vdwg.mxu0
    %v531 = vand.u32 %v201, 4294901760
    %532 = vmatpush.msra.mxu0 %v531
    %v533 = vand.u32 %v193, 4294901760
    %534 = vmatpush.msra.mxu0 %v533
    %v535 = vand.u32 %v185, 4294901760
    %536 = vmatpush.msra.mxu0 %v535
    %v537 = vand.u32 %v177, 4294901760
    %538 = vmatpush.msra.mxu0 %v537
    %v539 = vand.u32 %v169, 4294901760
    %540 = vmatpush.msra.mxu0 %v539
    %v541 = vand.u32 %v161, 4294901760
    %542 = vmatpush.msra.mxu0 %v541
    %v543 = vand.u32 %v153, 4294901760
    %544 = vmatpush.msra.mxu0 %v543
    %v545 = vand.u32 %v145, 4294901760
    %546 = vmatpush.msra.mxu0 %v545
    %v547 = vand.u32 %v137, 4294901760
    %548 = vmatpush.msra.mxu0 %v547
    %v549 = vand.u32 %v129, 4294901760
    %550 = vmatpush.msra.mxu0 %v549
    %v551 = vand.u32 %v121, 4294901760
    %552 = vmatpush.msra.mxu0 %v551
    %v553 = vand.u32 %v113, 4294901760
    %554 = vmatpush.msra.mxu0 %v553
    %v555 = vand.u32 %v105, 4294901760
    %556 = vmatpush.msra.mxu0 %v555
    %v557 = vand.u32 %v97, 4294901760
    %558 = vmatpush.msra.mxu0 %v557
    %v559 = vand.u32 %v89, 4294901760
    %560 = vmatpush.msra.mxu0 %v559
    %v561 = vand.u32 %v81, 4294901760
    %562 = vmatpush.msra.mxu0 %v561
    %v563 = vand.u32 %v80, 4294901760
    %564 = vmatmul.f32.gmra.mxu0 %v563
    %v565 = vpop.f32.mrf.mxu0
    %v566 = vadd.f32 %v529, %v565
    %567 = vdwg.mxu0
    %v568 = vand.u32 %v202, 4294901760
    %569 = vmatpush.msra.mxu0 %v568
    %v570 = vand.u32 %v194, 4294901760
    %571 = vmatpush.msra.mxu0 %v570
    %v572 = vand.u32 %v186, 4294901760
    %573 = vmatpush.msra.mxu0 %v572
    %v574 = vand.u32 %v178, 4294901760
    %575 = vmatpush.msra.mxu0 %v574
    %v576 = vand.u32 %v170, 4294901760
    %577 = vmatpush.msra.mxu0 %v576
    %v578 = vand.u32 %v162, 4294901760
    %579 = vmatpush.msra.mxu0 %v578
    %v580 = vand.u32 %v154, 4294901760
    %581 = vmatpush.msra.mxu0 %v580
    %v582 = vand.u32 %v146, 4294901760
    %583 = vmatpush.msra.mxu0 %v582
    %v584 = vand.u32 %v138, 4294901760
    %585 = vmatpush.msra.mxu0 %v584
    %v586 = vand.u32 %v130, 4294901760
    %587 = vmatpush.msra.mxu0 %v586
    %v588 = vand.u32 %v122, 4294901760
    %589 = vmatpush.msra.mxu0 %v588
    %v590 = vand.u32 %v114, 4294901760
    %591 = vmatpush.msra.mxu0 %v590
    %v592 = vand.u32 %v106, 4294901760
    %593 = vmatpush.msra.mxu0 %v592
    %v594 = vand.u32 %v98, 4294901760
    %595 = vmatpush.msra.mxu0 %v594
    %v596 = vand.u32 %v90, 4294901760
    %597 = vmatpush.msra.mxu0 %v596
    %v598 = vand.u32 %v82, 4294901760
    %599 = vmatpush.msra.mxu0 %v598
    %v600 = vand.u32 %v80, 4294901760
    %v601 = vsub.f32 %v80, %v600
    %v602 = vand.u32 %v601, 4294901760
    %v603 = vsub.f32 %v601, %v602
    %v604 = vand.u32 %v603, 4294901760
    %605 = vmatmul.f32.gmra.mxu0 %v604
    %v606 = vpop.f32.mrf.mxu0
    %v607 = vadd.f32 %v212, %v606
    %608 = vdwg.mxu0
    %v609 = vand.u32 %v202, 4294901760
    %v610 = vsub.f32 %v202, %v609
    %v611 = vand.u32 %v610, 4294901760
    %v612 = vsub.f32 %v610, %v611
    %v613 = vand.u32 %v612, 4294901760
    %614 = vmatpush.msra.mxu0 %v613
    %v615 = vand.u32 %v194, 4294901760
    %v616 = vsub.f32 %v194, %v615
    %v617 = vand.u32 %v616, 4294901760
    %v618 = vsub.f32 %v616, %v617
    %v619 = vand.u32 %v618, 4294901760
    %620 = vmatpush.msra.mxu0 %v619
    %v621 = vand.u32 %v186, 4294901760
    %v622 = vsub.f32 %v186, %v621
    %v623 = vand.u32 %v622, 4294901760
    %v624 = vsub.f32 %v622, %v623
    %v625 = vand.u32 %v624, 4294901760
    %626 = vmatpush.msra.mxu0 %v625
    %v627 = vand.u32 %v178, 4294901760
    %v628 = vsub.f32 %v178, %v627
    %v629 = vand.u32 %v628, 4294901760
    %v630 = vsub.f32 %v628, %v629
    %v631 = vand.u32 %v630, 4294901760
    %632 = vmatpush.msra.mxu0 %v631
    %v633 = vand.u32 %v170, 4294901760
    %v634 = vsub.f32 %v170, %v633
    %v635 = vand.u32 %v634, 4294901760
    %v636 = vsub.f32 %v634, %v635
    %v637 = vand.u32 %v636, 4294901760
    %638 = vmatpush.msra.mxu0 %v637
    %v639 = vand.u32 %v162, 4294901760
    %v640 = vsub.f32 %v162, %v639
    %v641 = vand.u32 %v640, 4294901760
    %v642 = vsub.f32 %v640, %v641
    %v643 = vand.u32 %v642, 4294901760
    %644 = vmatpush.msra.mxu0 %v643
    %v645 = vand.u32 %v154, 4294901760
    %v646 = vsub.f32 %v154, %v645
    %v647 = vand.u32 %v646, 4294901760
    %v648 = vsub.f32 %v646, %v647
    %v649 = vand.u32 %v648, 4294901760
    %650 = vmatpush.msra.mxu0 %v649
    %v651 = vand.u32 %v146, 4294901760
    %v652 = vsub.f32 %v146, %v651
    %v653 = vand.u32 %v652, 4294901760
    %v654 = vsub.f32 %v652, %v653
    %v655 = vand.u32 %v654, 4294901760
    %656 = vmatpush.msra.mxu0 %v655
    %v657 = vand.u32 %v138, 4294901760
    %v658 = vsub.f32 %v138, %v657
    %v659 = vand.u32 %v658, 4294901760
    %v660 = vsub.f32 %v658, %v659
    %v661 = vand.u32 %v660, 4294901760
    %662 = vmatpush.msra.mxu0 %v661
    %v663 = vand.u32 %v130, 4294901760
    %v664 = vsub.f32 %v130, %v663
    %v665 = vand.u32 %v664, 4294901760
    %v666 = vsub.f32 %v664, %v665
    %v667 = vand.u32 %v666, 4294901760
    %668 = vmatpush.msra.mxu0 %v667
    %v669 = vand.u32 %v122, 4294901760
    %v670 = vsub.f32 %v122, %v669
    %v671 = vand.u32 %v670, 4294901760
    %v672 = vsub.f32 %v670, %v671
    %v673 = vand.u32 %v672, 4294901760
    %674 = vmatpush.msra.mxu0 %v673
    %v675 = vand.u32 %v114, 4294901760
    %v676 = vsub.f32 %v114, %v675
    %v677 = vand.u32 %v676, 4294901760
    %v678 = vsub.f32 %v676, %v677
    %v679 = vand.u32 %v678, 4294901760
    %680 = vmatpush.msra.mxu0 %v679
    %v681 = vand.u32 %v106, 4294901760
    %v682 = vsub.f32 %v106, %v681
    %v683 = vand.u32 %v682, 4294901760
    %v684 = vsub.f32 %v682, %v683
    %v685 = vand.u32 %v684, 4294901760
    %686 = vmatpush.msra.mxu0 %v685
    %v687 = vand.u32 %v98, 4294901760
    %v688 = vsub.f32 %v98, %v687
    %v689 = vand.u32 %v688, 4294901760
    %v690 = vsub.f32 %v688, %v689
    %v691 = vand.u32 %v690, 4294901760
    %692 = vmatpush.msra.mxu0 %v691
    %v693 = vand.u32 %v90, 4294901760
    %v694 = vsub.f32 %v90, %v693
    %v695 = vand.u32 %v694, 4294901760
    %v696 = vsub.f32 %v694, %v695
    %v697 = vand.u32 %v696, 4294901760
    %698 = vmatpush.msra.mxu0 %v697
    %v699 = vand.u32 %v82, 4294901760
    %v700 = vsub.f32 %v82, %v699
    %v701 = vand.u32 %v700, 4294901760
    %v702 = vsub.f32 %v700, %v701
    %v703 = vand.u32 %v702, 4294901760
    %704 = vmatpush.msra.mxu0 %v703
    %v705 = vand.u32 %v80, 4294901760
    %706 = vmatmul.f32.gmra.mxu0 %v705
    %v707 = vpop.f32.mrf.mxu0
    %v708 = vadd.f32 %v607, %v707
    %709 = vdwg.mxu0
    %v710 = vand.u32 %v202, 4294901760
    %v711 = vsub.f32 %v202, %v710
    %712 = vmatpush.msra.mxu0 %v711
    %v713 = vand.u32 %v194, 4294901760
    %v714 = vsub.f32 %v194, %v713
    %715 = vmatpush.msra.mxu0 %v714
    %v716 = vand.u32 %v186, 4294901760
    %v717 = vsub.f32 %v186, %v716
    %718 = vmatpush.msra.mxu0 %v717
    %v719 = vand.u32 %v178, 4294901760
    %v720 = vsub.f32 %v178, %v719
    %721 = vmatpush.msra.mxu0 %v720
    %v722 = vand.u32 %v170, 4294901760
    %v723 = vsub.f32 %v170, %v722
    %724 = vmatpush.msra.mxu0 %v723
    %v725 = vand.u32 %v162, 4294901760
    %v726 = vsub.f32 %v162, %v725
    %727 = vmatpush.msra.mxu0 %v726
    %v728 = vand.u32 %v154, 4294901760
    %v729 = vsub.f32 %v154, %v728
    %730 = vmatpush.msra.mxu0 %v729
    %v731 = vand.u32 %v146, 4294901760
    %v732 = vsub.f32 %v146, %v731
    %733 = vmatpush.msra.mxu0 %v732
    %v734 = vand.u32 %v138, 4294901760
    %v735 = vsub.f32 %v138, %v734
    %736 = vmatpush.msra.mxu0 %v735
    %v737 = vand.u32 %v130, 4294901760
    %v738 = vsub.f32 %v130, %v737
    %739 = vmatpush.msra.mxu0 %v738
    %v740 = vand.u32 %v122, 4294901760
    %v741 = vsub.f32 %v122, %v740
    %742 = vmatpush.msra.mxu0 %v741
    %v743 = vand.u32 %v114, 4294901760
    %v744 = vsub.f32 %v114, %v743
    %745 = vmatpush.msra.mxu0 %v744
    %v746 = vand.u32 %v106, 4294901760
    %v747 = vsub.f32 %v106, %v746
    %748 = vmatpush.msra.mxu0 %v747
    %v749 = vand.u32 %v98, 4294901760
    %v750 = vsub.f32 %v98, %v749
    %751 = vmatpush.msra.mxu0 %v750
    %v752 = vand.u32 %v90, 4294901760
    %v753 = vsub.f32 %v90, %v752
    %754 = vmatpush.msra.mxu0 %v753
    %v755 = vand.u32 %v82, 4294901760
    %v756 = vsub.f32 %v82, %v755
    %757 = vmatpush.msra.mxu0 %v756
    %v758 = vand.u32 %v80, 4294901760
    %v759 = vsub.f32 %v80, %v758
    %760 = vmatmul.f32.gmra.mxu0 %v759
    %v761 = vpop.f32.mrf.mxu0
    %v762 = vadd.f32 %v708, %v761
    %763 = vdwg.mxu0
    %v764 = vand.u32 %v202, 4294901760
    %765 = vmatpush.msra.mxu0 %v764
    %v766 = vand.u32 %v194, 4294901760
    %767 = vmatpush.msra.mxu0 %v766
    %v768 = vand.u32 %v186, 4294901760
    %769 = vmatpush.msra.mxu0 %v768
    %v770 = vand.u32 %v178, 4294901760
    %771 = vmatpush.msra.mxu0 %v770
    %v772 = vand.u32 %v170, 4294901760
    %773 = vmatpush.msra.mxu0 %v772
    %v774 = vand.u32 %v162, 4294901760
    %775 = vmatpush.msra.mxu0 %v774
    %v776 = vand.u32 %v154, 4294901760
    %777 = vmatpush.msra.mxu0 %v776
    %v778 = vand.u32 %v146, 4294901760
    %779 = vmatpush.msra.mxu0 %v778
    %v780 = vand.u32 %v138, 4294901760
    %781 = vmatpush.msra.mxu0 %v780
    %v782 = vand.u32 %v130, 4294901760
    %783 = vmatpush.msra.mxu0 %v782
    %v784 = vand.u32 %v122, 4294901760
    %785 = vmatpush.msra.mxu0 %v784
    %v786 = vand.u32 %v114, 4294901760
    %787 = vmatpush.msra.mxu0 %v786
    %v788 = vand.u32 %v106, 4294901760
    %789 = vmatpush.msra.mxu0 %v788
    %v790 = vand.u32 %v98, 4294901760
    %791 = vmatpush.msra.mxu0 %v790
    %v792 = vand.u32 %v90, 4294901760
    %793 = vmatpush.msra.mxu0 %v792
    %v794 = vand.u32 %v82, 4294901760
    %795 = vmatpush.msra.mxu0 %v794
    %v796 = vand.u32 %v80, 4294901760
    %v797 = vsub.f32 %v80, %v796
    %v798 = vand.u32 %v797, 4294901760
    %799 = vmatmul.f32.gmra.mxu0 %v798
    %v800 = vpop.f32.mrf.mxu0
    %v801 = vadd.f32 %v762, %v800
    %802 = vdwg.mxu0
    %v803 = vand.u32 %v202, 4294901760
    %v804 = vsub.f32 %v202, %v803
    %v805 = vand.u32 %v804, 4294901760
    %806 = vmatpush.msra.mxu0 %v805
    %v807 = vand.u32 %v194, 4294901760
    %v808 = vsub.f32 %v194, %v807
    %v809 = vand.u32 %v808, 4294901760
    %810 = vmatpush.msra.mxu0 %v809
    %v811 = vand.u32 %v186, 4294901760
    %v812 = vsub.f32 %v186, %v811
    %v813 = vand.u32 %v812, 4294901760
    %814 = vmatpush.msra.mxu0 %v813
    %v815 = vand.u32 %v178, 4294901760
    %v816 = vsub.f32 %v178, %v815
    %v817 = vand.u32 %v816, 4294901760
    %818 = vmatpush.msra.mxu0 %v817
    %v819 = vand.u32 %v170, 4294901760
    %v820 = vsub.f32 %v170, %v819
    %v821 = vand.u32 %v820, 4294901760
    %822 = vmatpush.msra.mxu0 %v821
    %v823 = vand.u32 %v162, 4294901760
    %v824 = vsub.f32 %v162, %v823
    %v825 = vand.u32 %v824, 4294901760
    %826 = vmatpush.msra.mxu0 %v825
    %v827 = vand.u32 %v154, 4294901760
    %v828 = vsub.f32 %v154, %v827
    %v829 = vand.u32 %v828, 4294901760
    %830 = vmatpush.msra.mxu0 %v829
    %v831 = vand.u32 %v146, 4294901760
    %v832 = vsub.f32 %v146, %v831
    %v833 = vand.u32 %v832, 4294901760
    %834 = vmatpush.msra.mxu0 %v833
    %v835 = vand.u32 %v138, 4294901760
    %v836 = vsub.f32 %v138, %v835
    %v837 = vand.u32 %v836, 4294901760
    %838 = vmatpush.msra.mxu0 %v837
    %v839 = vand.u32 %v130, 4294901760
    %v840 = vsub.f32 %v130, %v839
    %v841 = vand.u32 %v840, 4294901760
    %842 = vmatpush.msra.mxu0 %v841
    %v843 = vand.u32 %v122, 4294901760
    %v844 = vsub.f32 %v122, %v843
    %v845 = vand.u32 %v844, 4294901760
    %846 = vmatpush.msra.mxu0 %v845
    %v847 = vand.u32 %v114, 4294901760
    %v848 = vsub.f32 %v114, %v847
    %v849 = vand.u32 %v848, 4294901760
    %850 = vmatpush.msra.mxu0 %v849
    %v851 = vand.u32 %v106, 4294901760
    %v852 = vsub.f32 %v106, %v851
    %v853 = vand.u32 %v852, 4294901760
    %854 = vmatpush.msra.mxu0 %v853
    %v855 = vand.u32 %v98, 4294901760
    %v856 = vsub.f32 %v98, %v855
    %v857 = vand.u32 %v856, 4294901760
    %858 = vmatpush.msra.mxu0 %v857
    %v859 = vand.u32 %v90, 4294901760
    %v860 = vsub.f32 %v90, %v859
    %v861 = vand.u32 %v860, 4294901760
    %862 = vmatpush.msra.mxu0 %v861
    %v863 = vand.u32 %v82, 4294901760
    %v864 = vsub.f32 %v82, %v863
    %v865 = vand.u32 %v864, 4294901760
    %866 = vmatpush.msra.mxu0 %v865
    %v867 = vand.u32 %v80, 4294901760
    %868 = vmatmul.f32.gmra.mxu0 %v867
    %v869 = vpop.f32.mrf.mxu0
    %v870 = vadd.f32 %v801, %v869
    %871 = vdwg.mxu0
    %v872 = vand.u32 %v202, 4294901760
    %873 = vmatpush.msra.mxu0 %v872
    %v874 = vand.u32 %v194, 4294901760
    %875 = vmatpush.msra.mxu0 %v874
    %v876 = vand.u32 %v186, 4294901760
    %877 = vmatpush.msra.mxu0 %v876
    %v878 = vand.u32 %v178, 4294901760
    %879 = vmatpush.msra.mxu0 %v878
    %v880 = vand.u32 %v170, 4294901760
    %881 = vmatpush.msra.mxu0 %v880
    %v882 = vand.u32 %v162, 4294901760
    %883 = vmatpush.msra.mxu0 %v882
    %v884 = vand.u32 %v154, 4294901760
    %885 = vmatpush.msra.mxu0 %v884
    %v886 = vand.u32 %v146, 4294901760
    %887 = vmatpush.msra.mxu0 %v886
    %v888 = vand.u32 %v138, 4294901760
    %889 = vmatpush.msra.mxu0 %v888
    %v890 = vand.u32 %v130, 4294901760
    %891 = vmatpush.msra.mxu0 %v890
    %v892 = vand.u32 %v122, 4294901760
    %893 = vmatpush.msra.mxu0 %v892
    %v894 = vand.u32 %v114, 4294901760
    %895 = vmatpush.msra.mxu0 %v894
    %v896 = vand.u32 %v106, 4294901760
    %897 = vmatpush.msra.mxu0 %v896
    %v898 = vand.u32 %v98, 4294901760
    %899 = vmatpush.msra.mxu0 %v898
    %v900 = vand.u32 %v90, 4294901760
    %901 = vmatpush.msra.mxu0 %v900
    %v902 = vand.u32 %v82, 4294901760
    %903 = vmatpush.msra.mxu0 %v902
    %v904 = vand.u32 %v80, 4294901760
    %905 = vmatmul.f32.gmra.mxu0 %v904
    %v906 = vpop.f32.mrf.mxu0
    %v907 = vadd.f32 %v870, %v906
    %908 = vdwg.mxu0
    %v909 = vand.u32 %v203, 4294901760
    %910 = vmatpush.msra.mxu0 %v909
    %v911 = vand.u32 %v195, 4294901760
    %912 = vmatpush.msra.mxu0 %v911
    %v913 = vand.u32 %v187, 4294901760
    %914 = vmatpush.msra.mxu0 %v913
    %v915 = vand.u32 %v179, 4294901760
    %916 = vmatpush.msra.mxu0 %v915
    %v917 = vand.u32 %v171, 4294901760
    %918 = vmatpush.msra.mxu0 %v917
    %v919 = vand.u32 %v163, 4294901760
    %920 = vmatpush.msra.mxu0 %v919
    %v921 = vand.u32 %v155, 4294901760
    %922 = vmatpush.msra.mxu0 %v921
    %v923 = vand.u32 %v147, 4294901760
    %924 = vmatpush.msra.mxu0 %v923
    %v925 = vand.u32 %v139, 4294901760
    %926 = vmatpush.msra.mxu0 %v925
    %v927 = vand.u32 %v131, 4294901760
    %928 = vmatpush.msra.mxu0 %v927
    %v929 = vand.u32 %v123, 4294901760
    %930 = vmatpush.msra.mxu0 %v929
    %v931 = vand.u32 %v115, 4294901760
    %932 = vmatpush.msra.mxu0 %v931
    %v933 = vand.u32 %v107, 4294901760
    %934 = vmatpush.msra.mxu0 %v933
    %v935 = vand.u32 %v99, 4294901760
    %936 = vmatpush.msra.mxu0 %v935
    %v937 = vand.u32 %v91, 4294901760
    %938 = vmatpush.msra.mxu0 %v937
    %v939 = vand.u32 %v83, 4294901760
    %940 = vmatpush.msra.mxu0 %v939
    %v941 = vand.u32 %v80, 4294901760
    %v942 = vsub.f32 %v80, %v941
    %v943 = vand.u32 %v942, 4294901760
    %v944 = vsub.f32 %v942, %v943
    %v945 = vand.u32 %v944, 4294901760
    %946 = vmatmul.f32.gmra.mxu0 %v945
    %v947 = vpop.f32.mrf.mxu0
    %v948 = vadd.f32 %v213, %v947
    %949 = vdwg.mxu0
    %v950 = vand.u32 %v203, 4294901760
    %v951 = vsub.f32 %v203, %v950
    %v952 = vand.u32 %v951, 4294901760
    %v953 = vsub.f32 %v951, %v952
    %v954 = vand.u32 %v953, 4294901760
    %955 = vmatpush.msra.mxu0 %v954
    %v956 = vand.u32 %v195, 4294901760
    %v957 = vsub.f32 %v195, %v956
    %v958 = vand.u32 %v957, 4294901760
    %v959 = vsub.f32 %v957, %v958
    %v960 = vand.u32 %v959, 4294901760
    %961 = vmatpush.msra.mxu0 %v960
    %v962 = vand.u32 %v187, 4294901760
    %v963 = vsub.f32 %v187, %v962
    %v964 = vand.u32 %v963, 4294901760
    %v965 = vsub.f32 %v963, %v964
    %v966 = vand.u32 %v965, 4294901760
    %967 = vmatpush.msra.mxu0 %v966
    %v968 = vand.u32 %v179, 4294901760
    %v969 = vsub.f32 %v179, %v968
    %v970 = vand.u32 %v969, 4294901760
    %v971 = vsub.f32 %v969, %v970
    %v972 = vand.u32 %v971, 4294901760
    %973 = vmatpush.msra.mxu0 %v972
    %v974 = vand.u32 %v171, 4294901760
    %v975 = vsub.f32 %v171, %v974
    %v976 = vand.u32 %v975, 4294901760
    %v977 = vsub.f32 %v975, %v976
    %v978 = vand.u32 %v977, 4294901760
    %979 = vmatpush.msra.mxu0 %v978
    %v980 = vand.u32 %v163, 4294901760
    %v981 = vsub.f32 %v163, %v980
    %v982 = vand.u32 %v981, 4294901760
    %v983 = vsub.f32 %v981, %v982
    %v984 = vand.u32 %v983, 4294901760
    %985 = vmatpush.msra.mxu0 %v984
    %v986 = vand.u32 %v155, 4294901760
    %v987 = vsub.f32 %v155, %v986
    %v988 = vand.u32 %v987, 4294901760
    %v989 = vsub.f32 %v987, %v988
    %v990 = vand.u32 %v989, 4294901760
    %991 = vmatpush.msra.mxu0 %v990
    %v992 = vand.u32 %v147, 4294901760
    %v993 = vsub.f32 %v147, %v992
    %v994 = vand.u32 %v993, 4294901760
    %v995 = vsub.f32 %v993, %v994
    %v996 = vand.u32 %v995, 4294901760
    %997 = vmatpush.msra.mxu0 %v996
    %v998 = vand.u32 %v139, 4294901760
    %v999 = vsub.f32 %v139, %v998
    %v1000 = vand.u32 %v999, 4294901760
    %v1001 = vsub.f32 %v999, %v1000
    %v1002 = vand.u32 %v1001, 4294901760
    %1003 = vmatpush.msra.mxu0 %v1002
    %v1004 = vand.u32 %v131, 4294901760
    %v1005 = vsub.f32 %v131, %v1004
    %v1006 = vand.u32 %v1005, 4294901760
    %v1007 = vsub.f32 %v1005, %v1006
    %v1008 = vand.u32 %v1007, 4294901760
    %1009 = vmatpush.msra.mxu0 %v1008
    %v1010 = vand.u32 %v123, 4294901760
    %v1011 = vsub.f32 %v123, %v1010
    %v1012 = vand.u32 %v1011, 4294901760
    %v1013 = vsub.f32 %v1011, %v1012
    %v1014 = vand.u32 %v1013, 4294901760
    %1015 = vmatpush.msra.mxu0 %v1014
    %v1016 = vand.u32 %v115, 4294901760
    %v1017 = vsub.f32 %v115, %v1016
    %v1018 = vand.u32 %v1017, 4294901760
    %v1019 = vsub.f32 %v1017, %v1018
    %v1020 = vand.u32 %v1019, 4294901760
    %1021 = vmatpush.msra.mxu0 %v1020
    %v1022 = vand.u32 %v107, 4294901760
    %v1023 = vsub.f32 %v107, %v1022
    %v1024 = vand.u32 %v1023, 4294901760
    %v1025 = vsub.f32 %v1023, %v1024
    %v1026 = vand.u32 %v1025, 4294901760
    %1027 = vmatpush.msra.mxu0 %v1026
    %v1028 = vand.u32 %v99, 4294901760
    %v1029 = vsub.f32 %v99, %v1028
    %v1030 = vand.u32 %v1029, 4294901760
    %v1031 = vsub.f32 %v1029, %v1030
    %v1032 = vand.u32 %v1031, 4294901760
    %1033 = vmatpush.msra.mxu0 %v1032
    %v1034 = vand.u32 %v91, 4294901760
    %v1035 = vsub.f32 %v91, %v1034
    %v1036 = vand.u32 %v1035, 4294901760
    %v1037 = vsub.f32 %v1035, %v1036
    %v1038 = vand.u32 %v1037, 4294901760
    %1039 = vmatpush.msra.mxu0 %v1038
    %v1040 = vand.u32 %v83, 4294901760
    %v1041 = vsub.f32 %v83, %v1040
    %v1042 = vand.u32 %v1041, 4294901760
    %v1043 = vsub.f32 %v1041, %v1042
    %v1044 = vand.u32 %v1043, 4294901760
    %1045 = vmatpush.msra.mxu0 %v1044
    %v1046 = vand.u32 %v80, 4294901760
    %1047 = vmatmul.f32.gmra.mxu0 %v1046
    %v1048 = vpop.f32.mrf.mxu0
    %v1049 = vadd.f32 %v948, %v1048
    %1050 = vdwg.mxu0
    %v1051 = vand.u32 %v203, 4294901760
    %v1052 = vsub.f32 %v203, %v1051
    %1053 = vmatpush.msra.mxu0 %v1052
    %v1054 = vand.u32 %v195, 4294901760
    %v1055 = vsub.f32 %v195, %v1054
    %1056 = vmatpush.msra.mxu0 %v1055
    %v1057 = vand.u32 %v187, 4294901760
    %v1058 = vsub.f32 %v187, %v1057
    %1059 = vmatpush.msra.mxu0 %v1058
    %v1060 = vand.u32 %v179, 4294901760
    %v1061 = vsub.f32 %v179, %v1060
    %1062 = vmatpush.msra.mxu0 %v1061
    %v1063 = vand.u32 %v171, 4294901760
    %v1064 = vsub.f32 %v171, %v1063
    %1065 = vmatpush.msra.mxu0 %v1064
    %v1066 = vand.u32 %v163, 4294901760
    %v1067 = vsub.f32 %v163, %v1066
    %1068 = vmatpush.msra.mxu0 %v1067
    %v1069 = vand.u32 %v155, 4294901760
    %v1070 = vsub.f32 %v155, %v1069
    %1071 = vmatpush.msra.mxu0 %v1070
    %v1072 = vand.u32 %v147, 4294901760
    %v1073 = vsub.f32 %v147, %v1072
    %1074 = vmatpush.msra.mxu0 %v1073
    %v1075 = vand.u32 %v139, 4294901760
    %v1076 = vsub.f32 %v139, %v1075
    %1077 = vmatpush.msra.mxu0 %v1076
    %v1078 = vand.u32 %v131, 4294901760
    %v1079 = vsub.f32 %v131, %v1078
    %1080 = vmatpush.msra.mxu0 %v1079
    %v1081 = vand.u32 %v123, 4294901760
    %v1082 = vsub.f32 %v123, %v1081
    %1083 = vmatpush.msra.mxu0 %v1082
    %v1084 = vand.u32 %v115, 4294901760
    %v1085 = vsub.f32 %v115, %v1084
    %1086 = vmatpush.msra.mxu0 %v1085
    %v1087 = vand.u32 %v107, 4294901760
    %v1088 = vsub.f32 %v107, %v1087
    %1089 = vmatpush.msra.mxu0 %v1088
    %v1090 = vand.u32 %v99, 4294901760
    %v1091 = vsub.f32 %v99, %v1090
    %1092 = vmatpush.msra.mxu0 %v1091
    %v1093 = vand.u32 %v91, 4294901760
    %v1094 = vsub.f32 %v91, %v1093
    %1095 = vmatpush.msra.mxu0 %v1094
    %v1096 = vand.u32 %v83, 4294901760
    %v1097 = vsub.f32 %v83, %v1096
    %1098 = vmatpush.msra.mxu0 %v1097
    %v1099 = vand.u32 %v80, 4294901760
    %v1100 = vsub.f32 %v80, %v1099
    %1101 = vmatmul.f32.gmra.mxu0 %v1100
    %v1102 = vpop.f32.mrf.mxu0
    %v1103 = vadd.f32 %v1049, %v1102
    %1104 = vdwg.mxu0
    %v1105 = vand.u32 %v203, 4294901760
    %1106 = vmatpush.msra.mxu0 %v1105
    %v1107 = vand.u32 %v195, 4294901760
    %1108 = vmatpush.msra.mxu0 %v1107
    %v1109 = vand.u32 %v187, 4294901760
    %1110 = vmatpush.msra.mxu0 %v1109
    %v1111 = vand.u32 %v179, 4294901760
    %1112 = vmatpush.msra.mxu0 %v1111
    %v1113 = vand.u32 %v171, 4294901760
    %1114 = vmatpush.msra.mxu0 %v1113
    %v1115 = vand.u32 %v163, 4294901760
    %1116 = vmatpush.msra.mxu0 %v1115
    %v1117 = vand.u32 %v155, 4294901760
    %1118 = vmatpush.msra.mxu0 %v1117
    %v1119 = vand.u32 %v147, 4294901760
    %1120 = vmatpush.msra.mxu0 %v1119
    %v1121 = vand.u32 %v139, 4294901760
    %1122 = vmatpush.msra.mxu0 %v1121
    %v1123 = vand.u32 %v131, 4294901760
    %1124 = vmatpush.msra.mxu0 %v1123
    %v1125 = vand.u32 %v123, 4294901760
    %1126 = vmatpush.msra.mxu0 %v1125
    %v1127 = vand.u32 %v115, 4294901760
    %1128 = vmatpush.msra.mxu0 %v1127
    %v1129 = vand.u32 %v107, 4294901760
    %1130 = vmatpush.msra.mxu0 %v1129
    %v1131 = vand.u32 %v99, 4294901760
    %1132 = vmatpush.msra.mxu0 %v1131
    %v1133 = vand.u32 %v91, 4294901760
    %1134 = vmatpush.msra.mxu0 %v1133
    %v1135 = vand.u32 %v83, 4294901760
    %1136 = vmatpush.msra.mxu0 %v1135
    %v1137 = vand.u32 %v80, 4294901760
    %v1138 = vsub.f32 %v80, %v1137
    %v1139 = vand.u32 %v1138, 4294901760
    %1140 = vmatmul.f32.gmra.mxu0 %v1139
    %v1141 = vpop.f32.mrf.mxu0
    %v1142 = vadd.f32 %v1103, %v1141
    %1143 = vdwg.mxu0
    %v1144 = vand.u32 %v203, 4294901760
    %v1145 = vsub.f32 %v203, %v1144
    %v1146 = vand.u32 %v1145, 4294901760
    %1147 = vmatpush.msra.mxu0 %v1146
    %v1148 = vand.u32 %v195, 4294901760
    %v1149 = vsub.f32 %v195, %v1148
    %v1150 = vand.u32 %v1149, 4294901760
    %1151 = vmatpush.msra.mxu0 %v1150
    %v1152 = vand.u32 %v187, 4294901760
    %v1153 = vsub.f32 %v187, %v1152
    %v1154 = vand.u32 %v1153, 4294901760
    %1155 = vmatpush.msra.mxu0 %v1154
    %v1156 = vand.u32 %v179, 4294901760
    %v1157 = vsub.f32 %v179, %v1156
    %v1158 = vand.u32 %v1157, 4294901760
    %1159 = vmatpush.msra.mxu0 %v1158
    %v1160 = vand.u32 %v171, 4294901760
    %v1161 = vsub.f32 %v171, %v1160
    %v1162 = vand.u32 %v1161, 4294901760
    %1163 = vmatpush.msra.mxu0 %v1162
    %v1164 = vand.u32 %v163, 4294901760
    %v1165 = vsub.f32 %v163, %v1164
    %v1166 = vand.u32 %v1165, 4294901760
    %1167 = vmatpush.msra.mxu0 %v1166
    %v1168 = vand.u32 %v155, 4294901760
    %v1169 = vsub.f32 %v155, %v1168
    %v1170 = vand.u32 %v1169, 4294901760
    %1171 = vmatpush.msra.mxu0 %v1170
    %v1172 = vand.u32 %v147, 4294901760
    %v1173 = vsub.f32 %v147, %v1172
    %v1174 = vand.u32 %v1173, 4294901760
    %1175 = vmatpush.msra.mxu0 %v1174
    %v1176 = vand.u32 %v139, 4294901760
    %v1177 = vsub.f32 %v139, %v1176
    %v1178 = vand.u32 %v1177, 4294901760
    %1179 = vmatpush.msra.mxu0 %v1178
    %v1180 = vand.u32 %v131, 4294901760
    %v1181 = vsub.f32 %v131, %v1180
    %v1182 = vand.u32 %v1181, 4294901760
    %1183 = vmatpush.msra.mxu0 %v1182
    %v1184 = vand.u32 %v123, 4294901760
    %v1185 = vsub.f32 %v123, %v1184
    %v1186 = vand.u32 %v1185, 4294901760
    %1187 = vmatpush.msra.mxu0 %v1186
    %v1188 = vand.u32 %v115, 4294901760
    %v1189 = vsub.f32 %v115, %v1188
    %v1190 = vand.u32 %v1189, 4294901760
    %1191 = vmatpush.msra.mxu0 %v1190
    %v1192 = vand.u32 %v107, 4294901760
    %v1193 = vsub.f32 %v107, %v1192
    %v1194 = vand.u32 %v1193, 4294901760
    %1195 = vmatpush.msra.mxu0 %v1194
    %v1196 = vand.u32 %v99, 4294901760
    %v1197 = vsub.f32 %v99, %v1196
    %v1198 = vand.u32 %v1197, 4294901760
    %1199 = vmatpush.msra.mxu0 %v1198
    %v1200 = vand.u32 %v91, 4294901760
    %v1201 = vsub.f32 %v91, %v1200
    %v1202 = vand.u32 %v1201, 4294901760
    %1203 = vmatpush.msra.mxu0 %v1202
    %v1204 = vand.u32 %v83, 4294901760
    %v1205 = vsub.f32 %v83, %v1204
    %v1206 = vand.u32 %v1205, 4294901760
    %1207 = vmatpush.msra.mxu0 %v1206
    %v1208 = vand.u32 %v80, 4294901760
    %1209 = vmatmul.f32.gmra.mxu0 %v1208
    %v1210 = vpop.f32.mrf.mxu0
    %v1211 = vadd.f32 %v1142, %v1210
    %1212 = vdwg.mxu0
    %v1213 = vand.u32 %v203, 4294901760
    %1214 = vmatpush.msra.mxu0 %v1213
    %v1215 = vand.u32 %v195, 4294901760
    %1216 = vmatpush.msra.mxu0 %v1215
    %v1217 = vand.u32 %v187, 4294901760
    %1218 = vmatpush.msra.mxu0 %v1217
    %v1219 = vand.u32 %v179, 4294901760
    %1220 = vmatpush.msra.mxu0 %v1219
    %v1221 = vand.u32 %v171, 4294901760
    %1222 = vmatpush.msra.mxu0 %v1221
    %v1223 = vand.u32 %v163, 4294901760
    %1224 = vmatpush.msra.mxu0 %v1223
    %v1225 = vand.u32 %v155, 4294901760
    %1226 = vmatpush.msra.mxu0 %v1225
    %v1227 = vand.u32 %v147, 4294901760
    %1228 = vmatpush.msra.mxu0 %v1227
    %v1229 = vand.u32 %v139, 4294901760
    %1230 = vmatpush.msra.mxu0 %v1229
    %v1231 = vand.u32 %v131, 4294901760
    %1232 = vmatpush.msra.mxu0 %v1231
    %v1233 = vand.u32 %v123, 4294901760
    %1234 = vmatpush.msra.mxu0 %v1233
    %v1235 = vand.u32 %v115, 4294901760
    %1236 = vmatpush.msra.mxu0 %v1235
    %v1237 = vand.u32 %v107, 4294901760
    %1238 = vmatpush.msra.mxu0 %v1237
    %v1239 = vand.u32 %v99, 4294901760
    %1240 = vmatpush.msra.mxu0 %v1239
    %v1241 = vand.u32 %v91, 4294901760
    %1242 = vmatpush.msra.mxu0 %v1241
    %v1243 = vand.u32 %v83, 4294901760
    %1244 = vmatpush.msra.mxu0 %v1243
    %v1245 = vand.u32 %v80, 4294901760
    %1246 = vmatmul.f32.gmra.mxu0 %v1245
    %v1247 = vpop.f32.mrf.mxu0
    %v1248 = vadd.f32 %v1211, %v1247
    %1249 = vdwg.mxu0
    %v1250 = vand.u32 %v204, 4294901760
    %1251 = vmatpush.msra.mxu0 %v1250
    %v1252 = vand.u32 %v196, 4294901760
    %1253 = vmatpush.msra.mxu0 %v1252
    %v1254 = vand.u32 %v188, 4294901760
    %1255 = vmatpush.msra.mxu0 %v1254
    %v1256 = vand.u32 %v180, 4294901760
    %1257 = vmatpush.msra.mxu0 %v1256
    %v1258 = vand.u32 %v172, 4294901760
    %1259 = vmatpush.msra.mxu0 %v1258
    %v1260 = vand.u32 %v164, 4294901760
    %1261 = vmatpush.msra.mxu0 %v1260
    %v1262 = vand.u32 %v156, 4294901760
    %1263 = vmatpush.msra.mxu0 %v1262
    %v1264 = vand.u32 %v148, 4294901760
    %1265 = vmatpush.msra.mxu0 %v1264
    %v1266 = vand.u32 %v140, 4294901760
    %1267 = vmatpush.msra.mxu0 %v1266
    %v1268 = vand.u32 %v132, 4294901760
    %1269 = vmatpush.msra.mxu0 %v1268
    %v1270 = vand.u32 %v124, 4294901760
    %1271 = vmatpush.msra.mxu0 %v1270
    %v1272 = vand.u32 %v116, 4294901760
    %1273 = vmatpush.msra.mxu0 %v1272
    %v1274 = vand.u32 %v108, 4294901760
    %1275 = vmatpush.msra.mxu0 %v1274
    %v1276 = vand.u32 %v100, 4294901760
    %1277 = vmatpush.msra.mxu0 %v1276
    %v1278 = vand.u32 %v92, 4294901760
    %1279 = vmatpush.msra.mxu0 %v1278
    %v1280 = vand.u32 %v84, 4294901760
    %1281 = vmatpush.msra.mxu0 %v1280
    %v1282 = vand.u32 %v80, 4294901760
    %v1283 = vsub.f32 %v80, %v1282
    %v1284 = vand.u32 %v1283, 4294901760
    %v1285 = vsub.f32 %v1283, %v1284
    %v1286 = vand.u32 %v1285, 4294901760
    %1287 = vmatmul.f32.gmra.mxu0 %v1286
    %v1288 = vpop.f32.mrf.mxu0
    %v1289 = vadd.f32 %v214, %v1288
    %1290 = vdwg.mxu0
    %v1291 = vand.u32 %v204, 4294901760
    %v1292 = vsub.f32 %v204, %v1291
    %v1293 = vand.u32 %v1292, 4294901760
    %v1294 = vsub.f32 %v1292, %v1293
    %v1295 = vand.u32 %v1294, 4294901760
    %1296 = vmatpush.msra.mxu0 %v1295
    %v1297 = vand.u32 %v196, 4294901760
    %v1298 = vsub.f32 %v196, %v1297
    %v1299 = vand.u32 %v1298, 4294901760
    %v1300 = vsub.f32 %v1298, %v1299
    %v1301 = vand.u32 %v1300, 4294901760
    %1302 = vmatpush.msra.mxu0 %v1301
    %v1303 = vand.u32 %v188, 4294901760
    %v1304 = vsub.f32 %v188, %v1303
    %v1305 = vand.u32 %v1304, 4294901760
    %v1306 = vsub.f32 %v1304, %v1305
    %v1307 = vand.u32 %v1306, 4294901760
    %1308 = vmatpush.msra.mxu0 %v1307
    %v1309 = vand.u32 %v180, 4294901760
    %v1310 = vsub.f32 %v180, %v1309
    %v1311 = vand.u32 %v1310, 4294901760
    %v1312 = vsub.f32 %v1310, %v1311
    %v1313 = vand.u32 %v1312, 4294901760
    %1314 = vmatpush.msra.mxu0 %v1313
    %v1315 = vand.u32 %v172, 4294901760
    %v1316 = vsub.f32 %v172, %v1315
    %v1317 = vand.u32 %v1316, 4294901760
    %v1318 = vsub.f32 %v1316, %v1317
    %v1319 = vand.u32 %v1318, 4294901760
    %1320 = vmatpush.msra.mxu0 %v1319
    %v1321 = vand.u32 %v164, 4294901760
    %v1322 = vsub.f32 %v164, %v1321
    %v1323 = vand.u32 %v1322, 4294901760
    %v1324 = vsub.f32 %v1322, %v1323
    %v1325 = vand.u32 %v1324, 4294901760
    %1326 = vmatpush.msra.mxu0 %v1325
    %v1327 = vand.u32 %v156, 4294901760
    %v1328 = vsub.f32 %v156, %v1327
    %v1329 = vand.u32 %v1328, 4294901760
    %v1330 = vsub.f32 %v1328, %v1329
    %v1331 = vand.u32 %v1330, 4294901760
    %1332 = vmatpush.msra.mxu0 %v1331
    %v1333 = vand.u32 %v148, 4294901760
    %v1334 = vsub.f32 %v148, %v1333
    %v1335 = vand.u32 %v1334, 4294901760
    %v1336 = vsub.f32 %v1334, %v1335
    %v1337 = vand.u32 %v1336, 4294901760
    %1338 = vmatpush.msra.mxu0 %v1337
    %v1339 = vand.u32 %v140, 4294901760
    %v1340 = vsub.f32 %v140, %v1339
    %v1341 = vand.u32 %v1340, 4294901760
    %v1342 = vsub.f32 %v1340, %v1341
    %v1343 = vand.u32 %v1342, 4294901760
    %1344 = vmatpush.msra.mxu0 %v1343
    %v1345 = vand.u32 %v132, 4294901760
    %v1346 = vsub.f32 %v132, %v1345
    %v1347 = vand.u32 %v1346, 4294901760
    %v1348 = vsub.f32 %v1346, %v1347
    %v1349 = vand.u32 %v1348, 4294901760
    %1350 = vmatpush.msra.mxu0 %v1349
    %v1351 = vand.u32 %v124, 4294901760
    %v1352 = vsub.f32 %v124, %v1351
    %v1353 = vand.u32 %v1352, 4294901760
    %v1354 = vsub.f32 %v1352, %v1353
    %v1355 = vand.u32 %v1354, 4294901760
    %1356 = vmatpush.msra.mxu0 %v1355
    %v1357 = vand.u32 %v116, 4294901760
    %v1358 = vsub.f32 %v116, %v1357
    %v1359 = vand.u32 %v1358, 4294901760
    %v1360 = vsub.f32 %v1358, %v1359
    %v1361 = vand.u32 %v1360, 4294901760
    %1362 = vmatpush.msra.mxu0 %v1361
    %v1363 = vand.u32 %v108, 4294901760
    %v1364 = vsub.f32 %v108, %v1363
    %v1365 = vand.u32 %v1364, 4294901760
    %v1366 = vsub.f32 %v1364, %v1365
    %v1367 = vand.u32 %v1366, 4294901760
    %1368 = vmatpush.msra.mxu0 %v1367
    %v1369 = vand.u32 %v100, 4294901760
    %v1370 = vsub.f32 %v100, %v1369
    %v1371 = vand.u32 %v1370, 4294901760
    %v1372 = vsub.f32 %v1370, %v1371
    %v1373 = vand.u32 %v1372, 4294901760
    %1374 = vmatpush.msra.mxu0 %v1373
    %v1375 = vand.u32 %v92, 4294901760
    %v1376 = vsub.f32 %v92, %v1375
    %v1377 = vand.u32 %v1376, 4294901760
    %v1378 = vsub.f32 %v1376, %v1377
    %v1379 = vand.u32 %v1378, 4294901760
    %1380 = vmatpush.msra.mxu0 %v1379
    %v1381 = vand.u32 %v84, 4294901760
    %v1382 = vsub.f32 %v84, %v1381
    %v1383 = vand.u32 %v1382, 4294901760
    %v1384 = vsub.f32 %v1382, %v1383
    %v1385 = vand.u32 %v1384, 4294901760
    %1386 = vmatpush.msra.mxu0 %v1385
    %v1387 = vand.u32 %v80, 4294901760
    %1388 = vmatmul.f32.gmra.mxu0 %v1387
    %v1389 = vpop.f32.mrf.mxu0
    %v1390 = vadd.f32 %v1289, %v1389
    %1391 = vdwg.mxu0
    %v1392 = vand.u32 %v204, 4294901760
    %v1393 = vsub.f32 %v204, %v1392
    %1394 = vmatpush.msra.mxu0 %v1393
    %v1395 = vand.u32 %v196, 4294901760
    %v1396 = vsub.f32 %v196, %v1395
    %1397 = vmatpush.msra.mxu0 %v1396
    %v1398 = vand.u32 %v188, 4294901760
    %v1399 = vsub.f32 %v188, %v1398
    %1400 = vmatpush.msra.mxu0 %v1399
    %v1401 = vand.u32 %v180, 4294901760
    %v1402 = vsub.f32 %v180, %v1401
    %1403 = vmatpush.msra.mxu0 %v1402
    %v1404 = vand.u32 %v172, 4294901760
    %v1405 = vsub.f32 %v172, %v1404
    %1406 = vmatpush.msra.mxu0 %v1405
    %v1407 = vand.u32 %v164, 4294901760
    %v1408 = vsub.f32 %v164, %v1407
    %1409 = vmatpush.msra.mxu0 %v1408
    %v1410 = vand.u32 %v156, 4294901760
    %v1411 = vsub.f32 %v156, %v1410
    %1412 = vmatpush.msra.mxu0 %v1411
    %v1413 = vand.u32 %v148, 4294901760
    %v1414 = vsub.f32 %v148, %v1413
    %1415 = vmatpush.msra.mxu0 %v1414
    %v1416 = vand.u32 %v140, 4294901760
    %v1417 = vsub.f32 %v140, %v1416
    %1418 = vmatpush.msra.mxu0 %v1417
    %v1419 = vand.u32 %v132, 4294901760
    %v1420 = vsub.f32 %v132, %v1419
    %1421 = vmatpush.msra.mxu0 %v1420
    %v1422 = vand.u32 %v124, 4294901760
    %v1423 = vsub.f32 %v124, %v1422
    %1424 = vmatpush.msra.mxu0 %v1423
    %v1425 = vand.u32 %v116, 4294901760
    %v1426 = vsub.f32 %v116, %v1425
    %1427 = vmatpush.msra.mxu0 %v1426
    %v1428 = vand.u32 %v108, 4294901760
    %v1429 = vsub.f32 %v108, %v1428
    %1430 = vmatpush.msra.mxu0 %v1429
    %v1431 = vand.u32 %v100, 4294901760
    %v1432 = vsub.f32 %v100, %v1431
    %1433 = vmatpush.msra.mxu0 %v1432
    %v1434 = vand.u32 %v92, 4294901760
    %v1435 = vsub.f32 %v92, %v1434
    %1436 = vmatpush.msra.mxu0 %v1435
    %v1437 = vand.u32 %v84, 4294901760
    %v1438 = vsub.f32 %v84, %v1437
    %1439 = vmatpush.msra.mxu0 %v1438
    %v1440 = vand.u32 %v80, 4294901760
    %v1441 = vsub.f32 %v80, %v1440
    %1442 = vmatmul.f32.gmra.mxu0 %v1441
    %v1443 = vpop.f32.mrf.mxu0
    %v1444 = vadd.f32 %v1390, %v1443
    %1445 = vdwg.mxu0
    %v1446 = vand.u32 %v204, 4294901760
    %1447 = vmatpush.msra.mxu0 %v1446
    %v1448 = vand.u32 %v196, 4294901760
    %1449 = vmatpush.msra.mxu0 %v1448
    %v1450 = vand.u32 %v188, 4294901760
    %1451 = vmatpush.msra.mxu0 %v1450
    %v1452 = vand.u32 %v180, 4294901760
    %1453 = vmatpush.msra.mxu0 %v1452
    %v1454 = vand.u32 %v172, 4294901760
    %1455 = vmatpush.msra.mxu0 %v1454
    %v1456 = vand.u32 %v164, 4294901760
    %1457 = vmatpush.msra.mxu0 %v1456
    %v1458 = vand.u32 %v156, 4294901760
    %1459 = vmatpush.msra.mxu0 %v1458
    %v1460 = vand.u32 %v148, 4294901760
    %1461 = vmatpush.msra.mxu0 %v1460
    %v1462 = vand.u32 %v140, 4294901760
    %1463 = vmatpush.msra.mxu0 %v1462
    %v1464 = vand.u32 %v132, 4294901760
    %1465 = vmatpush.msra.mxu0 %v1464
    %v1466 = vand.u32 %v124, 4294901760
    %1467 = vmatpush.msra.mxu0 %v1466
    %v1468 = vand.u32 %v116, 4294901760
    %1469 = vmatpush.msra.mxu0 %v1468
    %v1470 = vand.u32 %v108, 4294901760
    %1471 = vmatpush.msra.mxu0 %v1470
    %v1472 = vand.u32 %v100, 4294901760
    %1473 = vmatpush.msra.mxu0 %v1472
    %v1474 = vand.u32 %v92, 4294901760
    %1475 = vmatpush.msra.mxu0 %v1474
    %v1476 = vand.u32 %v84, 4294901760
    %1477 = vmatpush.msra.mxu0 %v1476
    %v1478 = vand.u32 %v80, 4294901760
    %v1479 = vsub.f32 %v80, %v1478
    %v1480 = vand.u32 %v1479, 4294901760
    %1481 = vmatmul.f32.gmra.mxu0 %v1480
    %v1482 = vpop.f32.mrf.mxu0
    %v1483 = vadd.f32 %v1444, %v1482
    %1484 = vdwg.mxu0
    %v1485 = vand.u32 %v204, 4294901760
    %v1486 = vsub.f32 %v204, %v1485
    %v1487 = vand.u32 %v1486, 4294901760
    %1488 = vmatpush.msra.mxu0 %v1487
    %v1489 = vand.u32 %v196, 4294901760
    %v1490 = vsub.f32 %v196, %v1489
    %v1491 = vand.u32 %v1490, 4294901760
    %1492 = vmatpush.msra.mxu0 %v1491
    %v1493 = vand.u32 %v188, 4294901760
    %v1494 = vsub.f32 %v188, %v1493
    %v1495 = vand.u32 %v1494, 4294901760
    %1496 = vmatpush.msra.mxu0 %v1495
    %v1497 = vand.u32 %v180, 4294901760
    %v1498 = vsub.f32 %v180, %v1497
    %v1499 = vand.u32 %v1498, 4294901760
    %1500 = vmatpush.msra.mxu0 %v1499
    %v1501 = vand.u32 %v172, 4294901760
    %v1502 = vsub.f32 %v172, %v1501
    %v1503 = vand.u32 %v1502, 4294901760
    %1504 = vmatpush.msra.mxu0 %v1503
    %v1505 = vand.u32 %v164, 4294901760
    %v1506 = vsub.f32 %v164, %v1505
    %v1507 = vand.u32 %v1506, 4294901760
    %1508 = vmatpush.msra.mxu0 %v1507
    %v1509 = vand.u32 %v156, 4294901760
    %v1510 = vsub.f32 %v156, %v1509
    %v1511 = vand.u32 %v1510, 4294901760
    %1512 = vmatpush.msra.mxu0 %v1511
    %v1513 = vand.u32 %v148, 4294901760
    %v1514 = vsub.f32 %v148, %v1513
    %v1515 = vand.u32 %v1514, 4294901760
    %1516 = vmatpush.msra.mxu0 %v1515
    %v1517 = vand.u32 %v140, 4294901760
    %v1518 = vsub.f32 %v140, %v1517
    %v1519 = vand.u32 %v1518, 4294901760
    %1520 = vmatpush.msra.mxu0 %v1519
    %v1521 = vand.u32 %v132, 4294901760
    %v1522 = vsub.f32 %v132, %v1521
    %v1523 = vand.u32 %v1522, 4294901760
    %1524 = vmatpush.msra.mxu0 %v1523
    %v1525 = vand.u32 %v124, 4294901760
    %v1526 = vsub.f32 %v124, %v1525
    %v1527 = vand.u32 %v1526, 4294901760
    %1528 = vmatpush.msra.mxu0 %v1527
    %v1529 = vand.u32 %v116, 4294901760
    %v1530 = vsub.f32 %v116, %v1529
    %v1531 = vand.u32 %v1530, 4294901760
    %1532 = vmatpush.msra.mxu0 %v1531
    %v1533 = vand.u32 %v108, 4294901760
    %v1534 = vsub.f32 %v108, %v1533
    %v1535 = vand.u32 %v1534, 4294901760
    %1536 = vmatpush.msra.mxu0 %v1535
    %v1537 = vand.u32 %v100, 4294901760
    %v1538 = vsub.f32 %v100, %v1537
    %v1539 = vand.u32 %v1538, 4294901760
    %1540 = vmatpush.msra.mxu0 %v1539
    %v1541 = vand.u32 %v92, 4294901760
    %v1542 = vsub.f32 %v92, %v1541
    %v1543 = vand.u32 %v1542, 4294901760
    %1544 = vmatpush.msra.mxu0 %v1543
    %v1545 = vand.u32 %v84, 4294901760
    %v1546 = vsub.f32 %v84, %v1545
    %v1547 = vand.u32 %v1546, 4294901760
    %1548 = vmatpush.msra.mxu0 %v1547
    %v1549 = vand.u32 %v80, 4294901760
    %1550 = vmatmul.f32.gmra.mxu0 %v1549
    %v1551 = vpop.f32.mrf.mxu0
    %v1552 = vadd.f32 %v1483, %v1551
    %1553 = vdwg.mxu0
    %v1554 = vand.u32 %v204, 4294901760
    %1555 = vmatpush.msra.mxu0 %v1554
    %v1556 = vand.u32 %v196, 4294901760
    %1557 = vmatpush.msra.mxu0 %v1556
    %v1558 = vand.u32 %v188, 4294901760
    %1559 = vmatpush.msra.mxu0 %v1558
    %v1560 = vand.u32 %v180, 4294901760
    %1561 = vmatpush.msra.mxu0 %v1560
    %v1562 = vand.u32 %v172, 4294901760
    %1563 = vmatpush.msra.mxu0 %v1562
    %v1564 = vand.u32 %v164, 4294901760
    %1565 = vmatpush.msra.mxu0 %v1564
    %v1566 = vand.u32 %v156, 4294901760
    %1567 = vmatpush.msra.mxu0 %v1566
    %v1568 = vand.u32 %v148, 4294901760
    %1569 = vmatpush.msra.mxu0 %v1568
    %v1570 = vand.u32 %v140, 4294901760
    %1571 = vmatpush.msra.mxu0 %v1570
    %v1572 = vand.u32 %v132, 4294901760
    %1573 = vmatpush.msra.mxu0 %v1572
    %v1574 = vand.u32 %v124, 4294901760
    %1575 = vmatpush.msra.mxu0 %v1574
    %v1576 = vand.u32 %v116, 4294901760
    %1577 = vmatpush.msra.mxu0 %v1576
    %v1578 = vand.u32 %v108, 4294901760
    %1579 = vmatpush.msra.mxu0 %v1578
    %v1580 = vand.u32 %v100, 4294901760
    %1581 = vmatpush.msra.mxu0 %v1580
    %v1582 = vand.u32 %v92, 4294901760
    %1583 = vmatpush.msra.mxu0 %v1582
    %v1584 = vand.u32 %v84, 4294901760
    %1585 = vmatpush.msra.mxu0 %v1584
    %v1586 = vand.u32 %v80, 4294901760
    %1587 = vmatmul.f32.gmra.mxu0 %v1586
    %v1588 = vpop.f32.mrf.mxu0
    %v1589 = vadd.f32 %v1552, %v1588
    %1590 = vdwg.mxu0
    %v1591 = vand.u32 %v205, 4294901760
    %1592 = vmatpush.msra.mxu0 %v1591
    %v1593 = vand.u32 %v197, 4294901760
    %1594 = vmatpush.msra.mxu0 %v1593
    %v1595 = vand.u32 %v189, 4294901760
    %1596 = vmatpush.msra.mxu0 %v1595
    %v1597 = vand.u32 %v181, 4294901760
    %1598 = vmatpush.msra.mxu0 %v1597
    %v1599 = vand.u32 %v173, 4294901760
    %1600 = vmatpush.msra.mxu0 %v1599
    %v1601 = vand.u32 %v165, 4294901760
    %1602 = vmatpush.msra.mxu0 %v1601
    %v1603 = vand.u32 %v157, 4294901760
    %1604 = vmatpush.msra.mxu0 %v1603
    %v1605 = vand.u32 %v149, 4294901760
    %1606 = vmatpush.msra.mxu0 %v1605
    %v1607 = vand.u32 %v141, 4294901760
    %1608 = vmatpush.msra.mxu0 %v1607
    %v1609 = vand.u32 %v133, 4294901760
    %1610 = vmatpush.msra.mxu0 %v1609
    %v1611 = vand.u32 %v125, 4294901760
    %1612 = vmatpush.msra.mxu0 %v1611
    %v1613 = vand.u32 %v117, 4294901760
    %1614 = vmatpush.msra.mxu0 %v1613
    %v1615 = vand.u32 %v109, 4294901760
    %1616 = vmatpush.msra.mxu0 %v1615
    %v1617 = vand.u32 %v101, 4294901760
    %1618 = vmatpush.msra.mxu0 %v1617
    %v1619 = vand.u32 %v93, 4294901760
    %1620 = vmatpush.msra.mxu0 %v1619
    %v1621 = vand.u32 %v85, 4294901760
    %1622 = vmatpush.msra.mxu0 %v1621
    %v1623 = vand.u32 %v80, 4294901760
    %v1624 = vsub.f32 %v80, %v1623
    %v1625 = vand.u32 %v1624, 4294901760
    %v1626 = vsub.f32 %v1624, %v1625
    %v1627 = vand.u32 %v1626, 4294901760
    %1628 = vmatmul.f32.gmra.mxu0 %v1627
    %v1629 = vpop.f32.mrf.mxu0
    %v1630 = vadd.f32 %v215, %v1629
    %1631 = vdwg.mxu0
    %v1632 = vand.u32 %v205, 4294901760
    %v1633 = vsub.f32 %v205, %v1632
    %v1634 = vand.u32 %v1633, 4294901760
    %v1635 = vsub.f32 %v1633, %v1634
    %v1636 = vand.u32 %v1635, 4294901760
    %1637 = vmatpush.msra.mxu0 %v1636
    %v1638 = vand.u32 %v197, 4294901760
    %v1639 = vsub.f32 %v197, %v1638
    %v1640 = vand.u32 %v1639, 4294901760
    %v1641 = vsub.f32 %v1639, %v1640
    %v1642 = vand.u32 %v1641, 4294901760
    %1643 = vmatpush.msra.mxu0 %v1642
    %v1644 = vand.u32 %v189, 4294901760
    %v1645 = vsub.f32 %v189, %v1644
    %v1646 = vand.u32 %v1645, 4294901760
    %v1647 = vsub.f32 %v1645, %v1646
    %v1648 = vand.u32 %v1647, 4294901760
    %1649 = vmatpush.msra.mxu0 %v1648
    %v1650 = vand.u32 %v181, 4294901760
    %v1651 = vsub.f32 %v181, %v1650
    %v1652 = vand.u32 %v1651, 4294901760
    %v1653 = vsub.f32 %v1651, %v1652
    %v1654 = vand.u32 %v1653, 4294901760
    %1655 = vmatpush.msra.mxu0 %v1654
    %v1656 = vand.u32 %v173, 4294901760
    %v1657 = vsub.f32 %v173, %v1656
    %v1658 = vand.u32 %v1657, 4294901760
    %v1659 = vsub.f32 %v1657, %v1658
    %v1660 = vand.u32 %v1659, 4294901760
    %1661 = vmatpush.msra.mxu0 %v1660
    %v1662 = vand.u32 %v165, 4294901760
    %v1663 = vsub.f32 %v165, %v1662
    %v1664 = vand.u32 %v1663, 4294901760
    %v1665 = vsub.f32 %v1663, %v1664
    %v1666 = vand.u32 %v1665, 4294901760
    %1667 = vmatpush.msra.mxu0 %v1666
    %v1668 = vand.u32 %v157, 4294901760
    %v1669 = vsub.f32 %v157, %v1668
    %v1670 = vand.u32 %v1669, 4294901760
    %v1671 = vsub.f32 %v1669, %v1670
    %v1672 = vand.u32 %v1671, 4294901760
    %1673 = vmatpush.msra.mxu0 %v1672
    %v1674 = vand.u32 %v149, 4294901760
    %v1675 = vsub.f32 %v149, %v1674
    %v1676 = vand.u32 %v1675, 4294901760
    %v1677 = vsub.f32 %v1675, %v1676
    %v1678 = vand.u32 %v1677, 4294901760
    %1679 = vmatpush.msra.mxu0 %v1678
    %v1680 = vand.u32 %v141, 4294901760
    %v1681 = vsub.f32 %v141, %v1680
    %v1682 = vand.u32 %v1681, 4294901760
    %v1683 = vsub.f32 %v1681, %v1682
    %v1684 = vand.u32 %v1683, 4294901760
    %1685 = vmatpush.msra.mxu0 %v1684
    %v1686 = vand.u32 %v133, 4294901760
    %v1687 = vsub.f32 %v133, %v1686
    %v1688 = vand.u32 %v1687, 4294901760
    %v1689 = vsub.f32 %v1687, %v1688
    %v1690 = vand.u32 %v1689, 4294901760
    %1691 = vmatpush.msra.mxu0 %v1690
    %v1692 = vand.u32 %v125, 4294901760
    %v1693 = vsub.f32 %v125, %v1692
    %v1694 = vand.u32 %v1693, 4294901760
    %v1695 = vsub.f32 %v1693, %v1694
    %v1696 = vand.u32 %v1695, 4294901760
    %1697 = vmatpush.msra.mxu0 %v1696
    %v1698 = vand.u32 %v117, 4294901760
    %v1699 = vsub.f32 %v117, %v1698
    %v1700 = vand.u32 %v1699, 4294901760
    %v1701 = vsub.f32 %v1699, %v1700
    %v1702 = vand.u32 %v1701, 4294901760
    %1703 = vmatpush.msra.mxu0 %v1702
    %v1704 = vand.u32 %v109, 4294901760
    %v1705 = vsub.f32 %v109, %v1704
    %v1706 = vand.u32 %v1705, 4294901760
    %v1707 = vsub.f32 %v1705, %v1706
    %v1708 = vand.u32 %v1707, 4294901760
    %1709 = vmatpush.msra.mxu0 %v1708
    %v1710 = vand.u32 %v101, 4294901760
    %v1711 = vsub.f32 %v101, %v1710
    %v1712 = vand.u32 %v1711, 4294901760
    %v1713 = vsub.f32 %v1711, %v1712
    %v1714 = vand.u32 %v1713, 4294901760
    %1715 = vmatpush.msra.mxu0 %v1714
    %v1716 = vand.u32 %v93, 4294901760
    %v1717 = vsub.f32 %v93, %v1716
    %v1718 = vand.u32 %v1717, 4294901760
    %v1719 = vsub.f32 %v1717, %v1718
    %v1720 = vand.u32 %v1719, 4294901760
    %1721 = vmatpush.msra.mxu0 %v1720
    %v1722 = vand.u32 %v85, 4294901760
    %v1723 = vsub.f32 %v85, %v1722
    %v1724 = vand.u32 %v1723, 4294901760
    %v1725 = vsub.f32 %v1723, %v1724
    %v1726 = vand.u32 %v1725, 4294901760
    %1727 = vmatpush.msra.mxu0 %v1726
    %v1728 = vand.u32 %v80, 4294901760
    %1729 = vmatmul.f32.gmra.mxu0 %v1728
    %v1730 = vpop.f32.mrf.mxu0
    %v1731 = vadd.f32 %v1630, %v1730
    %1732 = vdwg.mxu0
    %v1733 = vand.u32 %v205, 4294901760
    %v1734 = vsub.f32 %v205, %v1733
    %1735 = vmatpush.msra.mxu0 %v1734
    %v1736 = vand.u32 %v197, 4294901760
    %v1737 = vsub.f32 %v197, %v1736
    %1738 = vmatpush.msra.mxu0 %v1737
    %v1739 = vand.u32 %v189, 4294901760
    %v1740 = vsub.f32 %v189, %v1739
    %1741 = vmatpush.msra.mxu0 %v1740
    %v1742 = vand.u32 %v181, 4294901760
    %v1743 = vsub.f32 %v181, %v1742
    %1744 = vmatpush.msra.mxu0 %v1743
    %v1745 = vand.u32 %v173, 4294901760
    %v1746 = vsub.f32 %v173, %v1745
    %1747 = vmatpush.msra.mxu0 %v1746
    %v1748 = vand.u32 %v165, 4294901760
    %v1749 = vsub.f32 %v165, %v1748
    %1750 = vmatpush.msra.mxu0 %v1749
    %v1751 = vand.u32 %v157, 4294901760
    %v1752 = vsub.f32 %v157, %v1751
    %1753 = vmatpush.msra.mxu0 %v1752
    %v1754 = vand.u32 %v149, 4294901760
    %v1755 = vsub.f32 %v149, %v1754
    %1756 = vmatpush.msra.mxu0 %v1755
    %v1757 = vand.u32 %v141, 4294901760
    %v1758 = vsub.f32 %v141, %v1757
    %1759 = vmatpush.msra.mxu0 %v1758
    %v1760 = vand.u32 %v133, 4294901760
    %v1761 = vsub.f32 %v133, %v1760
    %1762 = vmatpush.msra.mxu0 %v1761
    %v1763 = vand.u32 %v125, 4294901760
    %v1764 = vsub.f32 %v125, %v1763
    %1765 = vmatpush.msra.mxu0 %v1764
    %v1766 = vand.u32 %v117, 4294901760
    %v1767 = vsub.f32 %v117, %v1766
    %1768 = vmatpush.msra.mxu0 %v1767
    %v1769 = vand.u32 %v109, 4294901760
    %v1770 = vsub.f32 %v109, %v1769
    %1771 = vmatpush.msra.mxu0 %v1770
    %v1772 = vand.u32 %v101, 4294901760
    %v1773 = vsub.f32 %v101, %v1772
    %1774 = vmatpush.msra.mxu0 %v1773
    %v1775 = vand.u32 %v93, 4294901760
    %v1776 = vsub.f32 %v93, %v1775
    %1777 = vmatpush.msra.mxu0 %v1776
    %v1778 = vand.u32 %v85, 4294901760
    %v1779 = vsub.f32 %v85, %v1778
    %1780 = vmatpush.msra.mxu0 %v1779
    %v1781 = vand.u32 %v80, 4294901760
    %v1782 = vsub.f32 %v80, %v1781
    %1783 = vmatmul.f32.gmra.mxu0 %v1782
    %v1784 = vpop.f32.mrf.mxu0
    %v1785 = vadd.f32 %v1731, %v1784
    %1786 = vdwg.mxu0
    %v1787 = vand.u32 %v205, 4294901760
    %1788 = vmatpush.msra.mxu0 %v1787
    %v1789 = vand.u32 %v197, 4294901760
    %1790 = vmatpush.msra.mxu0 %v1789
    %v1791 = vand.u32 %v189, 4294901760
    %1792 = vmatpush.msra.mxu0 %v1791
    %v1793 = vand.u32 %v181, 4294901760
    %1794 = vmatpush.msra.mxu0 %v1793
    %v1795 = vand.u32 %v173, 4294901760
    %1796 = vmatpush.msra.mxu0 %v1795
    %v1797 = vand.u32 %v165, 4294901760
    %1798 = vmatpush.msra.mxu0 %v1797
    %v1799 = vand.u32 %v157, 4294901760
    %1800 = vmatpush.msra.mxu0 %v1799
    %v1801 = vand.u32 %v149, 4294901760
    %1802 = vmatpush.msra.mxu0 %v1801
    %v1803 = vand.u32 %v141, 4294901760
    %1804 = vmatpush.msra.mxu0 %v1803
    %v1805 = vand.u32 %v133, 4294901760
    %1806 = vmatpush.msra.mxu0 %v1805
    %v1807 = vand.u32 %v125, 4294901760
    %1808 = vmatpush.msra.mxu0 %v1807
    %v1809 = vand.u32 %v117, 4294901760
    %1810 = vmatpush.msra.mxu0 %v1809
    %v1811 = vand.u32 %v109, 4294901760
    %1812 = vmatpush.msra.mxu0 %v1811
    %v1813 = vand.u32 %v101, 4294901760
    %1814 = vmatpush.msra.mxu0 %v1813
    %v1815 = vand.u32 %v93, 4294901760
    %1816 = vmatpush.msra.mxu0 %v1815
    %v1817 = vand.u32 %v85, 4294901760
    %1818 = vmatpush.msra.mxu0 %v1817
    %v1819 = vand.u32 %v80, 4294901760
    %v1820 = vsub.f32 %v80, %v1819
    %v1821 = vand.u32 %v1820, 4294901760
    %1822 = vmatmul.f32.gmra.mxu0 %v1821
    %v1823 = vpop.f32.mrf.mxu0
    %v1824 = vadd.f32 %v1785, %v1823
    %1825 = vdwg.mxu0
    %v1826 = vand.u32 %v205, 4294901760
    %v1827 = vsub.f32 %v205, %v1826
    %v1828 = vand.u32 %v1827, 4294901760
    %1829 = vmatpush.msra.mxu0 %v1828
    %v1830 = vand.u32 %v197, 4294901760
    %v1831 = vsub.f32 %v197, %v1830
    %v1832 = vand.u32 %v1831, 4294901760
    %1833 = vmatpush.msra.mxu0 %v1832
    %v1834 = vand.u32 %v189, 4294901760
    %v1835 = vsub.f32 %v189, %v1834
    %v1836 = vand.u32 %v1835, 4294901760
    %1837 = vmatpush.msra.mxu0 %v1836
    %v1838 = vand.u32 %v181, 4294901760
    %v1839 = vsub.f32 %v181, %v1838
    %v1840 = vand.u32 %v1839, 4294901760
    %1841 = vmatpush.msra.mxu0 %v1840
    %v1842 = vand.u32 %v173, 4294901760
    %v1843 = vsub.f32 %v173, %v1842
    %v1844 = vand.u32 %v1843, 4294901760
    %1845 = vmatpush.msra.mxu0 %v1844
    %v1846 = vand.u32 %v165, 4294901760
    %v1847 = vsub.f32 %v165, %v1846
    %v1848 = vand.u32 %v1847, 4294901760
    %1849 = vmatpush.msra.mxu0 %v1848
    %v1850 = vand.u32 %v157, 4294901760
    %v1851 = vsub.f32 %v157, %v1850
    %v1852 = vand.u32 %v1851, 4294901760
    %1853 = vmatpush.msra.mxu0 %v1852
    %v1854 = vand.u32 %v149, 4294901760
    %v1855 = vsub.f32 %v149, %v1854
    %v1856 = vand.u32 %v1855, 4294901760
    %1857 = vmatpush.msra.mxu0 %v1856
    %v1858 = vand.u32 %v141, 4294901760
    %v1859 = vsub.f32 %v141, %v1858
    %v1860 = vand.u32 %v1859, 4294901760
    %1861 = vmatpush.msra.mxu0 %v1860
    %v1862 = vand.u32 %v133, 4294901760
    %v1863 = vsub.f32 %v133, %v1862
    %v1864 = vand.u32 %v1863, 4294901760
    %1865 = vmatpush.msra.mxu0 %v1864
    %v1866 = vand.u32 %v125, 4294901760
    %v1867 = vsub.f32 %v125, %v1866
    %v1868 = vand.u32 %v1867, 4294901760
    %1869 = vmatpush.msra.mxu0 %v1868
    %v1870 = vand.u32 %v117, 4294901760
    %v1871 = vsub.f32 %v117, %v1870
    %v1872 = vand.u32 %v1871, 4294901760
    %1873 = vmatpush.msra.mxu0 %v1872
    %v1874 = vand.u32 %v109, 4294901760
    %v1875 = vsub.f32 %v109, %v1874
    %v1876 = vand.u32 %v1875, 4294901760
    %1877 = vmatpush.msra.mxu0 %v1876
    %v1878 = vand.u32 %v101, 4294901760
    %v1879 = vsub.f32 %v101, %v1878
    %v1880 = vand.u32 %v1879, 4294901760
    %1881 = vmatpush.msra.mxu0 %v1880
    %v1882 = vand.u32 %v93, 4294901760
    %v1883 = vsub.f32 %v93, %v1882
    %v1884 = vand.u32 %v1883, 4294901760
    %1885 = vmatpush.msra.mxu0 %v1884
    %v1886 = vand.u32 %v85, 4294901760
    %v1887 = vsub.f32 %v85, %v1886
    %v1888 = vand.u32 %v1887, 4294901760
    %1889 = vmatpush.msra.mxu0 %v1888
    %v1890 = vand.u32 %v80, 4294901760
    %1891 = vmatmul.f32.gmra.mxu0 %v1890
    %v1892 = vpop.f32.mrf.mxu0
    %v1893 = vadd.f32 %v1824, %v1892
    %1894 = vdwg.mxu0
    %v1895 = vand.u32 %v205, 4294901760
    %1896 = vmatpush.msra.mxu0 %v1895
    %v1897 = vand.u32 %v197, 4294901760
    %1898 = vmatpush.msra.mxu0 %v1897
    %v1899 = vand.u32 %v189, 4294901760
    %1900 = vmatpush.msra.mxu0 %v1899
    %v1901 = vand.u32 %v181, 4294901760
    %1902 = vmatpush.msra.mxu0 %v1901
    %v1903 = vand.u32 %v173, 4294901760
    %1904 = vmatpush.msra.mxu0 %v1903
    %v1905 = vand.u32 %v165, 4294901760
    %1906 = vmatpush.msra.mxu0 %v1905
    %v1907 = vand.u32 %v157, 4294901760
    %1908 = vmatpush.msra.mxu0 %v1907
    %v1909 = vand.u32 %v149, 4294901760
    %1910 = vmatpush.msra.mxu0 %v1909
    %v1911 = vand.u32 %v141, 4294901760
    %1912 = vmatpush.msra.mxu0 %v1911
    %v1913 = vand.u32 %v133, 4294901760
    %1914 = vmatpush.msra.mxu0 %v1913
    %v1915 = vand.u32 %v125, 4294901760
    %1916 = vmatpush.msra.mxu0 %v1915
    %v1917 = vand.u32 %v117, 4294901760
    %1918 = vmatpush.msra.mxu0 %v1917
    %v1919 = vand.u32 %v109, 4294901760
    %1920 = vmatpush.msra.mxu0 %v1919
    %v1921 = vand.u32 %v101, 4294901760
    %1922 = vmatpush.msra.mxu0 %v1921
    %v1923 = vand.u32 %v93, 4294901760
    %1924 = vmatpush.msra.mxu0 %v1923
    %v1925 = vand.u32 %v85, 4294901760
    %1926 = vmatpush.msra.mxu0 %v1925
    %v1927 = vand.u32 %v80, 4294901760
    %1928 = vmatmul.f32.gmra.mxu0 %v1927
    %v1929 = vpop.f32.mrf.mxu0
    %v1930 = vadd.f32 %v1893, %v1929
    %1931 = vdwg.mxu0
    %v1932 = vand.u32 %v206, 4294901760
    %1933 = vmatpush.msra.mxu0 %v1932
    %v1934 = vand.u32 %v198, 4294901760
    %1935 = vmatpush.msra.mxu0 %v1934
    %v1936 = vand.u32 %v190, 4294901760
    %1937 = vmatpush.msra.mxu0 %v1936
    %v1938 = vand.u32 %v182, 4294901760
    %1939 = vmatpush.msra.mxu0 %v1938
    %v1940 = vand.u32 %v174, 4294901760
    %1941 = vmatpush.msra.mxu0 %v1940
    %v1942 = vand.u32 %v166, 4294901760
    %1943 = vmatpush.msra.mxu0 %v1942
    %v1944 = vand.u32 %v158, 4294901760
    %1945 = vmatpush.msra.mxu0 %v1944
    %v1946 = vand.u32 %v150, 4294901760
    %1947 = vmatpush.msra.mxu0 %v1946
    %v1948 = vand.u32 %v142, 4294901760
    %1949 = vmatpush.msra.mxu0 %v1948
    %v1950 = vand.u32 %v134, 4294901760
    %1951 = vmatpush.msra.mxu0 %v1950
    %v1952 = vand.u32 %v126, 4294901760
    %1953 = vmatpush.msra.mxu0 %v1952
    %v1954 = vand.u32 %v118, 4294901760
    %1955 = vmatpush.msra.mxu0 %v1954
    %v1956 = vand.u32 %v110, 4294901760
    %1957 = vmatpush.msra.mxu0 %v1956
    %v1958 = vand.u32 %v102, 4294901760
    %1959 = vmatpush.msra.mxu0 %v1958
    %v1960 = vand.u32 %v94, 4294901760
    %1961 = vmatpush.msra.mxu0 %v1960
    %v1962 = vand.u32 %v86, 4294901760
    %1963 = vmatpush.msra.mxu0 %v1962
    %v1964 = vand.u32 %v80, 4294901760
    %v1965 = vsub.f32 %v80, %v1964
    %v1966 = vand.u32 %v1965, 4294901760
    %v1967 = vsub.f32 %v1965, %v1966
    %v1968 = vand.u32 %v1967, 4294901760
    %1969 = vmatmul.f32.gmra.mxu0 %v1968
    %v1970 = vpop.f32.mrf.mxu0
    %v1971 = vadd.f32 %v216, %v1970
    %1972 = vdwg.mxu0
    %v1973 = vand.u32 %v206, 4294901760
    %v1974 = vsub.f32 %v206, %v1973
    %v1975 = vand.u32 %v1974, 4294901760
    %v1976 = vsub.f32 %v1974, %v1975
    %v1977 = vand.u32 %v1976, 4294901760
    %1978 = vmatpush.msra.mxu0 %v1977
    %v1979 = vand.u32 %v198, 4294901760
    %v1980 = vsub.f32 %v198, %v1979
    %v1981 = vand.u32 %v1980, 4294901760
    %v1982 = vsub.f32 %v1980, %v1981
    %v1983 = vand.u32 %v1982, 4294901760
    %1984 = vmatpush.msra.mxu0 %v1983
    %v1985 = vand.u32 %v190, 4294901760
    %v1986 = vsub.f32 %v190, %v1985
    %v1987 = vand.u32 %v1986, 4294901760
    %v1988 = vsub.f32 %v1986, %v1987
    %v1989 = vand.u32 %v1988, 4294901760
    %1990 = vmatpush.msra.mxu0 %v1989
    %v1991 = vand.u32 %v182, 4294901760
    %v1992 = vsub.f32 %v182, %v1991
    %v1993 = vand.u32 %v1992, 4294901760
    %v1994 = vsub.f32 %v1992, %v1993
    %v1995 = vand.u32 %v1994, 4294901760
    %1996 = vmatpush.msra.mxu0 %v1995
    %v1997 = vand.u32 %v174, 4294901760
    %v1998 = vsub.f32 %v174, %v1997
    %v1999 = vand.u32 %v1998, 4294901760
    %v2000 = vsub.f32 %v1998, %v1999
    %v2001 = vand.u32 %v2000, 4294901760
    %2002 = vmatpush.msra.mxu0 %v2001
    %v2003 = vand.u32 %v166, 4294901760
    %v2004 = vsub.f32 %v166, %v2003
    %v2005 = vand.u32 %v2004, 4294901760
    %v2006 = vsub.f32 %v2004, %v2005
    %v2007 = vand.u32 %v2006, 4294901760
    %2008 = vmatpush.msra.mxu0 %v2007
    %v2009 = vand.u32 %v158, 4294901760
    %v2010 = vsub.f32 %v158, %v2009
    %v2011 = vand.u32 %v2010, 4294901760
    %v2012 = vsub.f32 %v2010, %v2011
    %v2013 = vand.u32 %v2012, 4294901760
    %2014 = vmatpush.msra.mxu0 %v2013
    %v2015 = vand.u32 %v150, 4294901760
    %v2016 = vsub.f32 %v150, %v2015
    %v2017 = vand.u32 %v2016, 4294901760
    %v2018 = vsub.f32 %v2016, %v2017
    %v2019 = vand.u32 %v2018, 4294901760
    %2020 = vmatpush.msra.mxu0 %v2019
    %v2021 = vand.u32 %v142, 4294901760
    %v2022 = vsub.f32 %v142, %v2021
    %v2023 = vand.u32 %v2022, 4294901760
    %v2024 = vsub.f32 %v2022, %v2023
    %v2025 = vand.u32 %v2024, 4294901760
    %2026 = vmatpush.msra.mxu0 %v2025
    %v2027 = vand.u32 %v134, 4294901760
    %v2028 = vsub.f32 %v134, %v2027
    %v2029 = vand.u32 %v2028, 4294901760
    %v2030 = vsub.f32 %v2028, %v2029
    %v2031 = vand.u32 %v2030, 4294901760
    %2032 = vmatpush.msra.mxu0 %v2031
    %v2033 = vand.u32 %v126, 4294901760
    %v2034 = vsub.f32 %v126, %v2033
    %v2035 = vand.u32 %v2034, 4294901760
    %v2036 = vsub.f32 %v2034, %v2035
    %v2037 = vand.u32 %v2036, 4294901760
    %2038 = vmatpush.msra.mxu0 %v2037
    %v2039 = vand.u32 %v118, 4294901760
    %v2040 = vsub.f32 %v118, %v2039
    %v2041 = vand.u32 %v2040, 4294901760
    %v2042 = vsub.f32 %v2040, %v2041
    %v2043 = vand.u32 %v2042, 4294901760
    %2044 = vmatpush.msra.mxu0 %v2043
    %v2045 = vand.u32 %v110, 4294901760
    %v2046 = vsub.f32 %v110, %v2045
    %v2047 = vand.u32 %v2046, 4294901760
    %v2048 = vsub.f32 %v2046, %v2047
    %v2049 = vand.u32 %v2048, 4294901760
    %2050 = vmatpush.msra.mxu0 %v2049
    %v2051 = vand.u32 %v102, 4294901760
    %v2052 = vsub.f32 %v102, %v2051
    %v2053 = vand.u32 %v2052, 4294901760
    %v2054 = vsub.f32 %v2052, %v2053
    %v2055 = vand.u32 %v2054, 4294901760
    %2056 = vmatpush.msra.mxu0 %v2055
    %v2057 = vand.u32 %v94, 4294901760
    %v2058 = vsub.f32 %v94, %v2057
    %v2059 = vand.u32 %v2058, 4294901760
    %v2060 = vsub.f32 %v2058, %v2059
    %v2061 = vand.u32 %v2060, 4294901760
    %2062 = vmatpush.msra.mxu0 %v2061
    %v2063 = vand.u32 %v86, 4294901760
    %v2064 = vsub.f32 %v86, %v2063
    %v2065 = vand.u32 %v2064, 4294901760
    %v2066 = vsub.f32 %v2064, %v2065
    %v2067 = vand.u32 %v2066, 4294901760
    %2068 = vmatpush.msra.mxu0 %v2067
    %v2069 = vand.u32 %v80, 4294901760
    %2070 = vmatmul.f32.gmra.mxu0 %v2069
    %v2071 = vpop.f32.mrf.mxu0
    %v2072 = vadd.f32 %v1971, %v2071
    %2073 = vdwg.mxu0
    %v2074 = vand.u32 %v206, 4294901760
    %v2075 = vsub.f32 %v206, %v2074
    %2076 = vmatpush.msra.mxu0 %v2075
    %v2077 = vand.u32 %v198, 4294901760
    %v2078 = vsub.f32 %v198, %v2077
    %2079 = vmatpush.msra.mxu0 %v2078
    %v2080 = vand.u32 %v190, 4294901760
    %v2081 = vsub.f32 %v190, %v2080
    %2082 = vmatpush.msra.mxu0 %v2081
    %v2083 = vand.u32 %v182, 4294901760
    %v2084 = vsub.f32 %v182, %v2083
    %2085 = vmatpush.msra.mxu0 %v2084
    %v2086 = vand.u32 %v174, 4294901760
    %v2087 = vsub.f32 %v174, %v2086
    %2088 = vmatpush.msra.mxu0 %v2087
    %v2089 = vand.u32 %v166, 4294901760
    %v2090 = vsub.f32 %v166, %v2089
    %2091 = vmatpush.msra.mxu0 %v2090
    %v2092 = vand.u32 %v158, 4294901760
    %v2093 = vsub.f32 %v158, %v2092
    %2094 = vmatpush.msra.mxu0 %v2093
    %v2095 = vand.u32 %v150, 4294901760
    %v2096 = vsub.f32 %v150, %v2095
    %2097 = vmatpush.msra.mxu0 %v2096
    %v2098 = vand.u32 %v142, 4294901760
    %v2099 = vsub.f32 %v142, %v2098
    %2100 = vmatpush.msra.mxu0 %v2099
    %v2101 = vand.u32 %v134, 4294901760
    %v2102 = vsub.f32 %v134, %v2101
    %2103 = vmatpush.msra.mxu0 %v2102
    %v2104 = vand.u32 %v126, 4294901760
    %v2105 = vsub.f32 %v126, %v2104
    %2106 = vmatpush.msra.mxu0 %v2105
    %v2107 = vand.u32 %v118, 4294901760
    %v2108 = vsub.f32 %v118, %v2107
    %2109 = vmatpush.msra.mxu0 %v2108
    %v2110 = vand.u32 %v110, 4294901760
    %v2111 = vsub.f32 %v110, %v2110
    %2112 = vmatpush.msra.mxu0 %v2111
    %v2113 = vand.u32 %v102, 4294901760
    %v2114 = vsub.f32 %v102, %v2113
    %2115 = vmatpush.msra.mxu0 %v2114
    %v2116 = vand.u32 %v94, 4294901760
    %v2117 = vsub.f32 %v94, %v2116
    %2118 = vmatpush.msra.mxu0 %v2117
    %v2119 = vand.u32 %v86, 4294901760
    %v2120 = vsub.f32 %v86, %v2119
    %2121 = vmatpush.msra.mxu0 %v2120
    %v2122 = vand.u32 %v80, 4294901760
    %v2123 = vsub.f32 %v80, %v2122
    %2124 = vmatmul.f32.gmra.mxu0 %v2123
    %v2125 = vpop.f32.mrf.mxu0
    %v2126 = vadd.f32 %v2072, %v2125
    %2127 = vdwg.mxu0
    %v2128 = vand.u32 %v206, 4294901760
    %2129 = vmatpush.msra.mxu0 %v2128
    %v2130 = vand.u32 %v198, 4294901760
    %2131 = vmatpush.msra.mxu0 %v2130
    %v2132 = vand.u32 %v190, 4294901760
    %2133 = vmatpush.msra.mxu0 %v2132
    %v2134 = vand.u32 %v182, 4294901760
    %2135 = vmatpush.msra.mxu0 %v2134
    %v2136 = vand.u32 %v174, 4294901760
    %2137 = vmatpush.msra.mxu0 %v2136
    %v2138 = vand.u32 %v166, 4294901760
    %2139 = vmatpush.msra.mxu0 %v2138
    %v2140 = vand.u32 %v158, 4294901760
    %2141 = vmatpush.msra.mxu0 %v2140
    %v2142 = vand.u32 %v150, 4294901760
    %2143 = vmatpush.msra.mxu0 %v2142
    %v2144 = vand.u32 %v142, 4294901760
    %2145 = vmatpush.msra.mxu0 %v2144
    %v2146 = vand.u32 %v134, 4294901760
    %2147 = vmatpush.msra.mxu0 %v2146
    %v2148 = vand.u32 %v126, 4294901760
    %2149 = vmatpush.msra.mxu0 %v2148
    %v2150 = vand.u32 %v118, 4294901760
    %2151 = vmatpush.msra.mxu0 %v2150
    %v2152 = vand.u32 %v110, 4294901760
    %2153 = vmatpush.msra.mxu0 %v2152
    %v2154 = vand.u32 %v102, 4294901760
    %2155 = vmatpush.msra.mxu0 %v2154
    %v2156 = vand.u32 %v94, 4294901760
    %2157 = vmatpush.msra.mxu0 %v2156
    %v2158 = vand.u32 %v86, 4294901760
    %2159 = vmatpush.msra.mxu0 %v2158
    %v2160 = vand.u32 %v80, 4294901760
    %v2161 = vsub.f32 %v80, %v2160
    %v2162 = vand.u32 %v2161, 4294901760
    %2163 = vmatmul.f32.gmra.mxu0 %v2162
    %v2164 = vpop.f32.mrf.mxu0
    %v2165 = vadd.f32 %v2126, %v2164
    %2166 = vdwg.mxu0
    %v2167 = vand.u32 %v206, 4294901760
    %v2168 = vsub.f32 %v206, %v2167
    %v2169 = vand.u32 %v2168, 4294901760
    %2170 = vmatpush.msra.mxu0 %v2169
    %v2171 = vand.u32 %v198, 4294901760
    %v2172 = vsub.f32 %v198, %v2171
    %v2173 = vand.u32 %v2172, 4294901760
    %2174 = vmatpush.msra.mxu0 %v2173
    %v2175 = vand.u32 %v190, 4294901760
    %v2176 = vsub.f32 %v190, %v2175
    %v2177 = vand.u32 %v2176, 4294901760
    %2178 = vmatpush.msra.mxu0 %v2177
    %v2179 = vand.u32 %v182, 4294901760
    %v2180 = vsub.f32 %v182, %v2179
    %v2181 = vand.u32 %v2180, 4294901760
    %2182 = vmatpush.msra.mxu0 %v2181
    %v2183 = vand.u32 %v174, 4294901760
    %v2184 = vsub.f32 %v174, %v2183
    %v2185 = vand.u32 %v2184, 4294901760
    %2186 = vmatpush.msra.mxu0 %v2185
    %v2187 = vand.u32 %v166, 4294901760
    %v2188 = vsub.f32 %v166, %v2187
    %v2189 = vand.u32 %v2188, 4294901760
    %2190 = vmatpush.msra.mxu0 %v2189
    %v2191 = vand.u32 %v158, 4294901760
    %v2192 = vsub.f32 %v158, %v2191
    %v2193 = vand.u32 %v2192, 4294901760
    %2194 = vmatpush.msra.mxu0 %v2193
    %v2195 = vand.u32 %v150, 4294901760
    %v2196 = vsub.f32 %v150, %v2195
    %v2197 = vand.u32 %v2196, 4294901760
    %2198 = vmatpush.msra.mxu0 %v2197
    %v2199 = vand.u32 %v142, 4294901760
    %v2200 = vsub.f32 %v142, %v2199
    %v2201 = vand.u32 %v2200, 4294901760
    %2202 = vmatpush.msra.mxu0 %v2201
    %v2203 = vand.u32 %v134, 4294901760
    %v2204 = vsub.f32 %v134, %v2203
    %v2205 = vand.u32 %v2204, 4294901760
    %2206 = vmatpush.msra.mxu0 %v2205
    %v2207 = vand.u32 %v126, 4294901760
    %v2208 = vsub.f32 %v126, %v2207
    %v2209 = vand.u32 %v2208, 4294901760
    %2210 = vmatpush.msra.mxu0 %v2209
    %v2211 = vand.u32 %v118, 4294901760
    %v2212 = vsub.f32 %v118, %v2211
    %v2213 = vand.u32 %v2212, 4294901760
    %2214 = vmatpush.msra.mxu0 %v2213
    %v2215 = vand.u32 %v110, 4294901760
    %v2216 = vsub.f32 %v110, %v2215
    %v2217 = vand.u32 %v2216, 4294901760
    %2218 = vmatpush.msra.mxu0 %v2217
    %v2219 = vand.u32 %v102, 4294901760
    %v2220 = vsub.f32 %v102, %v2219
    %v2221 = vand.u32 %v2220, 4294901760
    %2222 = vmatpush.msra.mxu0 %v2221
    %v2223 = vand.u32 %v94, 4294901760
    %v2224 = vsub.f32 %v94, %v2223
    %v2225 = vand.u32 %v2224, 4294901760
    %2226 = vmatpush.msra.mxu0 %v2225
    %v2227 = vand.u32 %v86, 4294901760
    %v2228 = vsub.f32 %v86, %v2227
    %v2229 = vand.u32 %v2228, 4294901760
    %2230 = vmatpush.msra.mxu0 %v2229
    %v2231 = vand.u32 %v80, 4294901760
    %2232 = vmatmul.f32.gmra.mxu0 %v2231
    %v2233 = vpop.f32.mrf.mxu0
    %v2234 = vadd.f32 %v2165, %v2233
    %2235 = vdwg.mxu0
    %v2236 = vand.u32 %v206, 4294901760
    %2237 = vmatpush.msra.mxu0 %v2236
    %v2238 = vand.u32 %v198, 4294901760
    %2239 = vmatpush.msra.mxu0 %v2238
    %v2240 = vand.u32 %v190, 4294901760
    %2241 = vmatpush.msra.mxu0 %v2240
    %v2242 = vand.u32 %v182, 4294901760
    %2243 = vmatpush.msra.mxu0 %v2242
    %v2244 = vand.u32 %v174, 4294901760
    %2245 = vmatpush.msra.mxu0 %v2244
    %v2246 = vand.u32 %v166, 4294901760
    %2247 = vmatpush.msra.mxu0 %v2246
    %v2248 = vand.u32 %v158, 4294901760
    %2249 = vmatpush.msra.mxu0 %v2248
    %v2250 = vand.u32 %v150, 4294901760
    %2251 = vmatpush.msra.mxu0 %v2250
    %v2252 = vand.u32 %v142, 4294901760
    %2253 = vmatpush.msra.mxu0 %v2252
    %v2254 = vand.u32 %v134, 4294901760
    %2255 = vmatpush.msra.mxu0 %v2254
    %v2256 = vand.u32 %v126, 4294901760
    %2257 = vmatpush.msra.mxu0 %v2256
    %v2258 = vand.u32 %v118, 4294901760
    %2259 = vmatpush.msra.mxu0 %v2258
    %v2260 = vand.u32 %v110, 4294901760
    %2261 = vmatpush.msra.mxu0 %v2260
    %v2262 = vand.u32 %v102, 4294901760
    %2263 = vmatpush.msra.mxu0 %v2262
    %v2264 = vand.u32 %v94, 4294901760
    %2265 = vmatpush.msra.mxu0 %v2264
    %v2266 = vand.u32 %v86, 4294901760
    %2267 = vmatpush.msra.mxu0 %v2266
    %v2268 = vand.u32 %v80, 4294901760
    %2269 = vmatmul.f32.gmra.mxu0 %v2268
    %v2270 = vpop.f32.mrf.mxu0
    %v2271 = vadd.f32 %v2234, %v2270
    %2272 = vdwg.mxu0
    %v2273 = vand.u32 %v207, 4294901760
    %2274 = vmatpush.msra.mxu0 %v2273
    %v2275 = vand.u32 %v199, 4294901760
    %2276 = vmatpush.msra.mxu0 %v2275
    %v2277 = vand.u32 %v191, 4294901760
    %2278 = vmatpush.msra.mxu0 %v2277
    %v2279 = vand.u32 %v183, 4294901760
    %2280 = vmatpush.msra.mxu0 %v2279
    %v2281 = vand.u32 %v175, 4294901760
    %2282 = vmatpush.msra.mxu0 %v2281
    %v2283 = vand.u32 %v167, 4294901760
    %2284 = vmatpush.msra.mxu0 %v2283
    %v2285 = vand.u32 %v159, 4294901760
    %2286 = vmatpush.msra.mxu0 %v2285
    %v2287 = vand.u32 %v151, 4294901760
    %2288 = vmatpush.msra.mxu0 %v2287
    %v2289 = vand.u32 %v143, 4294901760
    %2290 = vmatpush.msra.mxu0 %v2289
    %v2291 = vand.u32 %v135, 4294901760
    %2292 = vmatpush.msra.mxu0 %v2291
    %v2293 = vand.u32 %v127, 4294901760
    %2294 = vmatpush.msra.mxu0 %v2293
    %v2295 = vand.u32 %v119, 4294901760
    %2296 = vmatpush.msra.mxu0 %v2295
    %v2297 = vand.u32 %v111, 4294901760
    %2298 = vmatpush.msra.mxu0 %v2297
    %v2299 = vand.u32 %v103, 4294901760
    %2300 = vmatpush.msra.mxu0 %v2299
    %v2301 = vand.u32 %v95, 4294901760
    %2302 = vmatpush.msra.mxu0 %v2301
    %v2303 = vand.u32 %v87, 4294901760
    %2304 = vmatpush.msra.mxu0 %v2303
    %v2305 = vand.u32 %v80, 4294901760
    %v2306 = vsub.f32 %v80, %v2305
    %v2307 = vand.u32 %v2306, 4294901760
    %v2308 = vsub.f32 %v2306, %v2307
    %v2309 = vand.u32 %v2308, 4294901760
    %2310 = vmatmul.f32.gmra.mxu0 %v2309
    %v2311 = vpop.f32.mrf.mxu0
    %v2312 = vadd.f32 %v217, %v2311
    %2313 = vdwg.mxu0
    %v2314 = vand.u32 %v207, 4294901760
    %v2315 = vsub.f32 %v207, %v2314
    %v2316 = vand.u32 %v2315, 4294901760
    %v2317 = vsub.f32 %v2315, %v2316
    %v2318 = vand.u32 %v2317, 4294901760
    %2319 = vmatpush.msra.mxu0 %v2318
    %v2320 = vand.u32 %v199, 4294901760
    %v2321 = vsub.f32 %v199, %v2320
    %v2322 = vand.u32 %v2321, 4294901760
    %v2323 = vsub.f32 %v2321, %v2322
    %v2324 = vand.u32 %v2323, 4294901760
    %2325 = vmatpush.msra.mxu0 %v2324
    %v2326 = vand.u32 %v191, 4294901760
    %v2327 = vsub.f32 %v191, %v2326
    %v2328 = vand.u32 %v2327, 4294901760
    %v2329 = vsub.f32 %v2327, %v2328
    %v2330 = vand.u32 %v2329, 4294901760
    %2331 = vmatpush.msra.mxu0 %v2330
    %v2332 = vand.u32 %v183, 4294901760
    %v2333 = vsub.f32 %v183, %v2332
    %v2334 = vand.u32 %v2333, 4294901760
    %v2335 = vsub.f32 %v2333, %v2334
    %v2336 = vand.u32 %v2335, 4294901760
    %2337 = vmatpush.msra.mxu0 %v2336
    %v2338 = vand.u32 %v175, 4294901760
    %v2339 = vsub.f32 %v175, %v2338
    %v2340 = vand.u32 %v2339, 4294901760
    %v2341 = vsub.f32 %v2339, %v2340
    %v2342 = vand.u32 %v2341, 4294901760
    %2343 = vmatpush.msra.mxu0 %v2342
    %v2344 = vand.u32 %v167, 4294901760
    %v2345 = vsub.f32 %v167, %v2344
    %v2346 = vand.u32 %v2345, 4294901760
    %v2347 = vsub.f32 %v2345, %v2346
    %v2348 = vand.u32 %v2347, 4294901760
    %2349 = vmatpush.msra.mxu0 %v2348
    %v2350 = vand.u32 %v159, 4294901760
    %v2351 = vsub.f32 %v159, %v2350
    %v2352 = vand.u32 %v2351, 4294901760
    %v2353 = vsub.f32 %v2351, %v2352
    %v2354 = vand.u32 %v2353, 4294901760
    %2355 = vmatpush.msra.mxu0 %v2354
    %v2356 = vand.u32 %v151, 4294901760
    %v2357 = vsub.f32 %v151, %v2356
    %v2358 = vand.u32 %v2357, 4294901760
    %v2359 = vsub.f32 %v2357, %v2358
    %v2360 = vand.u32 %v2359, 4294901760
    %2361 = vmatpush.msra.mxu0 %v2360
    %v2362 = vand.u32 %v143, 4294901760
    %v2363 = vsub.f32 %v143, %v2362
    %v2364 = vand.u32 %v2363, 4294901760
    %v2365 = vsub.f32 %v2363, %v2364
    %v2366 = vand.u32 %v2365, 4294901760
    %2367 = vmatpush.msra.mxu0 %v2366
    %v2368 = vand.u32 %v135, 4294901760
    %v2369 = vsub.f32 %v135, %v2368
    %v2370 = vand.u32 %v2369, 4294901760
    %v2371 = vsub.f32 %v2369, %v2370
    %v2372 = vand.u32 %v2371, 4294901760
    %2373 = vmatpush.msra.mxu0 %v2372
    %v2374 = vand.u32 %v127, 4294901760
    %v2375 = vsub.f32 %v127, %v2374
    %v2376 = vand.u32 %v2375, 4294901760
    %v2377 = vsub.f32 %v2375, %v2376
    %v2378 = vand.u32 %v2377, 4294901760
    %2379 = vmatpush.msra.mxu0 %v2378
    %v2380 = vand.u32 %v119, 4294901760
    %v2381 = vsub.f32 %v119, %v2380
    %v2382 = vand.u32 %v2381, 4294901760
    %v2383 = vsub.f32 %v2381, %v2382
    %v2384 = vand.u32 %v2383, 4294901760
    %2385 = vmatpush.msra.mxu0 %v2384
    %v2386 = vand.u32 %v111, 4294901760
    %v2387 = vsub.f32 %v111, %v2386
    %v2388 = vand.u32 %v2387, 4294901760
    %v2389 = vsub.f32 %v2387, %v2388
    %v2390 = vand.u32 %v2389, 4294901760
    %2391 = vmatpush.msra.mxu0 %v2390
    %v2392 = vand.u32 %v103, 4294901760
    %v2393 = vsub.f32 %v103, %v2392
    %v2394 = vand.u32 %v2393, 4294901760
    %v2395 = vsub.f32 %v2393, %v2394
    %v2396 = vand.u32 %v2395, 4294901760
    %2397 = vmatpush.msra.mxu0 %v2396
    %v2398 = vand.u32 %v95, 4294901760
    %v2399 = vsub.f32 %v95, %v2398
    %v2400 = vand.u32 %v2399, 4294901760
    %v2401 = vsub.f32 %v2399, %v2400
    %v2402 = vand.u32 %v2401, 4294901760
    %2403 = vmatpush.msra.mxu0 %v2402
    %v2404 = vand.u32 %v87, 4294901760
    %v2405 = vsub.f32 %v87, %v2404
    %v2406 = vand.u32 %v2405, 4294901760
    %v2407 = vsub.f32 %v2405, %v2406
    %v2408 = vand.u32 %v2407, 4294901760
    %2409 = vmatpush.msra.mxu0 %v2408
    %v2410 = vand.u32 %v80, 4294901760
    %2411 = vmatmul.f32.gmra.mxu0 %v2410
    %v2412 = vpop.f32.mrf.mxu0
    %v2413 = vadd.f32 %v2312, %v2412
    %2414 = vdwg.mxu0
    %v2415 = vand.u32 %v207, 4294901760
    %v2416 = vsub.f32 %v207, %v2415
    %2417 = vmatpush.msra.mxu0 %v2416
    %v2418 = vand.u32 %v199, 4294901760
    %v2419 = vsub.f32 %v199, %v2418
    %2420 = vmatpush.msra.mxu0 %v2419
    %v2421 = vand.u32 %v191, 4294901760
    %v2422 = vsub.f32 %v191, %v2421
    %2423 = vmatpush.msra.mxu0 %v2422
    %v2424 = vand.u32 %v183, 4294901760
    %v2425 = vsub.f32 %v183, %v2424
    %2426 = vmatpush.msra.mxu0 %v2425
    %v2427 = vand.u32 %v175, 4294901760
    %v2428 = vsub.f32 %v175, %v2427
    %2429 = vmatpush.msra.mxu0 %v2428
    %v2430 = vand.u32 %v167, 4294901760
    %v2431 = vsub.f32 %v167, %v2430
    %2432 = vmatpush.msra.mxu0 %v2431
    %v2433 = vand.u32 %v159, 4294901760
    %v2434 = vsub.f32 %v159, %v2433
    %2435 = vmatpush.msra.mxu0 %v2434
    %v2436 = vand.u32 %v151, 4294901760
    %v2437 = vsub.f32 %v151, %v2436
    %2438 = vmatpush.msra.mxu0 %v2437
    %v2439 = vand.u32 %v143, 4294901760
    %v2440 = vsub.f32 %v143, %v2439
    %2441 = vmatpush.msra.mxu0 %v2440
    %v2442 = vand.u32 %v135, 4294901760
    %v2443 = vsub.f32 %v135, %v2442
    %2444 = vmatpush.msra.mxu0 %v2443
    %v2445 = vand.u32 %v127, 4294901760
    %v2446 = vsub.f32 %v127, %v2445
    %2447 = vmatpush.msra.mxu0 %v2446
    %v2448 = vand.u32 %v119, 4294901760
    %v2449 = vsub.f32 %v119, %v2448
    %2450 = vmatpush.msra.mxu0 %v2449
    %v2451 = vand.u32 %v111, 4294901760
    %v2452 = vsub.f32 %v111, %v2451
    %2453 = vmatpush.msra.mxu0 %v2452
    %v2454 = vand.u32 %v103, 4294901760
    %v2455 = vsub.f32 %v103, %v2454
    %2456 = vmatpush.msra.mxu0 %v2455
    %v2457 = vand.u32 %v95, 4294901760
    %v2458 = vsub.f32 %v95, %v2457
    %2459 = vmatpush.msra.mxu0 %v2458
    %v2460 = vand.u32 %v87, 4294901760
    %v2461 = vsub.f32 %v87, %v2460
    %2462 = vmatpush.msra.mxu0 %v2461
    %v2463 = vand.u32 %v80, 4294901760
    %v2464 = vsub.f32 %v80, %v2463
    %2465 = vmatmul.f32.gmra.mxu0 %v2464
    %v2466 = vpop.f32.mrf.mxu0
    %v2467 = vadd.f32 %v2413, %v2466
    %2468 = vdwg.mxu0
    %v2469 = vand.u32 %v207, 4294901760
    %2470 = vmatpush.msra.mxu0 %v2469
    %v2471 = vand.u32 %v199, 4294901760
    %2472 = vmatpush.msra.mxu0 %v2471
    %v2473 = vand.u32 %v191, 4294901760
    %2474 = vmatpush.msra.mxu0 %v2473
    %v2475 = vand.u32 %v183, 4294901760
    %2476 = vmatpush.msra.mxu0 %v2475
    %v2477 = vand.u32 %v175, 4294901760
    %2478 = vmatpush.msra.mxu0 %v2477
    %v2479 = vand.u32 %v167, 4294901760
    %2480 = vmatpush.msra.mxu0 %v2479
    %v2481 = vand.u32 %v159, 4294901760
    %2482 = vmatpush.msra.mxu0 %v2481
    %v2483 = vand.u32 %v151, 4294901760
    %2484 = vmatpush.msra.mxu0 %v2483
    %v2485 = vand.u32 %v143, 4294901760
    %2486 = vmatpush.msra.mxu0 %v2485
    %v2487 = vand.u32 %v135, 4294901760
    %2488 = vmatpush.msra.mxu0 %v2487
    %v2489 = vand.u32 %v127, 4294901760
    %2490 = vmatpush.msra.mxu0 %v2489
    %v2491 = vand.u32 %v119, 4294901760
    %2492 = vmatpush.msra.mxu0 %v2491
    %v2493 = vand.u32 %v111, 4294901760
    %2494 = vmatpush.msra.mxu0 %v2493
    %v2495 = vand.u32 %v103, 4294901760
    %2496 = vmatpush.msra.mxu0 %v2495
    %v2497 = vand.u32 %v95, 4294901760
    %2498 = vmatpush.msra.mxu0 %v2497
    %v2499 = vand.u32 %v87, 4294901760
    %2500 = vmatpush.msra.mxu0 %v2499
    %v2501 = vand.u32 %v80, 4294901760
    %v2502 = vsub.f32 %v80, %v2501
    %v2503 = vand.u32 %v2502, 4294901760
    %2504 = vmatmul.f32.gmra.mxu0 %v2503
    %v2505 = vpop.f32.mrf.mxu0
    %v2506 = vadd.f32 %v2467, %v2505
    %2507 = vdwg.mxu0
    %v2508 = vand.u32 %v207, 4294901760
    %v2509 = vsub.f32 %v207, %v2508
    %v2510 = vand.u32 %v2509, 4294901760
    %2511 = vmatpush.msra.mxu0 %v2510
    %v2512 = vand.u32 %v199, 4294901760
    %v2513 = vsub.f32 %v199, %v2512
    %v2514 = vand.u32 %v2513, 4294901760
    %2515 = vmatpush.msra.mxu0 %v2514
    %v2516 = vand.u32 %v191, 4294901760
    %v2517 = vsub.f32 %v191, %v2516
    %v2518 = vand.u32 %v2517, 4294901760
    %2519 = vmatpush.msra.mxu0 %v2518
    %v2520 = vand.u32 %v183, 4294901760
    %v2521 = vsub.f32 %v183, %v2520
    %v2522 = vand.u32 %v2521, 4294901760
    %2523 = vmatpush.msra.mxu0 %v2522
    %v2524 = vand.u32 %v175, 4294901760
    %v2525 = vsub.f32 %v175, %v2524
    %v2526 = vand.u32 %v2525, 4294901760
    %2527 = vmatpush.msra.mxu0 %v2526
    %v2528 = vand.u32 %v167, 4294901760
    %v2529 = vsub.f32 %v167, %v2528
    %v2530 = vand.u32 %v2529, 4294901760
    %2531 = vmatpush.msra.mxu0 %v2530
    %v2532 = vand.u32 %v159, 4294901760
    %v2533 = vsub.f32 %v159, %v2532
    %v2534 = vand.u32 %v2533, 4294901760
    %2535 = vmatpush.msra.mxu0 %v2534
    %v2536 = vand.u32 %v151, 4294901760
    %v2537 = vsub.f32 %v151, %v2536
    %v2538 = vand.u32 %v2537, 4294901760
    %2539 = vmatpush.msra.mxu0 %v2538
    %v2540 = vand.u32 %v143, 4294901760
    %v2541 = vsub.f32 %v143, %v2540
    %v2542 = vand.u32 %v2541, 4294901760
    %2543 = vmatpush.msra.mxu0 %v2542
    %v2544 = vand.u32 %v135, 4294901760
    %v2545 = vsub.f32 %v135, %v2544
    %v2546 = vand.u32 %v2545, 4294901760
    %2547 = vmatpush.msra.mxu0 %v2546
    %v2548 = vand.u32 %v127, 4294901760
    %v2549 = vsub.f32 %v127, %v2548
    %v2550 = vand.u32 %v2549, 4294901760
    %2551 = vmatpush.msra.mxu0 %v2550
    %v2552 = vand.u32 %v119, 4294901760
    %v2553 = vsub.f32 %v119, %v2552
    %v2554 = vand.u32 %v2553, 4294901760
    %2555 = vmatpush.msra.mxu0 %v2554
    %v2556 = vand.u32 %v111, 4294901760
    %v2557 = vsub.f32 %v111, %v2556
    %v2558 = vand.u32 %v2557, 4294901760
    %2559 = vmatpush.msra.mxu0 %v2558
    %v2560 = vand.u32 %v103, 4294901760
    %v2561 = vsub.f32 %v103, %v2560
    %v2562 = vand.u32 %v2561, 4294901760
    %2563 = vmatpush.msra.mxu0 %v2562
    %v2564 = vand.u32 %v95, 4294901760
    %v2565 = vsub.f32 %v95, %v2564
    %v2566 = vand.u32 %v2565, 4294901760
    %2567 = vmatpush.msra.mxu0 %v2566
    %v2568 = vand.u32 %v87, 4294901760
    %v2569 = vsub.f32 %v87, %v2568
    %v2570 = vand.u32 %v2569, 4294901760
    %2571 = vmatpush.msra.mxu0 %v2570
    %v2572 = vand.u32 %v80, 4294901760
    %2573 = vmatmul.f32.gmra.mxu0 %v2572
    %v2574 = vpop.f32.mrf.mxu0
    %v2575 = vadd.f32 %v2506, %v2574
    %2576 = vdwg.mxu0
    %v2577 = vand.u32 %v207, 4294901760
    %2578 = vmatpush.msra.mxu0 %v2577
    %v2579 = vand.u32 %v199, 4294901760
    %2580 = vmatpush.msra.mxu0 %v2579
    %v2581 = vand.u32 %v191, 4294901760
    %2582 = vmatpush.msra.mxu0 %v2581
    %v2583 = vand.u32 %v183, 4294901760
    %2584 = vmatpush.msra.mxu0 %v2583
    %v2585 = vand.u32 %v175, 4294901760
    %2586 = vmatpush.msra.mxu0 %v2585
    %v2587 = vand.u32 %v167, 4294901760
    %2588 = vmatpush.msra.mxu0 %v2587
    %v2589 = vand.u32 %v159, 4294901760
    %2590 = vmatpush.msra.mxu0 %v2589
    %v2591 = vand.u32 %v151, 4294901760
    %2592 = vmatpush.msra.mxu0 %v2591
    %v2593 = vand.u32 %v143, 4294901760
    %2594 = vmatpush.msra.mxu0 %v2593
    %v2595 = vand.u32 %v135, 4294901760
    %2596 = vmatpush.msra.mxu0 %v2595
    %v2597 = vand.u32 %v127, 4294901760
    %2598 = vmatpush.msra.mxu0 %v2597
    %v2599 = vand.u32 %v119, 4294901760
    %2600 = vmatpush.msra.mxu0 %v2599
    %v2601 = vand.u32 %v111, 4294901760
    %2602 = vmatpush.msra.mxu0 %v2601
    %v2603 = vand.u32 %v103, 4294901760
    %2604 = vmatpush.msra.mxu0 %v2603
    %v2605 = vand.u32 %v95, 4294901760
    %2606 = vmatpush.msra.mxu0 %v2605
    %v2607 = vand.u32 %v87, 4294901760
    %2608 = vmatpush.msra.mxu0 %v2607
    %v2609 = vand.u32 %v80, 4294901760
    %2610 = vmatmul.f32.gmra.mxu0 %v2609
    %v2611 = vpop.f32.mrf.mxu0
    %v2612 = vadd.f32 %v2575, %v2611
    %2613 = vdwg.mxu0
    %v2614 = vand.u32 %v208, 4294901760
    %2615 = vmatpush.msra.mxu0 %v2614
    %v2616 = vand.u32 %v200, 4294901760
    %2617 = vmatpush.msra.mxu0 %v2616
    %v2618 = vand.u32 %v192, 4294901760
    %2619 = vmatpush.msra.mxu0 %v2618
    %v2620 = vand.u32 %v184, 4294901760
    %2621 = vmatpush.msra.mxu0 %v2620
    %v2622 = vand.u32 %v176, 4294901760
    %2623 = vmatpush.msra.mxu0 %v2622
    %v2624 = vand.u32 %v168, 4294901760
    %2625 = vmatpush.msra.mxu0 %v2624
    %v2626 = vand.u32 %v160, 4294901760
    %2627 = vmatpush.msra.mxu0 %v2626
    %v2628 = vand.u32 %v152, 4294901760
    %2629 = vmatpush.msra.mxu0 %v2628
    %v2630 = vand.u32 %v144, 4294901760
    %2631 = vmatpush.msra.mxu0 %v2630
    %v2632 = vand.u32 %v136, 4294901760
    %2633 = vmatpush.msra.mxu0 %v2632
    %v2634 = vand.u32 %v128, 4294901760
    %2635 = vmatpush.msra.mxu0 %v2634
    %v2636 = vand.u32 %v120, 4294901760
    %2637 = vmatpush.msra.mxu0 %v2636
    %v2638 = vand.u32 %v112, 4294901760
    %2639 = vmatpush.msra.mxu0 %v2638
    %v2640 = vand.u32 %v104, 4294901760
    %2641 = vmatpush.msra.mxu0 %v2640
    %v2642 = vand.u32 %v96, 4294901760
    %2643 = vmatpush.msra.mxu0 %v2642
    %v2644 = vand.u32 %v88, 4294901760
    %2645 = vmatpush.msra.mxu0 %v2644
    %v2646 = vand.u32 %v80, 4294901760
    %v2647 = vsub.f32 %v80, %v2646
    %v2648 = vand.u32 %v2647, 4294901760
    %v2649 = vsub.f32 %v2647, %v2648
    %v2650 = vand.u32 %v2649, 4294901760
    %2651 = vmatmul.f32.gmra.mxu0 %v2650
    %v2652 = vpop.f32.mrf.mxu0
    %v2653 = vadd.f32 %v218, %v2652
    %2654 = vdwg.mxu0
    %v2655 = vand.u32 %v208, 4294901760
    %v2656 = vsub.f32 %v208, %v2655
    %v2657 = vand.u32 %v2656, 4294901760
    %v2658 = vsub.f32 %v2656, %v2657
    %v2659 = vand.u32 %v2658, 4294901760
    %2660 = vmatpush.msra.mxu0 %v2659
    %v2661 = vand.u32 %v200, 4294901760
    %v2662 = vsub.f32 %v200, %v2661
    %v2663 = vand.u32 %v2662, 4294901760
    %v2664 = vsub.f32 %v2662, %v2663
    %v2665 = vand.u32 %v2664, 4294901760
    %2666 = vmatpush.msra.mxu0 %v2665
    %v2667 = vand.u32 %v192, 4294901760
    %v2668 = vsub.f32 %v192, %v2667
    %v2669 = vand.u32 %v2668, 4294901760
    %v2670 = vsub.f32 %v2668, %v2669
    %v2671 = vand.u32 %v2670, 4294901760
    %2672 = vmatpush.msra.mxu0 %v2671
    %v2673 = vand.u32 %v184, 4294901760
    %v2674 = vsub.f32 %v184, %v2673
    %v2675 = vand.u32 %v2674, 4294901760
    %v2676 = vsub.f32 %v2674, %v2675
    %v2677 = vand.u32 %v2676, 4294901760
    %2678 = vmatpush.msra.mxu0 %v2677
    %v2679 = vand.u32 %v176, 4294901760
    %v2680 = vsub.f32 %v176, %v2679
    %v2681 = vand.u32 %v2680, 4294901760
    %v2682 = vsub.f32 %v2680, %v2681
    %v2683 = vand.u32 %v2682, 4294901760
    %2684 = vmatpush.msra.mxu0 %v2683
    %v2685 = vand.u32 %v168, 4294901760
    %v2686 = vsub.f32 %v168, %v2685
    %v2687 = vand.u32 %v2686, 4294901760
    %v2688 = vsub.f32 %v2686, %v2687
    %v2689 = vand.u32 %v2688, 4294901760
    %2690 = vmatpush.msra.mxu0 %v2689
    %v2691 = vand.u32 %v160, 4294901760
    %v2692 = vsub.f32 %v160, %v2691
    %v2693 = vand.u32 %v2692, 4294901760
    %v2694 = vsub.f32 %v2692, %v2693
    %v2695 = vand.u32 %v2694, 4294901760
    %2696 = vmatpush.msra.mxu0 %v2695
    %v2697 = vand.u32 %v152, 4294901760
    %v2698 = vsub.f32 %v152, %v2697
    %v2699 = vand.u32 %v2698, 4294901760
    %v2700 = vsub.f32 %v2698, %v2699
    %v2701 = vand.u32 %v2700, 4294901760
    %2702 = vmatpush.msra.mxu0 %v2701
    %v2703 = vand.u32 %v144, 4294901760
    %v2704 = vsub.f32 %v144, %v2703
    %v2705 = vand.u32 %v2704, 4294901760
    %v2706 = vsub.f32 %v2704, %v2705
    %v2707 = vand.u32 %v2706, 4294901760
    %2708 = vmatpush.msra.mxu0 %v2707
    %v2709 = vand.u32 %v136, 4294901760
    %v2710 = vsub.f32 %v136, %v2709
    %v2711 = vand.u32 %v2710, 4294901760
    %v2712 = vsub.f32 %v2710, %v2711
    %v2713 = vand.u32 %v2712, 4294901760
    %2714 = vmatpush.msra.mxu0 %v2713
    %v2715 = vand.u32 %v128, 4294901760
    %v2716 = vsub.f32 %v128, %v2715
    %v2717 = vand.u32 %v2716, 4294901760
    %v2718 = vsub.f32 %v2716, %v2717
    %v2719 = vand.u32 %v2718, 4294901760
    %2720 = vmatpush.msra.mxu0 %v2719
    %v2721 = vand.u32 %v120, 4294901760
    %v2722 = vsub.f32 %v120, %v2721
    %v2723 = vand.u32 %v2722, 4294901760
    %v2724 = vsub.f32 %v2722, %v2723
    %v2725 = vand.u32 %v2724, 4294901760
    %2726 = vmatpush.msra.mxu0 %v2725
    %v2727 = vand.u32 %v112, 4294901760
    %v2728 = vsub.f32 %v112, %v2727
    %v2729 = vand.u32 %v2728, 4294901760
    %v2730 = vsub.f32 %v2728, %v2729
    %v2731 = vand.u32 %v2730, 4294901760
    %2732 = vmatpush.msra.mxu0 %v2731
    %v2733 = vand.u32 %v104, 4294901760
    %v2734 = vsub.f32 %v104, %v2733
    %v2735 = vand.u32 %v2734, 4294901760
    %v2736 = vsub.f32 %v2734, %v2735
    %v2737 = vand.u32 %v2736, 4294901760
    %2738 = vmatpush.msra.mxu0 %v2737
    %v2739 = vand.u32 %v96, 4294901760
    %v2740 = vsub.f32 %v96, %v2739
    %v2741 = vand.u32 %v2740, 4294901760
    %v2742 = vsub.f32 %v2740, %v2741
    %v2743 = vand.u32 %v2742, 4294901760
    %2744 = vmatpush.msra.mxu0 %v2743
    %v2745 = vand.u32 %v88, 4294901760
    %v2746 = vsub.f32 %v88, %v2745
    %v2747 = vand.u32 %v2746, 4294901760
    %v2748 = vsub.f32 %v2746, %v2747
    %v2749 = vand.u32 %v2748, 4294901760
    %2750 = vmatpush.msra.mxu0 %v2749
    %v2751 = vand.u32 %v80, 4294901760
    %2752 = vmatmul.f32.gmra.mxu0 %v2751
    %v2753 = vpop.f32.mrf.mxu0
    %v2754 = vadd.f32 %v2653, %v2753
    %2755 = vdwg.mxu0
    %v2756 = vand.u32 %v208, 4294901760
    %v2757 = vsub.f32 %v208, %v2756
    %2758 = vmatpush.msra.mxu0 %v2757
    %v2759 = vand.u32 %v200, 4294901760
    %v2760 = vsub.f32 %v200, %v2759
    %2761 = vmatpush.msra.mxu0 %v2760
    %v2762 = vand.u32 %v192, 4294901760
    %v2763 = vsub.f32 %v192, %v2762
    %2764 = vmatpush.msra.mxu0 %v2763
    %v2765 = vand.u32 %v184, 4294901760
    %v2766 = vsub.f32 %v184, %v2765
    %2767 = vmatpush.msra.mxu0 %v2766
    %v2768 = vand.u32 %v176, 4294901760
    %v2769 = vsub.f32 %v176, %v2768
    %2770 = vmatpush.msra.mxu0 %v2769
    %v2771 = vand.u32 %v168, 4294901760
    %v2772 = vsub.f32 %v168, %v2771
    %2773 = vmatpush.msra.mxu0 %v2772
    %v2774 = vand.u32 %v160, 4294901760
    %v2775 = vsub.f32 %v160, %v2774
    %2776 = vmatpush.msra.mxu0 %v2775
    %v2777 = vand.u32 %v152, 4294901760
    %v2778 = vsub.f32 %v152, %v2777
    %2779 = vmatpush.msra.mxu0 %v2778
    %v2780 = vand.u32 %v144, 4294901760
    %v2781 = vsub.f32 %v144, %v2780
    %2782 = vmatpush.msra.mxu0 %v2781
    %v2783 = vand.u32 %v136, 4294901760
    %v2784 = vsub.f32 %v136, %v2783
    %2785 = vmatpush.msra.mxu0 %v2784
    %v2786 = vand.u32 %v128, 4294901760
    %v2787 = vsub.f32 %v128, %v2786
    %2788 = vmatpush.msra.mxu0 %v2787
    %v2789 = vand.u32 %v120, 4294901760
    %v2790 = vsub.f32 %v120, %v2789
    %2791 = vmatpush.msra.mxu0 %v2790
    %v2792 = vand.u32 %v112, 4294901760
    %v2793 = vsub.f32 %v112, %v2792
    %2794 = vmatpush.msra.mxu0 %v2793
    %v2795 = vand.u32 %v104, 4294901760
    %v2796 = vsub.f32 %v104, %v2795
    %2797 = vmatpush.msra.mxu0 %v2796
    %v2798 = vand.u32 %v96, 4294901760
    %v2799 = vsub.f32 %v96, %v2798
    %2800 = vmatpush.msra.mxu0 %v2799
    %v2801 = vand.u32 %v88, 4294901760
    %v2802 = vsub.f32 %v88, %v2801
    %2803 = vmatpush.msra.mxu0 %v2802
    %v2804 = vand.u32 %v80, 4294901760
    %v2805 = vsub.f32 %v80, %v2804
    %2806 = vmatmul.f32.gmra.mxu0 %v2805
    %v2807 = vpop.f32.mrf.mxu0
    %v2808 = vadd.f32 %v2754, %v2807
    %2809 = vdwg.mxu0
    %v2810 = vand.u32 %v208, 4294901760
    %2811 = vmatpush.msra.mxu0 %v2810
    %v2812 = vand.u32 %v200, 4294901760
    %2813 = vmatpush.msra.mxu0 %v2812
    %v2814 = vand.u32 %v192, 4294901760
    %2815 = vmatpush.msra.mxu0 %v2814
    %v2816 = vand.u32 %v184, 4294901760
    %2817 = vmatpush.msra.mxu0 %v2816
    %v2818 = vand.u32 %v176, 4294901760
    %2819 = vmatpush.msra.mxu0 %v2818
    %v2820 = vand.u32 %v168, 4294901760
    %2821 = vmatpush.msra.mxu0 %v2820
    %v2822 = vand.u32 %v160, 4294901760
    %2823 = vmatpush.msra.mxu0 %v2822
    %v2824 = vand.u32 %v152, 4294901760
    %2825 = vmatpush.msra.mxu0 %v2824
    %v2826 = vand.u32 %v144, 4294901760
    %2827 = vmatpush.msra.mxu0 %v2826
    %v2828 = vand.u32 %v136, 4294901760
    %2829 = vmatpush.msra.mxu0 %v2828
    %v2830 = vand.u32 %v128, 4294901760
    %2831 = vmatpush.msra.mxu0 %v2830
    %v2832 = vand.u32 %v120, 4294901760
    %2833 = vmatpush.msra.mxu0 %v2832
    %v2834 = vand.u32 %v112, 4294901760
    %2835 = vmatpush.msra.mxu0 %v2834
    %v2836 = vand.u32 %v104, 4294901760
    %2837 = vmatpush.msra.mxu0 %v2836
    %v2838 = vand.u32 %v96, 4294901760
    %2839 = vmatpush.msra.mxu0 %v2838
    %v2840 = vand.u32 %v88, 4294901760
    %2841 = vmatpush.msra.mxu0 %v2840
    %v2842 = vand.u32 %v80, 4294901760
    %v2843 = vsub.f32 %v80, %v2842
    %v2844 = vand.u32 %v2843, 4294901760
    %2845 = vmatmul.f32.gmra.mxu0 %v2844
    %v2846 = vpop.f32.mrf.mxu0
    %v2847 = vadd.f32 %v2808, %v2846
    %2848 = vdwg.mxu0
    %v2849 = vand.u32 %v208, 4294901760
    %v2850 = vsub.f32 %v208, %v2849
    %v2851 = vand.u32 %v2850, 4294901760
    %2852 = vmatpush.msra.mxu0 %v2851
    %v2853 = vand.u32 %v200, 4294901760
    %v2854 = vsub.f32 %v200, %v2853
    %v2855 = vand.u32 %v2854, 4294901760
    %2856 = vmatpush.msra.mxu0 %v2855
    %v2857 = vand.u32 %v192, 4294901760
    %v2858 = vsub.f32 %v192, %v2857
    %v2859 = vand.u32 %v2858, 4294901760
    %2860 = vmatpush.msra.mxu0 %v2859
    %v2861 = vand.u32 %v184, 4294901760
    %v2862 = vsub.f32 %v184, %v2861
    %v2863 = vand.u32 %v2862, 4294901760
    %2864 = vmatpush.msra.mxu0 %v2863
    %v2865 = vand.u32 %v176, 4294901760
    %v2866 = vsub.f32 %v176, %v2865
    %v2867 = vand.u32 %v2866, 4294901760
    %2868 = vmatpush.msra.mxu0 %v2867
    %v2869 = vand.u32 %v168, 4294901760
    %v2870 = vsub.f32 %v168, %v2869
    %v2871 = vand.u32 %v2870, 4294901760
    %2872 = vmatpush.msra.mxu0 %v2871
    %v2873 = vand.u32 %v160, 4294901760
    %v2874 = vsub.f32 %v160, %v2873
    %v2875 = vand.u32 %v2874, 4294901760
    %2876 = vmatpush.msra.mxu0 %v2875
    %v2877 = vand.u32 %v152, 4294901760
    %v2878 = vsub.f32 %v152, %v2877
    %v2879 = vand.u32 %v2878, 4294901760
    %2880 = vmatpush.msra.mxu0 %v2879
    %v2881 = vand.u32 %v144, 4294901760
    %v2882 = vsub.f32 %v144, %v2881
    %v2883 = vand.u32 %v2882, 4294901760
    %2884 = vmatpush.msra.mxu0 %v2883
    %v2885 = vand.u32 %v136, 4294901760
    %v2886 = vsub.f32 %v136, %v2885
    %v2887 = vand.u32 %v2886, 4294901760
    %2888 = vmatpush.msra.mxu0 %v2887
    %v2889 = vand.u32 %v128, 4294901760
    %v2890 = vsub.f32 %v128, %v2889
    %v2891 = vand.u32 %v2890, 4294901760
    %2892 = vmatpush.msra.mxu0 %v2891
    %v2893 = vand.u32 %v120, 4294901760
    %v2894 = vsub.f32 %v120, %v2893
    %v2895 = vand.u32 %v2894, 4294901760
    %2896 = vmatpush.msra.mxu0 %v2895
    %v2897 = vand.u32 %v112, 4294901760
    %v2898 = vsub.f32 %v112, %v2897
    %v2899 = vand.u32 %v2898, 4294901760
    %2900 = vmatpush.msra.mxu0 %v2899
    %v2901 = vand.u32 %v104, 4294901760
    %v2902 = vsub.f32 %v104, %v2901
    %v2903 = vand.u32 %v2902, 4294901760
    %2904 = vmatpush.msra.mxu0 %v2903
    %v2905 = vand.u32 %v96, 4294901760
    %v2906 = vsub.f32 %v96, %v2905
    %v2907 = vand.u32 %v2906, 4294901760
    %2908 = vmatpush.msra.mxu0 %v2907
    %v2909 = vand.u32 %v88, 4294901760
    %v2910 = vsub.f32 %v88, %v2909
    %v2911 = vand.u32 %v2910, 4294901760
    %2912 = vmatpush.msra.mxu0 %v2911
    %v2913 = vand.u32 %v80, 4294901760
    %2914 = vmatmul.f32.gmra.mxu0 %v2913
    %v2915 = vpop.f32.mrf.mxu0
    %v2916 = vadd.f32 %v2847, %v2915
    %2917 = vdwg.mxu0
    %v2918 = vand.u32 %v208, 4294901760
    %2919 = vmatpush.msra.mxu0 %v2918
    %v2920 = vand.u32 %v200, 4294901760
    %2921 = vmatpush.msra.mxu0 %v2920
    %v2922 = vand.u32 %v192, 4294901760
    %2923 = vmatpush.msra.mxu0 %v2922
    %v2924 = vand.u32 %v184, 4294901760
    %2925 = vmatpush.msra.mxu0 %v2924
    %v2926 = vand.u32 %v176, 4294901760
    %2927 = vmatpush.msra.mxu0 %v2926
    %v2928 = vand.u32 %v168, 4294901760
    %2929 = vmatpush.msra.mxu0 %v2928
    %v2930 = vand.u32 %v160, 4294901760
    %2931 = vmatpush.msra.mxu0 %v2930
    %v2932 = vand.u32 %v152, 4294901760
    %2933 = vmatpush.msra.mxu0 %v2932
    %v2934 = vand.u32 %v144, 4294901760
    %2935 = vmatpush.msra.mxu0 %v2934
    %v2936 = vand.u32 %v136, 4294901760
    %2937 = vmatpush.msra.mxu0 %v2936
    %v2938 = vand.u32 %v128, 4294901760
    %2939 = vmatpush.msra.mxu0 %v2938
    %v2940 = vand.u32 %v120, 4294901760
    %2941 = vmatpush.msra.mxu0 %v2940
    %v2942 = vand.u32 %v112, 4294901760
    %2943 = vmatpush.msra.mxu0 %v2942
    %v2944 = vand.u32 %v104, 4294901760
    %2945 = vmatpush.msra.mxu0 %v2944
    %v2946 = vand.u32 %v96, 4294901760
    %2947 = vmatpush.msra.mxu0 %v2946
    %v2948 = vand.u32 %v88, 4294901760
    %2949 = vmatpush.msra.mxu0 %v2948
    %v2950 = vand.u32 %v80, 4294901760
    %2951 = vmatmul.f32.gmra.mxu0 %v2950
    %v2952 = vpop.f32.mrf.mxu0
    %v2953 = vadd.f32 %v2916, %v2952
    %2954 = vdwg.mxu0
    %v2955 = vtanh.pop %v566
    %v2956 = vtanh.pop %v907
    %v2957 = vtanh.pop %v1248
    %v2958 = vtanh.pop %v1589
    %v2959 = vtanh.pop %v1930
    %v2960 = vtanh.pop %v2271
    %v2961 = vtanh.pop %v2612
    %v2962 = vtanh.pop %v2953
    %v2963 = vld [vmem:[#allocation8] sm:$0xff]
    %v2964 = vld [vmem:[#allocation8 + $0x8] sm:$0xff]
    %v2965 = vld [vmem:[#allocation8 + $0x10] sm:$0xff]
    %v2966 = vld [vmem:[#allocation8 + $0x18] sm:$0xff]
    %v2967 = vld [vmem:[#allocation8 + $0x20] sm:$0xff]
    %v2968 = vld [vmem:[#allocation8 + $0x28] sm:$0xff]
    %v2969 = vld [vmem:[#allocation8 + $0x30] sm:$0xff]
    %v2970 = vld [vmem:[#allocation8 + $0x38] sm:$0xff]
    %v2971 = vld [vmem:[#allocation8 + $0x40] sm:$0xff]
    %v2972 = vld [vmem:[#allocation8 + $0x48] sm:$0xff]
    %v2973 = vld [vmem:[#allocation8 + $0x50] sm:$0xff]
    %v2974 = vld [vmem:[#allocation8 + $0x58] sm:$0xff]
    %v2975 = vld [vmem:[#allocation8 + $0x60] sm:$0xff]
    %v2976 = vld [vmem:[#allocation8 + $0x68] sm:$0xff]
    %v2977 = vld [vmem:[#allocation8 + $0x70] sm:$0xff]
    %v2978 = vld [vmem:[#allocation8 + $0x78] sm:$0xff]
    %v2979 = vld [vmem:[#allocation8 + $0x80] sm:$0xff]
    %v2980 = vld [vmem:[#allocation8 + $0x88] sm:$0xff]
    %v2981 = vld [vmem:[#allocation8 + $0x90] sm:$0xff]
    %v2982 = vld [vmem:[#allocation8 + $0x98] sm:$0xff]
    %v2983 = vld [vmem:[#allocation8 + $0xa0] sm:$0xff]
    %v2984 = vld [vmem:[#allocation8 + $0xa8] sm:$0xff]
    %v2985 = vld [vmem:[#allocation8 + $0xb0] sm:$0xff]
    %v2986 = vld [vmem:[#allocation8 + $0xb8] sm:$0xff]
    %v2987 = vld [vmem:[#allocation8 + $0xc0] sm:$0xff]
    %v2988 = vld [vmem:[#allocation8 + $0xc8] sm:$0xff]
    %v2989 = vld [vmem:[#allocation8 + $0xd0] sm:$0xff]
    %v2990 = vld [vmem:[#allocation8 + $0xd8] sm:$0xff]
    %v2991 = vld [vmem:[#allocation8 + $0xe0] sm:$0xff]
    %v2992 = vld [vmem:[#allocation8 + $0xe8] sm:$0xff]
    %v2993 = vld [vmem:[#allocation8 + $0xf0] sm:$0xff]
    %v2994 = vld [vmem:[#allocation8 + $0xf8] sm:$0xff]
    %v2995 = vld [vmem:[#allocation8 + $0x100] sm:$0xff]
    %v2996 = vld [vmem:[#allocation8 + $0x108] sm:$0xff]
    %v2997 = vld [vmem:[#allocation8 + $0x110] sm:$0xff]
    %v2998 = vld [vmem:[#allocation8 + $0x118] sm:$0xff]
    %v2999 = vld [vmem:[#allocation8 + $0x120] sm:$0xff]
    %v3000 = vld [vmem:[#allocation8 + $0x128] sm:$0xff]
    %v3001 = vld [vmem:[#allocation8 + $0x130] sm:$0xff]
    %v3002 = vld [vmem:[#allocation8 + $0x138] sm:$0xff]
    %v3003 = vld [vmem:[#allocation8 + $0x140] sm:$0xff]
    %v3004 = vld [vmem:[#allocation8 + $0x148] sm:$0xff]
    %v3005 = vld [vmem:[#allocation8 + $0x150] sm:$0xff]
    %v3006 = vld [vmem:[#allocation8 + $0x158] sm:$0xff]
    %v3007 = vld [vmem:[#allocation8 + $0x160] sm:$0xff]
    %v3008 = vld [vmem:[#allocation8 + $0x168] sm:$0xff]
    %v3009 = vld [vmem:[#allocation8 + $0x170] sm:$0xff]
    %v3010 = vld [vmem:[#allocation8 + $0x178] sm:$0xff]
    %v3011 = vld [vmem:[#allocation8 + $0x180] sm:$0xff]
    %v3012 = vld [vmem:[#allocation8 + $0x188] sm:$0xff]
    %v3013 = vld [vmem:[#allocation8 + $0x190] sm:$0xff]
    %v3014 = vld [vmem:[#allocation8 + $0x198] sm:$0xff]
    %v3015 = vld [vmem:[#allocation8 + $0x1a0] sm:$0xff]
    %v3016 = vld [vmem:[#allocation8 + $0x1a8] sm:$0xff]
    %v3017 = vld [vmem:[#allocation8 + $0x1b0] sm:$0xff]
    %v3018 = vld [vmem:[#allocation8 + $0x1b8] sm:$0xff]
    %v3019 = vld [vmem:[#allocation8 + $0x1c0] sm:$0xff]
    %v3020 = vld [vmem:[#allocation8 + $0x1c8] sm:$0xff]
    %v3021 = vld [vmem:[#allocation8 + $0x1d0] sm:$0xff]
    %v3022 = vld [vmem:[#allocation8 + $0x1d8] sm:$0xff]
    %v3023 = vld [vmem:[#allocation8 + $0x1e0] sm:$0xff]
    %v3024 = vld [vmem:[#allocation8 + $0x1e8] sm:$0xff]
    %v3025 = vld [vmem:[#allocation8 + $0x1f0] sm:$0xff]
    %v3026 = vld [vmem:[#allocation8 + $0x1f8] sm:$0xff]
    %v3027 = vld [vmem:[#allocation8 + $0x200] sm:$0xff]
    %v3028 = vld [vmem:[#allocation8 + $0x208] sm:$0xff]
    %v3029 = vld [vmem:[#allocation8 + $0x210] sm:$0xff]
    %v3030 = vld [vmem:[#allocation8 + $0x218] sm:$0xff]
    %v3031 = vld [vmem:[#allocation8 + $0x220] sm:$0xff]
    %v3032 = vld [vmem:[#allocation8 + $0x228] sm:$0xff]
    %v3033 = vld [vmem:[#allocation8 + $0x230] sm:$0xff]
    %v3034 = vld [vmem:[#allocation8 + $0x238] sm:$0xff]
    %v3035 = vld [vmem:[#allocation8 + $0x240] sm:$0xff]
    %v3036 = vld [vmem:[#allocation8 + $0x248] sm:$0xff]
    %v3037 = vld [vmem:[#allocation8 + $0x250] sm:$0xff]
    %v3038 = vld [vmem:[#allocation8 + $0x258] sm:$0xff]
    %v3039 = vld [vmem:[#allocation8 + $0x260] sm:$0xff]
    %v3040 = vld [vmem:[#allocation8 + $0x268] sm:$0xff]
    %v3041 = vld [vmem:[#allocation8 + $0x270] sm:$0xff]
    %v3042 = vld [vmem:[#allocation8 + $0x278] sm:$0xff]
    %v3043 = vld [vmem:[#allocation8 + $0x280] sm:$0xff]
    %v3044 = vld [vmem:[#allocation8 + $0x288] sm:$0xff]
    %v3045 = vld [vmem:[#allocation8 + $0x290] sm:$0xff]
    %v3046 = vld [vmem:[#allocation8 + $0x298] sm:$0xff]
    %v3047 = vld [vmem:[#allocation8 + $0x2a0] sm:$0xff]
    %v3048 = vld [vmem:[#allocation8 + $0x2a8] sm:$0xff]
    %v3049 = vld [vmem:[#allocation8 + $0x2b0] sm:$0xff]
    %v3050 = vld [vmem:[#allocation8 + $0x2b8] sm:$0xff]
    %v3051 = vld [vmem:[#allocation8 + $0x2c0] sm:$0xff]
    %v3052 = vld [vmem:[#allocation8 + $0x2c8] sm:$0xff]
    %v3053 = vld [vmem:[#allocation8 + $0x2d0] sm:$0xff]
    %v3054 = vld [vmem:[#allocation8 + $0x2d8] sm:$0xff]
    %v3055 = vld [vmem:[#allocation8 + $0x2e0] sm:$0xff]
    %v3056 = vld [vmem:[#allocation8 + $0x2e8] sm:$0xff]
    %v3057 = vld [vmem:[#allocation8 + $0x2f0] sm:$0xff]
    %v3058 = vld [vmem:[#allocation8 + $0x2f8] sm:$0xff]
    %v3059 = vld [vmem:[#allocation8 + $0x300] sm:$0xff]
    %v3060 = vld [vmem:[#allocation8 + $0x308] sm:$0xff]
    %v3061 = vld [vmem:[#allocation8 + $0x310] sm:$0xff]
    %v3062 = vld [vmem:[#allocation8 + $0x318] sm:$0xff]
    %v3063 = vld [vmem:[#allocation8 + $0x320] sm:$0xff]
    %v3064 = vld [vmem:[#allocation8 + $0x328] sm:$0xff]
    %v3065 = vld [vmem:[#allocation8 + $0x330] sm:$0xff]
    %v3066 = vld [vmem:[#allocation8 + $0x338] sm:$0xff]
    %v3067 = vld [vmem:[#allocation8 + $0x340] sm:$0xff]
    %v3068 = vld [vmem:[#allocation8 + $0x348] sm:$0xff]
    %v3069 = vld [vmem:[#allocation8 + $0x350] sm:$0xff]
    %v3070 = vld [vmem:[#allocation8 + $0x358] sm:$0xff]
    %v3071 = vld [vmem:[#allocation8 + $0x360] sm:$0xff]
    %v3072 = vld [vmem:[#allocation8 + $0x368] sm:$0xff]
    %v3073 = vld [vmem:[#allocation8 + $0x370] sm:$0xff]
    %v3074 = vld [vmem:[#allocation8 + $0x378] sm:$0xff]
    %v3075 = vld [vmem:[#allocation8 + $0x380] sm:$0xff]
    %v3076 = vld [vmem:[#allocation8 + $0x388] sm:$0xff]
    %v3077 = vld [vmem:[#allocation8 + $0x390] sm:$0xff]
    %v3078 = vld [vmem:[#allocation8 + $0x398] sm:$0xff]
    %v3079 = vld [vmem:[#allocation8 + $0x3a0] sm:$0xff]
    %v3080 = vld [vmem:[#allocation8 + $0x3a8] sm:$0xff]
    %v3081 = vld [vmem:[#allocation8 + $0x3b0] sm:$0xff]
    %v3082 = vld [vmem:[#allocation8 + $0x3b8] sm:$0xff]
    %v3083 = vld [vmem:[#allocation8 + $0x3c0] sm:$0xff]
    %v3084 = vld [vmem:[#allocation8 + $0x3c8] sm:$0xff]
    %v3085 = vld [vmem:[#allocation8 + $0x3d0] sm:$0xff]
    %v3086 = vld [vmem:[#allocation8 + $0x3d8] sm:$0xff]
    %v3087 = vld [vmem:[#allocation8 + $0x3e0] sm:$0xff]
    %v3088 = vld [vmem:[#allocation8 + $0x3e8] sm:$0xff]
    %v3089 = vld [vmem:[#allocation8 + $0x3f0] sm:$0xff]
    %v3090 = vld [vmem:[#allocation8 + $0x3f8] sm:$0xff]
    %v3091 = vld [vmem:[%s4] sm:$0x1]
    %v3093 = vperm.slane %v3091, 0
    %v3095 = vand.u32 %v2978, 4294901760
    %3096 = vmatpush.msra.mxu0 %v3095
    %v3097 = vand.u32 %v2977, 4294901760
    %3098 = vmatpush.msra.mxu0 %v3097
    %v3099 = vand.u32 %v2976, 4294901760
    %3100 = vmatpush.msra.mxu0 %v3099
    %v3101 = vand.u32 %v2975, 4294901760
    %3102 = vmatpush.msra.mxu0 %v3101
    %v3103 = vand.u32 %v2974, 4294901760
    %3104 = vmatpush.msra.mxu0 %v3103
    %v3105 = vand.u32 %v2973, 4294901760
    %3106 = vmatpush.msra.mxu0 %v3105
    %v3107 = vand.u32 %v2972, 4294901760
    %3108 = vmatpush.msra.mxu0 %v3107
    %v3109 = vand.u32 %v2971, 4294901760
    %3110 = vmatpush.msra.mxu0 %v3109
    %v3111 = vand.u32 %v2970, 4294901760
    %3112 = vmatpush.msra.mxu0 %v3111
    %v3113 = vand.u32 %v2969, 4294901760
    %3114 = vmatpush.msra.mxu0 %v3113
    %v3115 = vand.u32 %v2968, 4294901760
    %3116 = vmatpush.msra.mxu0 %v3115
    %v3117 = vand.u32 %v2967, 4294901760
    %3118 = vmatpush.msra.mxu0 %v3117
    %v3119 = vand.u32 %v2966, 4294901760
    %3120 = vmatpush.msra.mxu0 %v3119
    %v3121 = vand.u32 %v2965, 4294901760
    %3122 = vmatpush.msra.mxu0 %v3121
    %v3123 = vand.u32 %v2964, 4294901760
    %3124 = vmatpush.msra.mxu0 %v3123
    %v3125 = vand.u32 %v2963, 4294901760
    %3126 = vmatpush.msra.mxu0 %v3125
    %v3127 = vand.u32 %v2955, 4294901760
    %v3128 = vsub.f32 %v2955, %v3127
    %v3129 = vand.u32 %v3128, 4294901760
    %v3130 = vsub.f32 %v3128, %v3129
    %v3131 = vand.u32 %v3130, 4294901760
    %3132 = vmatmul.f32.gmra.mxu0 %v3131
    %v3133 = vpop.f32.mrf.mxu0
    %v3134 = vadd.f32 %v3093, %v3133
    %3135 = vdwg.mxu0
    %v3136 = vand.u32 %v2978, 4294901760
    %v3137 = vsub.f32 %v2978, %v3136
    %v3138 = vand.u32 %v3137, 4294901760
    %v3139 = vsub.f32 %v3137, %v3138
    %v3140 = vand.u32 %v3139, 4294901760
    %3141 = vmatpush.msra.mxu0 %v3140
    %v3142 = vand.u32 %v2977, 4294901760
    %v3143 = vsub.f32 %v2977, %v3142
    %v3144 = vand.u32 %v3143, 4294901760
    %v3145 = vsub.f32 %v3143, %v3144
    %v3146 = vand.u32 %v3145, 4294901760
    %3147 = vmatpush.msra.mxu0 %v3146
    %v3148 = vand.u32 %v2976, 4294901760
    %v3149 = vsub.f32 %v2976, %v3148
    %v3150 = vand.u32 %v3149, 4294901760
    %v3151 = vsub.f32 %v3149, %v3150
    %v3152 = vand.u32 %v3151, 4294901760
    %3153 = vmatpush.msra.mxu0 %v3152
    %v3154 = vand.u32 %v2975, 4294901760
    %v3155 = vsub.f32 %v2975, %v3154
    %v3156 = vand.u32 %v3155, 4294901760
    %v3157 = vsub.f32 %v3155, %v3156
    %v3158 = vand.u32 %v3157, 4294901760
    %3159 = vmatpush.msra.mxu0 %v3158
    %v3160 = vand.u32 %v2974, 4294901760
    %v3161 = vsub.f32 %v2974, %v3160
    %v3162 = vand.u32 %v3161, 4294901760
    %v3163 = vsub.f32 %v3161, %v3162
    %v3164 = vand.u32 %v3163, 4294901760
    %3165 = vmatpush.msra.mxu0 %v3164
    %v3166 = vand.u32 %v2973, 4294901760
    %v3167 = vsub.f32 %v2973, %v3166
    %v3168 = vand.u32 %v3167, 4294901760
    %v3169 = vsub.f32 %v3167, %v3168
    %v3170 = vand.u32 %v3169, 4294901760
    %3171 = vmatpush.msra.mxu0 %v3170
    %v3172 = vand.u32 %v2972, 4294901760
    %v3173 = vsub.f32 %v2972, %v3172
    %v3174 = vand.u32 %v3173, 4294901760
    %v3175 = vsub.f32 %v3173, %v3174
    %v3176 = vand.u32 %v3175, 4294901760
    %3177 = vmatpush.msra.mxu0 %v3176
    %v3178 = vand.u32 %v2971, 4294901760
    %v3179 = vsub.f32 %v2971, %v3178
    %v3180 = vand.u32 %v3179, 4294901760
    %v3181 = vsub.f32 %v3179, %v3180
    %v3182 = vand.u32 %v3181, 4294901760
    %3183 = vmatpush.msra.mxu0 %v3182
    %v3184 = vand.u32 %v2970, 4294901760
    %v3185 = vsub.f32 %v2970, %v3184
    %v3186 = vand.u32 %v3185, 4294901760
    %v3187 = vsub.f32 %v3185, %v3186
    %v3188 = vand.u32 %v3187, 4294901760
    %3189 = vmatpush.msra.mxu0 %v3188
    %v3190 = vand.u32 %v2969, 4294901760
    %v3191 = vsub.f32 %v2969, %v3190
    %v3192 = vand.u32 %v3191, 4294901760
    %v3193 = vsub.f32 %v3191, %v3192
    %v3194 = vand.u32 %v3193, 4294901760
    %3195 = vmatpush.msra.mxu0 %v3194
    %v3196 = vand.u32 %v2968, 4294901760
    %v3197 = vsub.f32 %v2968, %v3196
    %v3198 = vand.u32 %v3197, 4294901760
    %v3199 = vsub.f32 %v3197, %v3198
    %v3200 = vand.u32 %v3199, 4294901760
    %3201 = vmatpush.msra.mxu0 %v3200
    %v3202 = vand.u32 %v2967, 4294901760
    %v3203 = vsub.f32 %v2967, %v3202
    %v3204 = vand.u32 %v3203, 4294901760
    %v3205 = vsub.f32 %v3203, %v3204
    %v3206 = vand.u32 %v3205, 4294901760
    %3207 = vmatpush.msra.mxu0 %v3206
    %v3208 = vand.u32 %v2966, 4294901760
    %v3209 = vsub.f32 %v2966, %v3208
    %v3210 = vand.u32 %v3209, 4294901760
    %v3211 = vsub.f32 %v3209, %v3210
    %v3212 = vand.u32 %v3211, 4294901760
    %3213 = vmatpush.msra.mxu0 %v3212
    %v3214 = vand.u32 %v2965, 4294901760
    %v3215 = vsub.f32 %v2965, %v3214
    %v3216 = vand.u32 %v3215, 4294901760
    %v3217 = vsub.f32 %v3215, %v3216
    %v3218 = vand.u32 %v3217, 4294901760
    %3219 = vmatpush.msra.mxu0 %v3218
    %v3220 = vand.u32 %v2964, 4294901760
    %v3221 = vsub.f32 %v2964, %v3220
    %v3222 = vand.u32 %v3221, 4294901760
    %v3223 = vsub.f32 %v3221, %v3222
    %v3224 = vand.u32 %v3223, 4294901760
    %3225 = vmatpush.msra.mxu0 %v3224
    %v3226 = vand.u32 %v2963, 4294901760
    %v3227 = vsub.f32 %v2963, %v3226
    %v3228 = vand.u32 %v3227, 4294901760
    %v3229 = vsub.f32 %v3227, %v3228
    %v3230 = vand.u32 %v3229, 4294901760
    %3231 = vmatpush.msra.mxu0 %v3230
    %v3232 = vand.u32 %v2955, 4294901760
    %3233 = vmatmul.f32.gmra.mxu0 %v3232
    %v3234 = vpop.f32.mrf.mxu0
    %v3235 = vadd.f32 %v3134, %v3234
    %3236 = vdwg.mxu0
    %v3237 = vand.u32 %v2978, 4294901760
    %v3238 = vsub.f32 %v2978, %v3237
    %3239 = vmatpush.msra.mxu0 %v3238
    %v3240 = vand.u32 %v2977, 4294901760
    %v3241 = vsub.f32 %v2977, %v3240
    %3242 = vmatpush.msra.mxu0 %v3241
    %v3243 = vand.u32 %v2976, 4294901760
    %v3244 = vsub.f32 %v2976, %v3243
    %3245 = vmatpush.msra.mxu0 %v3244
    %v3246 = vand.u32 %v2975, 4294901760
    %v3247 = vsub.f32 %v2975, %v3246
    %3248 = vmatpush.msra.mxu0 %v3247
    %v3249 = vand.u32 %v2974, 4294901760
    %v3250 = vsub.f32 %v2974, %v3249
    %3251 = vmatpush.msra.mxu0 %v3250
    %v3252 = vand.u32 %v2973, 4294901760
    %v3253 = vsub.f32 %v2973, %v3252
    %3254 = vmatpush.msra.mxu0 %v3253
    %v3255 = vand.u32 %v2972, 4294901760
    %v3256 = vsub.f32 %v2972, %v3255
    %3257 = vmatpush.msra.mxu0 %v3256
    %v3258 = vand.u32 %v2971, 4294901760
    %v3259 = vsub.f32 %v2971, %v3258
    %3260 = vmatpush.msra.mxu0 %v3259
    %v3261 = vand.u32 %v2970, 4294901760
    %v3262 = vsub.f32 %v2970, %v3261
    %3263 = vmatpush.msra.mxu0 %v3262
    %v3264 = vand.u32 %v2969, 4294901760
    %v3265 = vsub.f32 %v2969, %v3264
    %3266 = vmatpush.msra.mxu0 %v3265
    %v3267 = vand.u32 %v2968, 4294901760
    %v3268 = vsub.f32 %v2968, %v3267
    %3269 = vmatpush.msra.mxu0 %v3268
    %v3270 = vand.u32 %v2967, 4294901760
    %v3271 = vsub.f32 %v2967, %v3270
    %3272 = vmatpush.msra.mxu0 %v3271
    %v3273 = vand.u32 %v2966, 4294901760
    %v3274 = vsub.f32 %v2966, %v3273
    %3275 = vmatpush.msra.mxu0 %v3274
    %v3276 = vand.u32 %v2965, 4294901760
    %v3277 = vsub.f32 %v2965, %v3276
    %3278 = vmatpush.msra.mxu0 %v3277
    %v3279 = vand.u32 %v2964, 4294901760
    %v3280 = vsub.f32 %v2964, %v3279
    %3281 = vmatpush.msra.mxu0 %v3280
    %v3282 = vand.u32 %v2963, 4294901760
    %v3283 = vsub.f32 %v2963, %v3282
    %3284 = vmatpush.msra.mxu0 %v3283
    %v3285 = vand.u32 %v2955, 4294901760
    %v3286 = vsub.f32 %v2955, %v3285
    %3287 = vmatmul.f32.gmra.mxu0 %v3286
    %v3288 = vpop.f32.mrf.mxu0
    %v3289 = vadd.f32 %v3235, %v3288
    %3290 = vdwg.mxu0
    %v3291 = vand.u32 %v2978, 4294901760
    %3292 = vmatpush.msra.mxu0 %v3291
    %v3293 = vand.u32 %v2977, 4294901760
    %3294 = vmatpush.msra.mxu0 %v3293
    %v3295 = vand.u32 %v2976, 4294901760
    %3296 = vmatpush.msra.mxu0 %v3295
    %v3297 = vand.u32 %v2975, 4294901760
    %3298 = vmatpush.msra.mxu0 %v3297
    %v3299 = vand.u32 %v2974, 4294901760
    %3300 = vmatpush.msra.mxu0 %v3299
    %v3301 = vand.u32 %v2973, 4294901760
    %3302 = vmatpush.msra.mxu0 %v3301
    %v3303 = vand.u32 %v2972, 4294901760
    %3304 = vmatpush.msra.mxu0 %v3303
    %v3305 = vand.u32 %v2971, 4294901760
    %3306 = vmatpush.msra.mxu0 %v3305
    %v3307 = vand.u32 %v2970, 4294901760
    %3308 = vmatpush.msra.mxu0 %v3307
    %v3309 = vand.u32 %v2969, 4294901760
    %3310 = vmatpush.msra.mxu0 %v3309
    %v3311 = vand.u32 %v2968, 4294901760
    %3312 = vmatpush.msra.mxu0 %v3311
    %v3313 = vand.u32 %v2967, 4294901760
    %3314 = vmatpush.msra.mxu0 %v3313
    %v3315 = vand.u32 %v2966, 4294901760
    %3316 = vmatpush.msra.mxu0 %v3315
    %v3317 = vand.u32 %v2965, 4294901760
    %3318 = vmatpush.msra.mxu0 %v3317
    %v3319 = vand.u32 %v2964, 4294901760
    %3320 = vmatpush.msra.mxu0 %v3319
    %v3321 = vand.u32 %v2963, 4294901760
    %3322 = vmatpush.msra.mxu0 %v3321
    %v3323 = vand.u32 %v2955, 4294901760
    %v3324 = vsub.f32 %v2955, %v3323
    %v3325 = vand.u32 %v3324, 4294901760
    %3326 = vmatmul.f32.gmra.mxu0 %v3325
    %v3327 = vpop.f32.mrf.mxu0
    %v3328 = vadd.f32 %v3289, %v3327
    %3329 = vdwg.mxu0
    %v3330 = vand.u32 %v2978, 4294901760
    %v3331 = vsub.f32 %v2978, %v3330
    %v3332 = vand.u32 %v3331, 4294901760
    %3333 = vmatpush.msra.mxu0 %v3332
    %v3334 = vand.u32 %v2977, 4294901760
    %v3335 = vsub.f32 %v2977, %v3334
    %v3336 = vand.u32 %v3335, 4294901760
    %3337 = vmatpush.msra.mxu0 %v3336
    %v3338 = vand.u32 %v2976, 4294901760
    %v3339 = vsub.f32 %v2976, %v3338
    %v3340 = vand.u32 %v3339, 4294901760
    %3341 = vmatpush.msra.mxu0 %v3340
    %v3342 = vand.u32 %v2975, 4294901760
    %v3343 = vsub.f32 %v2975, %v3342
    %v3344 = vand.u32 %v3343, 4294901760
    %3345 = vmatpush.msra.mxu0 %v3344
    %v3346 = vand.u32 %v2974, 4294901760
    %v3347 = vsub.f32 %v2974, %v3346
    %v3348 = vand.u32 %v3347, 4294901760
    %3349 = vmatpush.msra.mxu0 %v3348
    %v3350 = vand.u32 %v2973, 4294901760
    %v3351 = vsub.f32 %v2973, %v3350
    %v3352 = vand.u32 %v3351, 4294901760
    %3353 = vmatpush.msra.mxu0 %v3352
    %v3354 = vand.u32 %v2972, 4294901760
    %v3355 = vsub.f32 %v2972, %v3354
    %v3356 = vand.u32 %v3355, 4294901760
    %3357 = vmatpush.msra.mxu0 %v3356
    %v3358 = vand.u32 %v2971, 4294901760
    %v3359 = vsub.f32 %v2971, %v3358
    %v3360 = vand.u32 %v3359, 4294901760
    %3361 = vmatpush.msra.mxu0 %v3360
    %v3362 = vand.u32 %v2970, 4294901760
    %v3363 = vsub.f32 %v2970, %v3362
    %v3364 = vand.u32 %v3363, 4294901760
    %3365 = vmatpush.msra.mxu0 %v3364
    %v3366 = vand.u32 %v2969, 4294901760
    %v3367 = vsub.f32 %v2969, %v3366
    %v3368 = vand.u32 %v3367, 4294901760
    %3369 = vmatpush.msra.mxu0 %v3368
    %v3370 = vand.u32 %v2968, 4294901760
    %v3371 = vsub.f32 %v2968, %v3370
    %v3372 = vand.u32 %v3371, 4294901760
    %3373 = vmatpush.msra.mxu0 %v3372
    %v3374 = vand.u32 %v2967, 4294901760
    %v3375 = vsub.f32 %v2967, %v3374
    %v3376 = vand.u32 %v3375, 4294901760
    %3377 = vmatpush.msra.mxu0 %v3376
    %v3378 = vand.u32 %v2966, 4294901760
    %v3379 = vsub.f32 %v2966, %v3378
    %v3380 = vand.u32 %v3379, 4294901760
    %3381 = vmatpush.msra.mxu0 %v3380
    %v3382 = vand.u32 %v2965, 4294901760
    %v3383 = vsub.f32 %v2965, %v3382
    %v3384 = vand.u32 %v3383, 4294901760
    %3385 = vmatpush.msra.mxu0 %v3384
    %v3386 = vand.u32 %v2964, 4294901760
    %v3387 = vsub.f32 %v2964, %v3386
    %v3388 = vand.u32 %v3387, 4294901760
    %3389 = vmatpush.msra.mxu0 %v3388
    %v3390 = vand.u32 %v2963, 4294901760
    %v3391 = vsub.f32 %v2963, %v3390
    %v3392 = vand.u32 %v3391, 4294901760
    %3393 = vmatpush.msra.mxu0 %v3392
    %v3394 = vand.u32 %v2955, 4294901760
    %3395 = vmatmul.f32.gmra.mxu0 %v3394
    %v3396 = vpop.f32.mrf.mxu0
    %v3397 = vadd.f32 %v3328, %v3396
    %3398 = vdwg.mxu0
    %v3399 = vand.u32 %v2978, 4294901760
    %3400 = vmatpush.msra.mxu0 %v3399
    %v3401 = vand.u32 %v2977, 4294901760
    %3402 = vmatpush.msra.mxu0 %v3401
    %v3403 = vand.u32 %v2976, 4294901760
    %3404 = vmatpush.msra.mxu0 %v3403
    %v3405 = vand.u32 %v2975, 4294901760
    %3406 = vmatpush.msra.mxu0 %v3405
    %v3407 = vand.u32 %v2974, 4294901760
    %3408 = vmatpush.msra.mxu0 %v3407
    %v3409 = vand.u32 %v2973, 4294901760
    %3410 = vmatpush.msra.mxu0 %v3409
    %v3411 = vand.u32 %v2972, 4294901760
    %3412 = vmatpush.msra.mxu0 %v3411
    %v3413 = vand.u32 %v2971, 4294901760
    %3414 = vmatpush.msra.mxu0 %v3413
    %v3415 = vand.u32 %v2970, 4294901760
    %3416 = vmatpush.msra.mxu0 %v3415
    %v3417 = vand.u32 %v2969, 4294901760
    %3418 = vmatpush.msra.mxu0 %v3417
    %v3419 = vand.u32 %v2968, 4294901760
    %3420 = vmatpush.msra.mxu0 %v3419
    %v3421 = vand.u32 %v2967, 4294901760
    %3422 = vmatpush.msra.mxu0 %v3421
    %v3423 = vand.u32 %v2966, 4294901760
    %3424 = vmatpush.msra.mxu0 %v3423
    %v3425 = vand.u32 %v2965, 4294901760
    %3426 = vmatpush.msra.mxu0 %v3425
    %v3427 = vand.u32 %v2964, 4294901760
    %3428 = vmatpush.msra.mxu0 %v3427
    %v3429 = vand.u32 %v2963, 4294901760
    %3430 = vmatpush.msra.mxu0 %v3429
    %v3431 = vand.u32 %v2955, 4294901760
    %3432 = vmatmul.f32.gmra.mxu0 %v3431
    %v3433 = vpop.f32.mrf.mxu0
    %v3434 = vadd.f32 %v3397, %v3433
    %3435 = vdwg.mxu0
    %v3436 = vand.u32 %v2994, 4294901760
    %3437 = vmatpush.msra.mxu0 %v3436
    %v3438 = vand.u32 %v2993, 4294901760
    %3439 = vmatpush.msra.mxu0 %v3438
    %v3440 = vand.u32 %v2992, 4294901760
    %3441 = vmatpush.msra.mxu0 %v3440
    %v3442 = vand.u32 %v2991, 4294901760
    %3443 = vmatpush.msra.mxu0 %v3442
    %v3444 = vand.u32 %v2990, 4294901760
    %3445 = vmatpush.msra.mxu0 %v3444
    %v3446 = vand.u32 %v2989, 4294901760
    %3447 = vmatpush.msra.mxu0 %v3446
    %v3448 = vand.u32 %v2988, 4294901760
    %3449 = vmatpush.msra.mxu0 %v3448
    %v3450 = vand.u32 %v2987, 4294901760
    %3451 = vmatpush.msra.mxu0 %v3450
    %v3452 = vand.u32 %v2986, 4294901760
    %3453 = vmatpush.msra.mxu0 %v3452
    %v3454 = vand.u32 %v2985, 4294901760
    %3455 = vmatpush.msra.mxu0 %v3454
    %v3456 = vand.u32 %v2984, 4294901760
    %3457 = vmatpush.msra.mxu0 %v3456
    %v3458 = vand.u32 %v2983, 4294901760
    %3459 = vmatpush.msra.mxu0 %v3458
    %v3460 = vand.u32 %v2982, 4294901760
    %3461 = vmatpush.msra.mxu0 %v3460
    %v3462 = vand.u32 %v2981, 4294901760
    %3463 = vmatpush.msra.mxu0 %v3462
    %v3464 = vand.u32 %v2980, 4294901760
    %3465 = vmatpush.msra.mxu0 %v3464
    %v3466 = vand.u32 %v2979, 4294901760
    %3467 = vmatpush.msra.mxu0 %v3466
    %v3468 = vand.u32 %v2956, 4294901760
    %v3469 = vsub.f32 %v2956, %v3468
    %v3470 = vand.u32 %v3469, 4294901760
    %v3471 = vsub.f32 %v3469, %v3470
    %v3472 = vand.u32 %v3471, 4294901760
    %3473 = vmatmul.f32.gmra.mxu0 %v3472
    %v3474 = vpop.f32.mrf.mxu0
    %v3475 = vadd.f32 %v3434, %v3474
    %3476 = vdwg.mxu0
    %v3477 = vand.u32 %v2994, 4294901760
    %v3478 = vsub.f32 %v2994, %v3477
    %v3479 = vand.u32 %v3478, 4294901760
    %v3480 = vsub.f32 %v3478, %v3479
    %v3481 = vand.u32 %v3480, 4294901760
    %3482 = vmatpush.msra.mxu0 %v3481
    %v3483 = vand.u32 %v2993, 4294901760
    %v3484 = vsub.f32 %v2993, %v3483
    %v3485 = vand.u32 %v3484, 4294901760
    %v3486 = vsub.f32 %v3484, %v3485
    %v3487 = vand.u32 %v3486, 4294901760
    %3488 = vmatpush.msra.mxu0 %v3487
    %v3489 = vand.u32 %v2992, 4294901760
    %v3490 = vsub.f32 %v2992, %v3489
    %v3491 = vand.u32 %v3490, 4294901760
    %v3492 = vsub.f32 %v3490, %v3491
    %v3493 = vand.u32 %v3492, 4294901760
    %3494 = vmatpush.msra.mxu0 %v3493
    %v3495 = vand.u32 %v2991, 4294901760
    %v3496 = vsub.f32 %v2991, %v3495
    %v3497 = vand.u32 %v3496, 4294901760
    %v3498 = vsub.f32 %v3496, %v3497
    %v3499 = vand.u32 %v3498, 4294901760
    %3500 = vmatpush.msra.mxu0 %v3499
    %v3501 = vand.u32 %v2990, 4294901760
    %v3502 = vsub.f32 %v2990, %v3501
    %v3503 = vand.u32 %v3502, 4294901760
    %v3504 = vsub.f32 %v3502, %v3503
    %v3505 = vand.u32 %v3504, 4294901760
    %3506 = vmatpush.msra.mxu0 %v3505
    %v3507 = vand.u32 %v2989, 4294901760
    %v3508 = vsub.f32 %v2989, %v3507
    %v3509 = vand.u32 %v3508, 4294901760
    %v3510 = vsub.f32 %v3508, %v3509
    %v3511 = vand.u32 %v3510, 4294901760
    %3512 = vmatpush.msra.mxu0 %v3511
    %v3513 = vand.u32 %v2988, 4294901760
    %v3514 = vsub.f32 %v2988, %v3513
    %v3515 = vand.u32 %v3514, 4294901760
    %v3516 = vsub.f32 %v3514, %v3515
    %v3517 = vand.u32 %v3516, 4294901760
    %3518 = vmatpush.msra.mxu0 %v3517
    %v3519 = vand.u32 %v2987, 4294901760
    %v3520 = vsub.f32 %v2987, %v3519
    %v3521 = vand.u32 %v3520, 4294901760
    %v3522 = vsub.f32 %v3520, %v3521
    %v3523 = vand.u32 %v3522, 4294901760
    %3524 = vmatpush.msra.mxu0 %v3523
    %v3525 = vand.u32 %v2986, 4294901760
    %v3526 = vsub.f32 %v2986, %v3525
    %v3527 = vand.u32 %v3526, 4294901760
    %v3528 = vsub.f32 %v3526, %v3527
    %v3529 = vand.u32 %v3528, 4294901760
    %3530 = vmatpush.msra.mxu0 %v3529
    %v3531 = vand.u32 %v2985, 4294901760
    %v3532 = vsub.f32 %v2985, %v3531
    %v3533 = vand.u32 %v3532, 4294901760
    %v3534 = vsub.f32 %v3532, %v3533
    %v3535 = vand.u32 %v3534, 4294901760
    %3536 = vmatpush.msra.mxu0 %v3535
    %v3537 = vand.u32 %v2984, 4294901760
    %v3538 = vsub.f32 %v2984, %v3537
    %v3539 = vand.u32 %v3538, 4294901760
    %v3540 = vsub.f32 %v3538, %v3539
    %v3541 = vand.u32 %v3540, 4294901760
    %3542 = vmatpush.msra.mxu0 %v3541
    %v3543 = vand.u32 %v2983, 4294901760
    %v3544 = vsub.f32 %v2983, %v3543
    %v3545 = vand.u32 %v3544, 4294901760
    %v3546 = vsub.f32 %v3544, %v3545
    %v3547 = vand.u32 %v3546, 4294901760
    %3548 = vmatpush.msra.mxu0 %v3547
    %v3549 = vand.u32 %v2982, 4294901760
    %v3550 = vsub.f32 %v2982, %v3549
    %v3551 = vand.u32 %v3550, 4294901760
    %v3552 = vsub.f32 %v3550, %v3551
    %v3553 = vand.u32 %v3552, 4294901760
    %3554 = vmatpush.msra.mxu0 %v3553
    %v3555 = vand.u32 %v2981, 4294901760
    %v3556 = vsub.f32 %v2981, %v3555
    %v3557 = vand.u32 %v3556, 4294901760
    %v3558 = vsub.f32 %v3556, %v3557
    %v3559 = vand.u32 %v3558, 4294901760
    %3560 = vmatpush.msra.mxu0 %v3559
    %v3561 = vand.u32 %v2980, 4294901760
    %v3562 = vsub.f32 %v2980, %v3561
    %v3563 = vand.u32 %v3562, 4294901760
    %v3564 = vsub.f32 %v3562, %v3563
    %v3565 = vand.u32 %v3564, 4294901760
    %3566 = vmatpush.msra.mxu0 %v3565
    %v3567 = vand.u32 %v2979, 4294901760
    %v3568 = vsub.f32 %v2979, %v3567
    %v3569 = vand.u32 %v3568, 4294901760
    %v3570 = vsub.f32 %v3568, %v3569
    %v3571 = vand.u32 %v3570, 4294901760
    %3572 = vmatpush.msra.mxu0 %v3571
    %v3573 = vand.u32 %v2956, 4294901760
    %3574 = vmatmul.f32.gmra.mxu0 %v3573
    %v3575 = vpop.f32.mrf.mxu0
    %v3576 = vadd.f32 %v3475, %v3575
    %3577 = vdwg.mxu0
    %v3578 = vand.u32 %v2994, 4294901760
    %v3579 = vsub.f32 %v2994, %v3578
    %3580 = vmatpush.msra.mxu0 %v3579
    %v3581 = vand.u32 %v2993, 4294901760
    %v3582 = vsub.f32 %v2993, %v3581
    %3583 = vmatpush.msra.mxu0 %v3582
    %v3584 = vand.u32 %v2992, 4294901760
    %v3585 = vsub.f32 %v2992, %v3584
    %3586 = vmatpush.msra.mxu0 %v3585
    %v3587 = vand.u32 %v2991, 4294901760
    %v3588 = vsub.f32 %v2991, %v3587
    %3589 = vmatpush.msra.mxu0 %v3588
    %v3590 = vand.u32 %v2990, 4294901760
    %v3591 = vsub.f32 %v2990, %v3590
    %3592 = vmatpush.msra.mxu0 %v3591
    %v3593 = vand.u32 %v2989, 4294901760
    %v3594 = vsub.f32 %v2989, %v3593
    %3595 = vmatpush.msra.mxu0 %v3594
    %v3596 = vand.u32 %v2988, 4294901760
    %v3597 = vsub.f32 %v2988, %v3596
    %3598 = vmatpush.msra.mxu0 %v3597
    %v3599 = vand.u32 %v2987, 4294901760
    %v3600 = vsub.f32 %v2987, %v3599
    %3601 = vmatpush.msra.mxu0 %v3600
    %v3602 = vand.u32 %v2986, 4294901760
    %v3603 = vsub.f32 %v2986, %v3602
    %3604 = vmatpush.msra.mxu0 %v3603
    %v3605 = vand.u32 %v2985, 4294901760
    %v3606 = vsub.f32 %v2985, %v3605
    %3607 = vmatpush.msra.mxu0 %v3606
    %v3608 = vand.u32 %v2984, 4294901760
    %v3609 = vsub.f32 %v2984, %v3608
    %3610 = vmatpush.msra.mxu0 %v3609
    %v3611 = vand.u32 %v2983, 4294901760
    %v3612 = vsub.f32 %v2983, %v3611
    %3613 = vmatpush.msra.mxu0 %v3612
    %v3614 = vand.u32 %v2982, 4294901760
    %v3615 = vsub.f32 %v2982, %v3614
    %3616 = vmatpush.msra.mxu0 %v3615
    %v3617 = vand.u32 %v2981, 4294901760
    %v3618 = vsub.f32 %v2981, %v3617
    %3619 = vmatpush.msra.mxu0 %v3618
    %v3620 = vand.u32 %v2980, 4294901760
    %v3621 = vsub.f32 %v2980, %v3620
    %3622 = vmatpush.msra.mxu0 %v3621
    %v3623 = vand.u32 %v2979, 4294901760
    %v3624 = vsub.f32 %v2979, %v3623
    %3625 = vmatpush.msra.mxu0 %v3624
    %v3626 = vand.u32 %v2956, 4294901760
    %v3627 = vsub.f32 %v2956, %v3626
    %3628 = vmatmul.f32.gmra.mxu0 %v3627
    %v3629 = vpop.f32.mrf.mxu0
    %v3630 = vadd.f32 %v3576, %v3629
    %3631 = vdwg.mxu0
    %v3632 = vand.u32 %v2994, 4294901760
    %3633 = vmatpush.msra.mxu0 %v3632
    %v3634 = vand.u32 %v2993, 4294901760
    %3635 = vmatpush.msra.mxu0 %v3634
    %v3636 = vand.u32 %v2992, 4294901760
    %3637 = vmatpush.msra.mxu0 %v3636
    %v3638 = vand.u32 %v2991, 4294901760
    %3639 = vmatpush.msra.mxu0 %v3638
    %v3640 = vand.u32 %v2990, 4294901760
    %3641 = vmatpush.msra.mxu0 %v3640
    %v3642 = vand.u32 %v2989, 4294901760
    %3643 = vmatpush.msra.mxu0 %v3642
    %v3644 = vand.u32 %v2988, 4294901760
    %3645 = vmatpush.msra.mxu0 %v3644
    %v3646 = vand.u32 %v2987, 4294901760
    %3647 = vmatpush.msra.mxu0 %v3646
    %v3648 = vand.u32 %v2986, 4294901760
    %3649 = vmatpush.msra.mxu0 %v3648
    %v3650 = vand.u32 %v2985, 4294901760
    %3651 = vmatpush.msra.mxu0 %v3650
    %v3652 = vand.u32 %v2984, 4294901760
    %3653 = vmatpush.msra.mxu0 %v3652
    %v3654 = vand.u32 %v2983, 4294901760
    %3655 = vmatpush.msra.mxu0 %v3654
    %v3656 = vand.u32 %v2982, 4294901760
    %3657 = vmatpush.msra.mxu0 %v3656
    %v3658 = vand.u32 %v2981, 4294901760
    %3659 = vmatpush.msra.mxu0 %v3658
    %v3660 = vand.u32 %v2980, 4294901760
    %3661 = vmatpush.msra.mxu0 %v3660
    %v3662 = vand.u32 %v2979, 4294901760
    %3663 = vmatpush.msra.mxu0 %v3662
    %v3664 = vand.u32 %v2956, 4294901760
    %v3665 = vsub.f32 %v2956, %v3664
    %v3666 = vand.u32 %v3665, 4294901760
    %3667 = vmatmul.f32.gmra.mxu0 %v3666
    %v3668 = vpop.f32.mrf.mxu0
    %v3669 = vadd.f32 %v3630, %v3668
    %3670 = vdwg.mxu0
    %v3671 = vand.u32 %v2994, 4294901760
    %v3672 = vsub.f32 %v2994, %v3671
    %v3673 = vand.u32 %v3672, 4294901760
    %3674 = vmatpush.msra.mxu0 %v3673
    %v3675 = vand.u32 %v2993, 4294901760
    %v3676 = vsub.f32 %v2993, %v3675
    %v3677 = vand.u32 %v3676, 4294901760
    %3678 = vmatpush.msra.mxu0 %v3677
    %v3679 = vand.u32 %v2992, 4294901760
    %v3680 = vsub.f32 %v2992, %v3679
    %v3681 = vand.u32 %v3680, 4294901760
    %3682 = vmatpush.msra.mxu0 %v3681
    %v3683 = vand.u32 %v2991, 4294901760
    %v3684 = vsub.f32 %v2991, %v3683
    %v3685 = vand.u32 %v3684, 4294901760
    %3686 = vmatpush.msra.mxu0 %v3685
    %v3687 = vand.u32 %v2990, 4294901760
    %v3688 = vsub.f32 %v2990, %v3687
    %v3689 = vand.u32 %v3688, 4294901760
    %3690 = vmatpush.msra.mxu0 %v3689
    %v3691 = vand.u32 %v2989, 4294901760
    %v3692 = vsub.f32 %v2989, %v3691
    %v3693 = vand.u32 %v3692, 4294901760
    %3694 = vmatpush.msra.mxu0 %v3693
    %v3695 = vand.u32 %v2988, 4294901760
    %v3696 = vsub.f32 %v2988, %v3695
    %v3697 = vand.u32 %v3696, 4294901760
    %3698 = vmatpush.msra.mxu0 %v3697
    %v3699 = vand.u32 %v2987, 4294901760
    %v3700 = vsub.f32 %v2987, %v3699
    %v3701 = vand.u32 %v3700, 4294901760
    %3702 = vmatpush.msra.mxu0 %v3701
    %v3703 = vand.u32 %v2986, 4294901760
    %v3704 = vsub.f32 %v2986, %v3703
    %v3705 = vand.u32 %v3704, 4294901760
    %3706 = vmatpush.msra.mxu0 %v3705
    %v3707 = vand.u32 %v2985, 4294901760
    %v3708 = vsub.f32 %v2985, %v3707
    %v3709 = vand.u32 %v3708, 4294901760
    %3710 = vmatpush.msra.mxu0 %v3709
    %v3711 = vand.u32 %v2984, 4294901760
    %v3712 = vsub.f32 %v2984, %v3711
    %v3713 = vand.u32 %v3712, 4294901760
    %3714 = vmatpush.msra.mxu0 %v3713
    %v3715 = vand.u32 %v2983, 4294901760
    %v3716 = vsub.f32 %v2983, %v3715
    %v3717 = vand.u32 %v3716, 4294901760
    %3718 = vmatpush.msra.mxu0 %v3717
    %v3719 = vand.u32 %v2982, 4294901760
    %v3720 = vsub.f32 %v2982, %v3719
    %v3721 = vand.u32 %v3720, 4294901760
    %3722 = vmatpush.msra.mxu0 %v3721
    %v3723 = vand.u32 %v2981, 4294901760
    %v3724 = vsub.f32 %v2981, %v3723
    %v3725 = vand.u32 %v3724, 4294901760
    %3726 = vmatpush.msra.mxu0 %v3725
    %v3727 = vand.u32 %v2980, 4294901760
    %v3728 = vsub.f32 %v2980, %v3727
    %v3729 = vand.u32 %v3728, 4294901760
    %3730 = vmatpush.msra.mxu0 %v3729
    %v3731 = vand.u32 %v2979, 4294901760
    %v3732 = vsub.f32 %v2979, %v3731
    %v3733 = vand.u32 %v3732, 4294901760
    %3734 = vmatpush.msra.mxu0 %v3733
    %v3735 = vand.u32 %v2956, 4294901760
    %3736 = vmatmul.f32.gmra.mxu0 %v3735
    %v3737 = vpop.f32.mrf.mxu0
    %v3738 = vadd.f32 %v3669, %v3737
    %3739 = vdwg.mxu0
    %v3740 = vand.u32 %v2994, 4294901760
    %3741 = vmatpush.msra.mxu0 %v3740
    %v3742 = vand.u32 %v2993, 4294901760
    %3743 = vmatpush.msra.mxu0 %v3742
    %v3744 = vand.u32 %v2992, 4294901760
    %3745 = vmatpush.msra.mxu0 %v3744
    %v3746 = vand.u32 %v2991, 4294901760
    %3747 = vmatpush.msra.mxu0 %v3746
    %v3748 = vand.u32 %v2990, 4294901760
    %3749 = vmatpush.msra.mxu0 %v3748
    %v3750 = vand.u32 %v2989, 4294901760
    %3751 = vmatpush.msra.mxu0 %v3750
    %v3752 = vand.u32 %v2988, 4294901760
    %3753 = vmatpush.msra.mxu0 %v3752
    %v3754 = vand.u32 %v2987, 4294901760
    %3755 = vmatpush.msra.mxu0 %v3754
    %v3756 = vand.u32 %v2986, 4294901760
    %3757 = vmatpush.msra.mxu0 %v3756
    %v3758 = vand.u32 %v2985, 4294901760
    %3759 = vmatpush.msra.mxu0 %v3758
    %v3760 = vand.u32 %v2984, 4294901760
    %3761 = vmatpush.msra.mxu0 %v3760
    %v3762 = vand.u32 %v2983, 4294901760
    %3763 = vmatpush.msra.mxu0 %v3762
    %v3764 = vand.u32 %v2982, 4294901760
    %3765 = vmatpush.msra.mxu0 %v3764
    %v3766 = vand.u32 %v2981, 4294901760
    %3767 = vmatpush.msra.mxu0 %v3766
    %v3768 = vand.u32 %v2980, 4294901760
    %3769 = vmatpush.msra.mxu0 %v3768
    %v3770 = vand.u32 %v2979, 4294901760
    %3771 = vmatpush.msra.mxu0 %v3770
    %v3772 = vand.u32 %v2956, 4294901760
    %3773 = vmatmul.f32.gmra.mxu0 %v3772
    %v3774 = vpop.f32.mrf.mxu0
    %v3775 = vadd.f32 %v3738, %v3774
    %3776 = vdwg.mxu0
    %v3777 = vand.u32 %v3010, 4294901760
    %3778 = vmatpush.msra.mxu0 %v3777
    %v3779 = vand.u32 %v3009, 4294901760
    %3780 = vmatpush.msra.mxu0 %v3779
    %v3781 = vand.u32 %v3008, 4294901760
    %3782 = vmatpush.msra.mxu0 %v3781
    %v3783 = vand.u32 %v3007, 4294901760
    %3784 = vmatpush.msra.mxu0 %v3783
    %v3785 = vand.u32 %v3006, 4294901760
    %3786 = vmatpush.msra.mxu0 %v3785
    %v3787 = vand.u32 %v3005, 4294901760
    %3788 = vmatpush.msra.mxu0 %v3787
    %v3789 = vand.u32 %v3004, 4294901760
    %3790 = vmatpush.msra.mxu0 %v3789
    %v3791 = vand.u32 %v3003, 4294901760
    %3792 = vmatpush.msra.mxu0 %v3791
    %v3793 = vand.u32 %v3002, 4294901760
    %3794 = vmatpush.msra.mxu0 %v3793
    %v3795 = vand.u32 %v3001, 4294901760
    %3796 = vmatpush.msra.mxu0 %v3795
    %v3797 = vand.u32 %v3000, 4294901760
    %3798 = vmatpush.msra.mxu0 %v3797
    %v3799 = vand.u32 %v2999, 4294901760
    %3800 = vmatpush.msra.mxu0 %v3799
    %v3801 = vand.u32 %v2998, 4294901760
    %3802 = vmatpush.msra.mxu0 %v3801
    %v3803 = vand.u32 %v2997, 4294901760
    %3804 = vmatpush.msra.mxu0 %v3803
    %v3805 = vand.u32 %v2996, 4294901760
    %3806 = vmatpush.msra.mxu0 %v3805
    %v3807 = vand.u32 %v2995, 4294901760
    %3808 = vmatpush.msra.mxu0 %v3807
    %v3809 = vand.u32 %v2957, 4294901760
    %v3810 = vsub.f32 %v2957, %v3809
    %v3811 = vand.u32 %v3810, 4294901760
    %v3812 = vsub.f32 %v3810, %v3811
    %v3813 = vand.u32 %v3812, 4294901760
    %3814 = vmatmul.f32.gmra.mxu0 %v3813
    %v3815 = vpop.f32.mrf.mxu0
    %v3816 = vadd.f32 %v3775, %v3815
    %3817 = vdwg.mxu0
    %v3818 = vand.u32 %v3010, 4294901760
    %v3819 = vsub.f32 %v3010, %v3818
    %v3820 = vand.u32 %v3819, 4294901760
    %v3821 = vsub.f32 %v3819, %v3820
    %v3822 = vand.u32 %v3821, 4294901760
    %3823 = vmatpush.msra.mxu0 %v3822
    %v3824 = vand.u32 %v3009, 4294901760
    %v3825 = vsub.f32 %v3009, %v3824
    %v3826 = vand.u32 %v3825, 4294901760
    %v3827 = vsub.f32 %v3825, %v3826
    %v3828 = vand.u32 %v3827, 4294901760
    %3829 = vmatpush.msra.mxu0 %v3828
    %v3830 = vand.u32 %v3008, 4294901760
    %v3831 = vsub.f32 %v3008, %v3830
    %v3832 = vand.u32 %v3831, 4294901760
    %v3833 = vsub.f32 %v3831, %v3832
    %v3834 = vand.u32 %v3833, 4294901760
    %3835 = vmatpush.msra.mxu0 %v3834
    %v3836 = vand.u32 %v3007, 4294901760
    %v3837 = vsub.f32 %v3007, %v3836
    %v3838 = vand.u32 %v3837, 4294901760
    %v3839 = vsub.f32 %v3837, %v3838
    %v3840 = vand.u32 %v3839, 4294901760
    %3841 = vmatpush.msra.mxu0 %v3840
    %v3842 = vand.u32 %v3006, 4294901760
    %v3843 = vsub.f32 %v3006, %v3842
    %v3844 = vand.u32 %v3843, 4294901760
    %v3845 = vsub.f32 %v3843, %v3844
    %v3846 = vand.u32 %v3845, 4294901760
    %3847 = vmatpush.msra.mxu0 %v3846
    %v3848 = vand.u32 %v3005, 4294901760
    %v3849 = vsub.f32 %v3005, %v3848
    %v3850 = vand.u32 %v3849, 4294901760
    %v3851 = vsub.f32 %v3849, %v3850
    %v3852 = vand.u32 %v3851, 4294901760
    %3853 = vmatpush.msra.mxu0 %v3852
    %v3854 = vand.u32 %v3004, 4294901760
    %v3855 = vsub.f32 %v3004, %v3854
    %v3856 = vand.u32 %v3855, 4294901760
    %v3857 = vsub.f32 %v3855, %v3856
    %v3858 = vand.u32 %v3857, 4294901760
    %3859 = vmatpush.msra.mxu0 %v3858
    %v3860 = vand.u32 %v3003, 4294901760
    %v3861 = vsub.f32 %v3003, %v3860
    %v3862 = vand.u32 %v3861, 4294901760
    %v3863 = vsub.f32 %v3861, %v3862
    %v3864 = vand.u32 %v3863, 4294901760
    %3865 = vmatpush.msra.mxu0 %v3864
    %v3866 = vand.u32 %v3002, 4294901760
    %v3867 = vsub.f32 %v3002, %v3866
    %v3868 = vand.u32 %v3867, 4294901760
    %v3869 = vsub.f32 %v3867, %v3868
    %v3870 = vand.u32 %v3869, 4294901760
    %3871 = vmatpush.msra.mxu0 %v3870
    %v3872 = vand.u32 %v3001, 4294901760
    %v3873 = vsub.f32 %v3001, %v3872
    %v3874 = vand.u32 %v3873, 4294901760
    %v3875 = vsub.f32 %v3873, %v3874
    %v3876 = vand.u32 %v3875, 4294901760
    %3877 = vmatpush.msra.mxu0 %v3876
    %v3878 = vand.u32 %v3000, 4294901760
    %v3879 = vsub.f32 %v3000, %v3878
    %v3880 = vand.u32 %v3879, 4294901760
    %v3881 = vsub.f32 %v3879, %v3880
    %v3882 = vand.u32 %v3881, 4294901760
    %3883 = vmatpush.msra.mxu0 %v3882
    %v3884 = vand.u32 %v2999, 4294901760
    %v3885 = vsub.f32 %v2999, %v3884
    %v3886 = vand.u32 %v3885, 4294901760
    %v3887 = vsub.f32 %v3885, %v3886
    %v3888 = vand.u32 %v3887, 4294901760
    %3889 = vmatpush.msra.mxu0 %v3888
    %v3890 = vand.u32 %v2998, 4294901760
    %v3891 = vsub.f32 %v2998, %v3890
    %v3892 = vand.u32 %v3891, 4294901760
    %v3893 = vsub.f32 %v3891, %v3892
    %v3894 = vand.u32 %v3893, 4294901760
    %3895 = vmatpush.msra.mxu0 %v3894
    %v3896 = vand.u32 %v2997, 4294901760
    %v3897 = vsub.f32 %v2997, %v3896
    %v3898 = vand.u32 %v3897, 4294901760
    %v3899 = vsub.f32 %v3897, %v3898
    %v3900 = vand.u32 %v3899, 4294901760
    %3901 = vmatpush.msra.mxu0 %v3900
    %v3902 = vand.u32 %v2996, 4294901760
    %v3903 = vsub.f32 %v2996, %v3902
    %v3904 = vand.u32 %v3903, 4294901760
    %v3905 = vsub.f32 %v3903, %v3904
    %v3906 = vand.u32 %v3905, 4294901760
    %3907 = vmatpush.msra.mxu0 %v3906
    %v3908 = vand.u32 %v2995, 4294901760
    %v3909 = vsub.f32 %v2995, %v3908
    %v3910 = vand.u32 %v3909, 4294901760
    %v3911 = vsub.f32 %v3909, %v3910
    %v3912 = vand.u32 %v3911, 4294901760
    %3913 = vmatpush.msra.mxu0 %v3912
    %v3914 = vand.u32 %v2957, 4294901760
    %3915 = vmatmul.f32.gmra.mxu0 %v3914
    %v3916 = vpop.f32.mrf.mxu0
    %v3917 = vadd.f32 %v3816, %v3916
    %3918 = vdwg.mxu0
    %v3919 = vand.u32 %v3010, 4294901760
    %v3920 = vsub.f32 %v3010, %v3919
    %3921 = vmatpush.msra.mxu0 %v3920
    %v3922 = vand.u32 %v3009, 4294901760
    %v3923 = vsub.f32 %v3009, %v3922
    %3924 = vmatpush.msra.mxu0 %v3923
    %v3925 = vand.u32 %v3008, 4294901760
    %v3926 = vsub.f32 %v3008, %v3925
    %3927 = vmatpush.msra.mxu0 %v3926
    %v3928 = vand.u32 %v3007, 4294901760
    %v3929 = vsub.f32 %v3007, %v3928
    %3930 = vmatpush.msra.mxu0 %v3929
    %v3931 = vand.u32 %v3006, 4294901760
    %v3932 = vsub.f32 %v3006, %v3931
    %3933 = vmatpush.msra.mxu0 %v3932
    %v3934 = vand.u32 %v3005, 4294901760
    %v3935 = vsub.f32 %v3005, %v3934
    %3936 = vmatpush.msra.mxu0 %v3935
    %v3937 = vand.u32 %v3004, 4294901760
    %v3938 = vsub.f32 %v3004, %v3937
    %3939 = vmatpush.msra.mxu0 %v3938
    %v3940 = vand.u32 %v3003, 4294901760
    %v3941 = vsub.f32 %v3003, %v3940
    %3942 = vmatpush.msra.mxu0 %v3941
    %v3943 = vand.u32 %v3002, 4294901760
    %v3944 = vsub.f32 %v3002, %v3943
    %3945 = vmatpush.msra.mxu0 %v3944
    %v3946 = vand.u32 %v3001, 4294901760
    %v3947 = vsub.f32 %v3001, %v3946
    %3948 = vmatpush.msra.mxu0 %v3947
    %v3949 = vand.u32 %v3000, 4294901760
    %v3950 = vsub.f32 %v3000, %v3949
    %3951 = vmatpush.msra.mxu0 %v3950
    %v3952 = vand.u32 %v2999, 4294901760
    %v3953 = vsub.f32 %v2999, %v3952
    %3954 = vmatpush.msra.mxu0 %v3953
    %v3955 = vand.u32 %v2998, 4294901760
    %v3956 = vsub.f32 %v2998, %v3955
    %3957 = vmatpush.msra.mxu0 %v3956
    %v3958 = vand.u32 %v2997, 4294901760
    %v3959 = vsub.f32 %v2997, %v3958
    %3960 = vmatpush.msra.mxu0 %v3959
    %v3961 = vand.u32 %v2996, 4294901760
    %v3962 = vsub.f32 %v2996, %v3961
    %3963 = vmatpush.msra.mxu0 %v3962
    %v3964 = vand.u32 %v2995, 4294901760
    %v3965 = vsub.f32 %v2995, %v3964
    %3966 = vmatpush.msra.mxu0 %v3965
    %v3967 = vand.u32 %v2957, 4294901760
    %v3968 = vsub.f32 %v2957, %v3967
    %3969 = vmatmul.f32.gmra.mxu0 %v3968
    %v3970 = vpop.f32.mrf.mxu0
    %v3971 = vadd.f32 %v3917, %v3970
    %3972 = vdwg.mxu0
    %v3973 = vand.u32 %v3010, 4294901760
    %3974 = vmatpush.msra.mxu0 %v3973
    %v3975 = vand.u32 %v3009, 4294901760
    %3976 = vmatpush.msra.mxu0 %v3975
    %v3977 = vand.u32 %v3008, 4294901760
    %3978 = vmatpush.msra.mxu0 %v3977
    %v3979 = vand.u32 %v3007, 4294901760
    %3980 = vmatpush.msra.mxu0 %v3979
    %v3981 = vand.u32 %v3006, 4294901760
    %3982 = vmatpush.msra.mxu0 %v3981
    %v3983 = vand.u32 %v3005, 4294901760
    %3984 = vmatpush.msra.mxu0 %v3983
    %v3985 = vand.u32 %v3004, 4294901760
    %3986 = vmatpush.msra.mxu0 %v3985
    %v3987 = vand.u32 %v3003, 4294901760
    %3988 = vmatpush.msra.mxu0 %v3987
    %v3989 = vand.u32 %v3002, 4294901760
    %3990 = vmatpush.msra.mxu0 %v3989
    %v3991 = vand.u32 %v3001, 4294901760
    %3992 = vmatpush.msra.mxu0 %v3991
    %v3993 = vand.u32 %v3000, 4294901760
    %3994 = vmatpush.msra.mxu0 %v3993
    %v3995 = vand.u32 %v2999, 4294901760
    %3996 = vmatpush.msra.mxu0 %v3995
    %v3997 = vand.u32 %v2998, 4294901760
    %3998 = vmatpush.msra.mxu0 %v3997
    %v3999 = vand.u32 %v2997, 4294901760
    %4000 = vmatpush.msra.mxu0 %v3999
    %v4001 = vand.u32 %v2996, 4294901760
    %4002 = vmatpush.msra.mxu0 %v4001
    %v4003 = vand.u32 %v2995, 4294901760
    %4004 = vmatpush.msra.mxu0 %v4003
    %v4005 = vand.u32 %v2957, 4294901760
    %v4006 = vsub.f32 %v2957, %v4005
    %v4007 = vand.u32 %v4006, 4294901760
    %4008 = vmatmul.f32.gmra.mxu0 %v4007
    %v4009 = vpop.f32.mrf.mxu0
    %v4010 = vadd.f32 %v3971, %v4009
    %4011 = vdwg.mxu0
    %v4012 = vand.u32 %v3010, 4294901760
    %v4013 = vsub.f32 %v3010, %v4012
    %v4014 = vand.u32 %v4013, 4294901760
    %4015 = vmatpush.msra.mxu0 %v4014
    %v4016 = vand.u32 %v3009, 4294901760
    %v4017 = vsub.f32 %v3009, %v4016
    %v4018 = vand.u32 %v4017, 4294901760
    %4019 = vmatpush.msra.mxu0 %v4018
    %v4020 = vand.u32 %v3008, 4294901760
    %v4021 = vsub.f32 %v3008, %v4020
    %v4022 = vand.u32 %v4021, 4294901760
    %4023 = vmatpush.msra.mxu0 %v4022
    %v4024 = vand.u32 %v3007, 4294901760
    %v4025 = vsub.f32 %v3007, %v4024
    %v4026 = vand.u32 %v4025, 4294901760
    %4027 = vmatpush.msra.mxu0 %v4026
    %v4028 = vand.u32 %v3006, 4294901760
    %v4029 = vsub.f32 %v3006, %v4028
    %v4030 = vand.u32 %v4029, 4294901760
    %4031 = vmatpush.msra.mxu0 %v4030
    %v4032 = vand.u32 %v3005, 4294901760
    %v4033 = vsub.f32 %v3005, %v4032
    %v4034 = vand.u32 %v4033, 4294901760
    %4035 = vmatpush.msra.mxu0 %v4034
    %v4036 = vand.u32 %v3004, 4294901760
    %v4037 = vsub.f32 %v3004, %v4036
    %v4038 = vand.u32 %v4037, 4294901760
    %4039 = vmatpush.msra.mxu0 %v4038
    %v4040 = vand.u32 %v3003, 4294901760
    %v4041 = vsub.f32 %v3003, %v4040
    %v4042 = vand.u32 %v4041, 4294901760
    %4043 = vmatpush.msra.mxu0 %v4042
    %v4044 = vand.u32 %v3002, 4294901760
    %v4045 = vsub.f32 %v3002, %v4044
    %v4046 = vand.u32 %v4045, 4294901760
    %4047 = vmatpush.msra.mxu0 %v4046
    %v4048 = vand.u32 %v3001, 4294901760
    %v4049 = vsub.f32 %v3001, %v4048
    %v4050 = vand.u32 %v4049, 4294901760
    %4051 = vmatpush.msra.mxu0 %v4050
    %v4052 = vand.u32 %v3000, 4294901760
    %v4053 = vsub.f32 %v3000, %v4052
    %v4054 = vand.u32 %v4053, 4294901760
    %4055 = vmatpush.msra.mxu0 %v4054
    %v4056 = vand.u32 %v2999, 4294901760
    %v4057 = vsub.f32 %v2999, %v4056
    %v4058 = vand.u32 %v4057, 4294901760
    %4059 = vmatpush.msra.mxu0 %v4058
    %v4060 = vand.u32 %v2998, 4294901760
    %v4061 = vsub.f32 %v2998, %v4060
    %v4062 = vand.u32 %v4061, 4294901760
    %4063 = vmatpush.msra.mxu0 %v4062
    %v4064 = vand.u32 %v2997, 4294901760
    %v4065 = vsub.f32 %v2997, %v4064
    %v4066 = vand.u32 %v4065, 4294901760
    %4067 = vmatpush.msra.mxu0 %v4066
    %v4068 = vand.u32 %v2996, 4294901760
    %v4069 = vsub.f32 %v2996, %v4068
    %v4070 = vand.u32 %v4069, 4294901760
    %4071 = vmatpush.msra.mxu0 %v4070
    %v4072 = vand.u32 %v2995, 4294901760
    %v4073 = vsub.f32 %v2995, %v4072
    %v4074 = vand.u32 %v4073, 4294901760
    %4075 = vmatpush.msra.mxu0 %v4074
    %v4076 = vand.u32 %v2957, 4294901760
    %4077 = vmatmul.f32.gmra.mxu0 %v4076
    %v4078 = vpop.f32.mrf.mxu0
    %v4079 = vadd.f32 %v4010, %v4078
    %4080 = vdwg.mxu0
    %v4081 = vand.u32 %v3010, 4294901760
    %4082 = vmatpush.msra.mxu0 %v4081
    %v4083 = vand.u32 %v3009, 4294901760
    %4084 = vmatpush.msra.mxu0 %v4083
    %v4085 = vand.u32 %v3008, 4294901760
    %4086 = vmatpush.msra.mxu0 %v4085
    %v4087 = vand.u32 %v3007, 4294901760
    %4088 = vmatpush.msra.mxu0 %v4087
    %v4089 = vand.u32 %v3006, 4294901760
    %4090 = vmatpush.msra.mxu0 %v4089
    %v4091 = vand.u32 %v3005, 4294901760
    %4092 = vmatpush.msra.mxu0 %v4091
    %v4093 = vand.u32 %v3004, 4294901760
    %4094 = vmatpush.msra.mxu0 %v4093
    %v4095 = vand.u32 %v3003, 4294901760
    %4096 = vmatpush.msra.mxu0 %v4095
    %v4097 = vand.u32 %v3002, 4294901760
    %4098 = vmatpush.msra.mxu0 %v4097
    %v4099 = vand.u32 %v3001, 4294901760
    %4100 = vmatpush.msra.mxu0 %v4099
    %v4101 = vand.u32 %v3000, 4294901760
    %4102 = vmatpush.msra.mxu0 %v4101
    %v4103 = vand.u32 %v2999, 4294901760
    %4104 = vmatpush.msra.mxu0 %v4103
    %v4105 = vand.u32 %v2998, 4294901760
    %4106 = vmatpush.msra.mxu0 %v4105
    %v4107 = vand.u32 %v2997, 4294901760
    %4108 = vmatpush.msra.mxu0 %v4107
    %v4109 = vand.u32 %v2996, 4294901760
    %4110 = vmatpush.msra.mxu0 %v4109
    %v4111 = vand.u32 %v2995, 4294901760
    %4112 = vmatpush.msra.mxu0 %v4111
    %v4113 = vand.u32 %v2957, 4294901760
    %4114 = vmatmul.f32.gmra.mxu0 %v4113
    %v4115 = vpop.f32.mrf.mxu0
    %v4116 = vadd.f32 %v4079, %v4115
    %4117 = vdwg.mxu0
    %v4118 = vand.u32 %v3026, 4294901760
    %4119 = vmatpush.msra.mxu0 %v4118
    %v4120 = vand.u32 %v3025, 4294901760
    %4121 = vmatpush.msra.mxu0 %v4120
    %v4122 = vand.u32 %v3024, 4294901760
    %4123 = vmatpush.msra.mxu0 %v4122
    %v4124 = vand.u32 %v3023, 4294901760
    %4125 = vmatpush.msra.mxu0 %v4124
    %v4126 = vand.u32 %v3022, 4294901760
    %4127 = vmatpush.msra.mxu0 %v4126
    %v4128 = vand.u32 %v3021, 4294901760
    %4129 = vmatpush.msra.mxu0 %v4128
    %v4130 = vand.u32 %v3020, 4294901760
    %4131 = vmatpush.msra.mxu0 %v4130
    %v4132 = vand.u32 %v3019, 4294901760
    %4133 = vmatpush.msra.mxu0 %v4132
    %v4134 = vand.u32 %v3018, 4294901760
    %4135 = vmatpush.msra.mxu0 %v4134
    %v4136 = vand.u32 %v3017, 4294901760
    %4137 = vmatpush.msra.mxu0 %v4136
    %v4138 = vand.u32 %v3016, 4294901760
    %4139 = vmatpush.msra.mxu0 %v4138
    %v4140 = vand.u32 %v3015, 4294901760
    %4141 = vmatpush.msra.mxu0 %v4140
    %v4142 = vand.u32 %v3014, 4294901760
    %4143 = vmatpush.msra.mxu0 %v4142
    %v4144 = vand.u32 %v3013, 4294901760
    %4145 = vmatpush.msra.mxu0 %v4144
    %v4146 = vand.u32 %v3012, 4294901760
    %4147 = vmatpush.msra.mxu0 %v4146
    %v4148 = vand.u32 %v3011, 4294901760
    %4149 = vmatpush.msra.mxu0 %v4148
    %v4150 = vand.u32 %v2958, 4294901760
    %v4151 = vsub.f32 %v2958, %v4150
    %v4152 = vand.u32 %v4151, 4294901760
    %v4153 = vsub.f32 %v4151, %v4152
    %v4154 = vand.u32 %v4153, 4294901760
    %4155 = vmatmul.f32.gmra.mxu0 %v4154
    %v4156 = vpop.f32.mrf.mxu0
    %v4157 = vadd.f32 %v4116, %v4156
    %4158 = vdwg.mxu0
    %v4159 = vand.u32 %v3026, 4294901760
    %v4160 = vsub.f32 %v3026, %v4159
    %v4161 = vand.u32 %v4160, 4294901760
    %v4162 = vsub.f32 %v4160, %v4161
    %v4163 = vand.u32 %v4162, 4294901760
    %4164 = vmatpush.msra.mxu0 %v4163
    %v4165 = vand.u32 %v3025, 4294901760
    %v4166 = vsub.f32 %v3025, %v4165
    %v4167 = vand.u32 %v4166, 4294901760
    %v4168 = vsub.f32 %v4166, %v4167
    %v4169 = vand.u32 %v4168, 4294901760
    %4170 = vmatpush.msra.mxu0 %v4169
    %v4171 = vand.u32 %v3024, 4294901760
    %v4172 = vsub.f32 %v3024, %v4171
    %v4173 = vand.u32 %v4172, 4294901760
    %v4174 = vsub.f32 %v4172, %v4173
    %v4175 = vand.u32 %v4174, 4294901760
    %4176 = vmatpush.msra.mxu0 %v4175
    %v4177 = vand.u32 %v3023, 4294901760
    %v4178 = vsub.f32 %v3023, %v4177
    %v4179 = vand.u32 %v4178, 4294901760
    %v4180 = vsub.f32 %v4178, %v4179
    %v4181 = vand.u32 %v4180, 4294901760
    %4182 = vmatpush.msra.mxu0 %v4181
    %v4183 = vand.u32 %v3022, 4294901760
    %v4184 = vsub.f32 %v3022, %v4183
    %v4185 = vand.u32 %v4184, 4294901760
    %v4186 = vsub.f32 %v4184, %v4185
    %v4187 = vand.u32 %v4186, 4294901760
    %4188 = vmatpush.msra.mxu0 %v4187
    %v4189 = vand.u32 %v3021, 4294901760
    %v4190 = vsub.f32 %v3021, %v4189
    %v4191 = vand.u32 %v4190, 4294901760
    %v4192 = vsub.f32 %v4190, %v4191
    %v4193 = vand.u32 %v4192, 4294901760
    %4194 = vmatpush.msra.mxu0 %v4193
    %v4195 = vand.u32 %v3020, 4294901760
    %v4196 = vsub.f32 %v3020, %v4195
    %v4197 = vand.u32 %v4196, 4294901760
    %v4198 = vsub.f32 %v4196, %v4197
    %v4199 = vand.u32 %v4198, 4294901760
    %4200 = vmatpush.msra.mxu0 %v4199
    %v4201 = vand.u32 %v3019, 4294901760
    %v4202 = vsub.f32 %v3019, %v4201
    %v4203 = vand.u32 %v4202, 4294901760
    %v4204 = vsub.f32 %v4202, %v4203
    %v4205 = vand.u32 %v4204, 4294901760
    %4206 = vmatpush.msra.mxu0 %v4205
    %v4207 = vand.u32 %v3018, 4294901760
    %v4208 = vsub.f32 %v3018, %v4207
    %v4209 = vand.u32 %v4208, 4294901760
    %v4210 = vsub.f32 %v4208, %v4209
    %v4211 = vand.u32 %v4210, 4294901760
    %4212 = vmatpush.msra.mxu0 %v4211
    %v4213 = vand.u32 %v3017, 4294901760
    %v4214 = vsub.f32 %v3017, %v4213
    %v4215 = vand.u32 %v4214, 4294901760
    %v4216 = vsub.f32 %v4214, %v4215
    %v4217 = vand.u32 %v4216, 4294901760
    %4218 = vmatpush.msra.mxu0 %v4217
    %v4219 = vand.u32 %v3016, 4294901760
    %v4220 = vsub.f32 %v3016, %v4219
    %v4221 = vand.u32 %v4220, 4294901760
    %v4222 = vsub.f32 %v4220, %v4221
    %v4223 = vand.u32 %v4222, 4294901760
    %4224 = vmatpush.msra.mxu0 %v4223
    %v4225 = vand.u32 %v3015, 4294901760
    %v4226 = vsub.f32 %v3015, %v4225
    %v4227 = vand.u32 %v4226, 4294901760
    %v4228 = vsub.f32 %v4226, %v4227
    %v4229 = vand.u32 %v4228, 4294901760
    %4230 = vmatpush.msra.mxu0 %v4229
    %v4231 = vand.u32 %v3014, 4294901760
    %v4232 = vsub.f32 %v3014, %v4231
    %v4233 = vand.u32 %v4232, 4294901760
    %v4234 = vsub.f32 %v4232, %v4233
    %v4235 = vand.u32 %v4234, 4294901760
    %4236 = vmatpush.msra.mxu0 %v4235
    %v4237 = vand.u32 %v3013, 4294901760
    %v4238 = vsub.f32 %v3013, %v4237
    %v4239 = vand.u32 %v4238, 4294901760
    %v4240 = vsub.f32 %v4238, %v4239
    %v4241 = vand.u32 %v4240, 4294901760
    %4242 = vmatpush.msra.mxu0 %v4241
    %v4243 = vand.u32 %v3012, 4294901760
    %v4244 = vsub.f32 %v3012, %v4243
    %v4245 = vand.u32 %v4244, 4294901760
    %v4246 = vsub.f32 %v4244, %v4245
    %v4247 = vand.u32 %v4246, 4294901760
    %4248 = vmatpush.msra.mxu0 %v4247
    %v4249 = vand.u32 %v3011, 4294901760
    %v4250 = vsub.f32 %v3011, %v4249
    %v4251 = vand.u32 %v4250, 4294901760
    %v4252 = vsub.f32 %v4250, %v4251
    %v4253 = vand.u32 %v4252, 4294901760
    %4254 = vmatpush.msra.mxu0 %v4253
    %v4255 = vand.u32 %v2958, 4294901760
    %4256 = vmatmul.f32.gmra.mxu0 %v4255
    %v4257 = vpop.f32.mrf.mxu0
    %v4258 = vadd.f32 %v4157, %v4257
    %4259 = vdwg.mxu0
    %v4260 = vand.u32 %v3026, 4294901760
    %v4261 = vsub.f32 %v3026, %v4260
    %4262 = vmatpush.msra.mxu0 %v4261
    %v4263 = vand.u32 %v3025, 4294901760
    %v4264 = vsub.f32 %v3025, %v4263
    %4265 = vmatpush.msra.mxu0 %v4264
    %v4266 = vand.u32 %v3024, 4294901760
    %v4267 = vsub.f32 %v3024, %v4266
    %4268 = vmatpush.msra.mxu0 %v4267
    %v4269 = vand.u32 %v3023, 4294901760
    %v4270 = vsub.f32 %v3023, %v4269
    %4271 = vmatpush.msra.mxu0 %v4270
    %v4272 = vand.u32 %v3022, 4294901760
    %v4273 = vsub.f32 %v3022, %v4272
    %4274 = vmatpush.msra.mxu0 %v4273
    %v4275 = vand.u32 %v3021, 4294901760
    %v4276 = vsub.f32 %v3021, %v4275
    %4277 = vmatpush.msra.mxu0 %v4276
    %v4278 = vand.u32 %v3020, 4294901760
    %v4279 = vsub.f32 %v3020, %v4278
    %4280 = vmatpush.msra.mxu0 %v4279
    %v4281 = vand.u32 %v3019, 4294901760
    %v4282 = vsub.f32 %v3019, %v4281
    %4283 = vmatpush.msra.mxu0 %v4282
    %v4284 = vand.u32 %v3018, 4294901760
    %v4285 = vsub.f32 %v3018, %v4284
    %4286 = vmatpush.msra.mxu0 %v4285
    %v4287 = vand.u32 %v3017, 4294901760
    %v4288 = vsub.f32 %v3017, %v4287
    %4289 = vmatpush.msra.mxu0 %v4288
    %v4290 = vand.u32 %v3016, 4294901760
    %v4291 = vsub.f32 %v3016, %v4290
    %4292 = vmatpush.msra.mxu0 %v4291
    %v4293 = vand.u32 %v3015, 4294901760
    %v4294 = vsub.f32 %v3015, %v4293
    %4295 = vmatpush.msra.mxu0 %v4294
    %v4296 = vand.u32 %v3014, 4294901760
    %v4297 = vsub.f32 %v3014, %v4296
    %4298 = vmatpush.msra.mxu0 %v4297
    %v4299 = vand.u32 %v3013, 4294901760
    %v4300 = vsub.f32 %v3013, %v4299
    %4301 = vmatpush.msra.mxu0 %v4300
    %v4302 = vand.u32 %v3012, 4294901760
    %v4303 = vsub.f32 %v3012, %v4302
    %4304 = vmatpush.msra.mxu0 %v4303
    %v4305 = vand.u32 %v3011, 4294901760
    %v4306 = vsub.f32 %v3011, %v4305
    %4307 = vmatpush.msra.mxu0 %v4306
    %v4308 = vand.u32 %v2958, 4294901760
    %v4309 = vsub.f32 %v2958, %v4308
    %4310 = vmatmul.f32.gmra.mxu0 %v4309
    %v4311 = vpop.f32.mrf.mxu0
    %v4312 = vadd.f32 %v4258, %v4311
    %4313 = vdwg.mxu0
    %v4314 = vand.u32 %v3026, 4294901760
    %4315 = vmatpush.msra.mxu0 %v4314
    %v4316 = vand.u32 %v3025, 4294901760
    %4317 = vmatpush.msra.mxu0 %v4316
    %v4318 = vand.u32 %v3024, 4294901760
    %4319 = vmatpush.msra.mxu0 %v4318
    %v4320 = vand.u32 %v3023, 4294901760
    %4321 = vmatpush.msra.mxu0 %v4320
    %v4322 = vand.u32 %v3022, 4294901760
    %4323 = vmatpush.msra.mxu0 %v4322
    %v4324 = vand.u32 %v3021, 4294901760
    %4325 = vmatpush.msra.mxu0 %v4324
    %v4326 = vand.u32 %v3020, 4294901760
    %4327 = vmatpush.msra.mxu0 %v4326
    %v4328 = vand.u32 %v3019, 4294901760
    %4329 = vmatpush.msra.mxu0 %v4328
    %v4330 = vand.u32 %v3018, 4294901760
    %4331 = vmatpush.msra.mxu0 %v4330
    %v4332 = vand.u32 %v3017, 4294901760
    %4333 = vmatpush.msra.mxu0 %v4332
    %v4334 = vand.u32 %v3016, 4294901760
    %4335 = vmatpush.msra.mxu0 %v4334
    %v4336 = vand.u32 %v3015, 4294901760
    %4337 = vmatpush.msra.mxu0 %v4336
    %v4338 = vand.u32 %v3014, 4294901760
    %4339 = vmatpush.msra.mxu0 %v4338
    %v4340 = vand.u32 %v3013, 4294901760
    %4341 = vmatpush.msra.mxu0 %v4340
    %v4342 = vand.u32 %v3012, 4294901760
    %4343 = vmatpush.msra.mxu0 %v4342
    %v4344 = vand.u32 %v3011, 4294901760
    %4345 = vmatpush.msra.mxu0 %v4344
    %v4346 = vand.u32 %v2958, 4294901760
    %v4347 = vsub.f32 %v2958, %v4346
    %v4348 = vand.u32 %v4347, 4294901760
    %4349 = vmatmul.f32.gmra.mxu0 %v4348
    %v4350 = vpop.f32.mrf.mxu0
    %v4351 = vadd.f32 %v4312, %v4350
    %4352 = vdwg.mxu0
    %v4353 = vand.u32 %v3026, 4294901760
    %v4354 = vsub.f32 %v3026, %v4353
    %v4355 = vand.u32 %v4354, 4294901760
    %4356 = vmatpush.msra.mxu0 %v4355
    %v4357 = vand.u32 %v3025, 4294901760
    %v4358 = vsub.f32 %v3025, %v4357
    %v4359 = vand.u32 %v4358, 4294901760
    %4360 = vmatpush.msra.mxu0 %v4359
    %v4361 = vand.u32 %v3024, 4294901760
    %v4362 = vsub.f32 %v3024, %v4361
    %v4363 = vand.u32 %v4362, 4294901760
    %4364 = vmatpush.msra.mxu0 %v4363
    %v4365 = vand.u32 %v3023, 4294901760
    %v4366 = vsub.f32 %v3023, %v4365
    %v4367 = vand.u32 %v4366, 4294901760
    %4368 = vmatpush.msra.mxu0 %v4367
    %v4369 = vand.u32 %v3022, 4294901760
    %v4370 = vsub.f32 %v3022, %v4369
    %v4371 = vand.u32 %v4370, 4294901760
    %4372 = vmatpush.msra.mxu0 %v4371
    %v4373 = vand.u32 %v3021, 4294901760
    %v4374 = vsub.f32 %v3021, %v4373
    %v4375 = vand.u32 %v4374, 4294901760
    %4376 = vmatpush.msra.mxu0 %v4375
    %v4377 = vand.u32 %v3020, 4294901760
    %v4378 = vsub.f32 %v3020, %v4377
    %v4379 = vand.u32 %v4378, 4294901760
    %4380 = vmatpush.msra.mxu0 %v4379
    %v4381 = vand.u32 %v3019, 4294901760
    %v4382 = vsub.f32 %v3019, %v4381
    %v4383 = vand.u32 %v4382, 4294901760
    %4384 = vmatpush.msra.mxu0 %v4383
    %v4385 = vand.u32 %v3018, 4294901760
    %v4386 = vsub.f32 %v3018, %v4385
    %v4387 = vand.u32 %v4386, 4294901760
    %4388 = vmatpush.msra.mxu0 %v4387
    %v4389 = vand.u32 %v3017, 4294901760
    %v4390 = vsub.f32 %v3017, %v4389
    %v4391 = vand.u32 %v4390, 4294901760
    %4392 = vmatpush.msra.mxu0 %v4391
    %v4393 = vand.u32 %v3016, 4294901760
    %v4394 = vsub.f32 %v3016, %v4393
    %v4395 = vand.u32 %v4394, 4294901760
    %4396 = vmatpush.msra.mxu0 %v4395
    %v4397 = vand.u32 %v3015, 4294901760
    %v4398 = vsub.f32 %v3015, %v4397
    %v4399 = vand.u32 %v4398, 4294901760
    %4400 = vmatpush.msra.mxu0 %v4399
    %v4401 = vand.u32 %v3014, 4294901760
    %v4402 = vsub.f32 %v3014, %v4401
    %v4403 = vand.u32 %v4402, 4294901760
    %4404 = vmatpush.msra.mxu0 %v4403
    %v4405 = vand.u32 %v3013, 4294901760
    %v4406 = vsub.f32 %v3013, %v4405
    %v4407 = vand.u32 %v4406, 4294901760
    %4408 = vmatpush.msra.mxu0 %v4407
    %v4409 = vand.u32 %v3012, 4294901760
    %v4410 = vsub.f32 %v3012, %v4409
    %v4411 = vand.u32 %v4410, 4294901760
    %4412 = vmatpush.msra.mxu0 %v4411
    %v4413 = vand.u32 %v3011, 4294901760
    %v4414 = vsub.f32 %v3011, %v4413
    %v4415 = vand.u32 %v4414, 4294901760
    %4416 = vmatpush.msra.mxu0 %v4415
    %v4417 = vand.u32 %v2958, 4294901760
    %4418 = vmatmul.f32.gmra.mxu0 %v4417
    %v4419 = vpop.f32.mrf.mxu0
    %v4420 = vadd.f32 %v4351, %v4419
    %4421 = vdwg.mxu0
    %v4422 = vand.u32 %v3026, 4294901760
    %4423 = vmatpush.msra.mxu0 %v4422
    %v4424 = vand.u32 %v3025, 4294901760
    %4425 = vmatpush.msra.mxu0 %v4424
    %v4426 = vand.u32 %v3024, 4294901760
    %4427 = vmatpush.msra.mxu0 %v4426
    %v4428 = vand.u32 %v3023, 4294901760
    %4429 = vmatpush.msra.mxu0 %v4428
    %v4430 = vand.u32 %v3022, 4294901760
    %4431 = vmatpush.msra.mxu0 %v4430
    %v4432 = vand.u32 %v3021, 4294901760
    %4433 = vmatpush.msra.mxu0 %v4432
    %v4434 = vand.u32 %v3020, 4294901760
    %4435 = vmatpush.msra.mxu0 %v4434
    %v4436 = vand.u32 %v3019, 4294901760
    %4437 = vmatpush.msra.mxu0 %v4436
    %v4438 = vand.u32 %v3018, 4294901760
    %4439 = vmatpush.msra.mxu0 %v4438
    %v4440 = vand.u32 %v3017, 4294901760
    %4441 = vmatpush.msra.mxu0 %v4440
    %v4442 = vand.u32 %v3016, 4294901760
    %4443 = vmatpush.msra.mxu0 %v4442
    %v4444 = vand.u32 %v3015, 4294901760
    %4445 = vmatpush.msra.mxu0 %v4444
    %v4446 = vand.u32 %v3014, 4294901760
    %4447 = vmatpush.msra.mxu0 %v4446
    %v4448 = vand.u32 %v3013, 4294901760
    %4449 = vmatpush.msra.mxu0 %v4448
    %v4450 = vand.u32 %v3012, 4294901760
    %4451 = vmatpush.msra.mxu0 %v4450
    %v4452 = vand.u32 %v3011, 4294901760
    %4453 = vmatpush.msra.mxu0 %v4452
    %v4454 = vand.u32 %v2958, 4294901760
    %4455 = vmatmul.f32.gmra.mxu0 %v4454
    %v4456 = vpop.f32.mrf.mxu0
    %v4457 = vadd.f32 %v4420, %v4456
    %4458 = vdwg.mxu0
    %v4459 = vand.u32 %v3042, 4294901760
    %4460 = vmatpush.msra.mxu0 %v4459
    %v4461 = vand.u32 %v3041, 4294901760
    %4462 = vmatpush.msra.mxu0 %v4461
    %v4463 = vand.u32 %v3040, 4294901760
    %4464 = vmatpush.msra.mxu0 %v4463
    %v4465 = vand.u32 %v3039, 4294901760
    %4466 = vmatpush.msra.mxu0 %v4465
    %v4467 = vand.u32 %v3038, 4294901760
    %4468 = vmatpush.msra.mxu0 %v4467
    %v4469 = vand.u32 %v3037, 4294901760
    %4470 = vmatpush.msra.mxu0 %v4469
    %v4471 = vand.u32 %v3036, 4294901760
    %4472 = vmatpush.msra.mxu0 %v4471
    %v4473 = vand.u32 %v3035, 4294901760
    %4474 = vmatpush.msra.mxu0 %v4473
    %v4475 = vand.u32 %v3034, 4294901760
    %4476 = vmatpush.msra.mxu0 %v4475
    %v4477 = vand.u32 %v3033, 4294901760
    %4478 = vmatpush.msra.mxu0 %v4477
    %v4479 = vand.u32 %v3032, 4294901760
    %4480 = vmatpush.msra.mxu0 %v4479
    %v4481 = vand.u32 %v3031, 4294901760
    %4482 = vmatpush.msra.mxu0 %v4481
    %v4483 = vand.u32 %v3030, 4294901760
    %4484 = vmatpush.msra.mxu0 %v4483
    %v4485 = vand.u32 %v3029, 4294901760
    %4486 = vmatpush.msra.mxu0 %v4485
    %v4487 = vand.u32 %v3028, 4294901760
    %4488 = vmatpush.msra.mxu0 %v4487
    %v4489 = vand.u32 %v3027, 4294901760
    %4490 = vmatpush.msra.mxu0 %v4489
    %v4491 = vand.u32 %v2959, 4294901760
    %v4492 = vsub.f32 %v2959, %v4491
    %v4493 = vand.u32 %v4492, 4294901760
    %v4494 = vsub.f32 %v4492, %v4493
    %v4495 = vand.u32 %v4494, 4294901760
    %4496 = vmatmul.f32.gmra.mxu0 %v4495
    %v4497 = vpop.f32.mrf.mxu0
    %v4498 = vadd.f32 %v4457, %v4497
    %4499 = vdwg.mxu0
    %v4500 = vand.u32 %v3042, 4294901760
    %v4501 = vsub.f32 %v3042, %v4500
    %v4502 = vand.u32 %v4501, 4294901760
    %v4503 = vsub.f32 %v4501, %v4502
    %v4504 = vand.u32 %v4503, 4294901760
    %4505 = vmatpush.msra.mxu0 %v4504
    %v4506 = vand.u32 %v3041, 4294901760
    %v4507 = vsub.f32 %v3041, %v4506
    %v4508 = vand.u32 %v4507, 4294901760
    %v4509 = vsub.f32 %v4507, %v4508
    %v4510 = vand.u32 %v4509, 4294901760
    %4511 = vmatpush.msra.mxu0 %v4510
    %v4512 = vand.u32 %v3040, 4294901760
    %v4513 = vsub.f32 %v3040, %v4512
    %v4514 = vand.u32 %v4513, 4294901760
    %v4515 = vsub.f32 %v4513, %v4514
    %v4516 = vand.u32 %v4515, 4294901760
    %4517 = vmatpush.msra.mxu0 %v4516
    %v4518 = vand.u32 %v3039, 4294901760
    %v4519 = vsub.f32 %v3039, %v4518
    %v4520 = vand.u32 %v4519, 4294901760
    %v4521 = vsub.f32 %v4519, %v4520
    %v4522 = vand.u32 %v4521, 4294901760
    %4523 = vmatpush.msra.mxu0 %v4522
    %v4524 = vand.u32 %v3038, 4294901760
    %v4525 = vsub.f32 %v3038, %v4524
    %v4526 = vand.u32 %v4525, 4294901760
    %v4527 = vsub.f32 %v4525, %v4526
    %v4528 = vand.u32 %v4527, 4294901760
    %4529 = vmatpush.msra.mxu0 %v4528
    %v4530 = vand.u32 %v3037, 4294901760
    %v4531 = vsub.f32 %v3037, %v4530
    %v4532 = vand.u32 %v4531, 4294901760
    %v4533 = vsub.f32 %v4531, %v4532
    %v4534 = vand.u32 %v4533, 4294901760
    %4535 = vmatpush.msra.mxu0 %v4534
    %v4536 = vand.u32 %v3036, 4294901760
    %v4537 = vsub.f32 %v3036, %v4536
    %v4538 = vand.u32 %v4537, 4294901760
    %v4539 = vsub.f32 %v4537, %v4538
    %v4540 = vand.u32 %v4539, 4294901760
    %4541 = vmatpush.msra.mxu0 %v4540
    %v4542 = vand.u32 %v3035, 4294901760
    %v4543 = vsub.f32 %v3035, %v4542
    %v4544 = vand.u32 %v4543, 4294901760
    %v4545 = vsub.f32 %v4543, %v4544
    %v4546 = vand.u32 %v4545, 4294901760
    %4547 = vmatpush.msra.mxu0 %v4546
    %v4548 = vand.u32 %v3034, 4294901760
    %v4549 = vsub.f32 %v3034, %v4548
    %v4550 = vand.u32 %v4549, 4294901760
    %v4551 = vsub.f32 %v4549, %v4550
    %v4552 = vand.u32 %v4551, 4294901760
    %4553 = vmatpush.msra.mxu0 %v4552
    %v4554 = vand.u32 %v3033, 4294901760
    %v4555 = vsub.f32 %v3033, %v4554
    %v4556 = vand.u32 %v4555, 4294901760
    %v4557 = vsub.f32 %v4555, %v4556
    %v4558 = vand.u32 %v4557, 4294901760
    %4559 = vmatpush.msra.mxu0 %v4558
    %v4560 = vand.u32 %v3032, 4294901760
    %v4561 = vsub.f32 %v3032, %v4560
    %v4562 = vand.u32 %v4561, 4294901760
    %v4563 = vsub.f32 %v4561, %v4562
    %v4564 = vand.u32 %v4563, 4294901760
    %4565 = vmatpush.msra.mxu0 %v4564
    %v4566 = vand.u32 %v3031, 4294901760
    %v4567 = vsub.f32 %v3031, %v4566
    %v4568 = vand.u32 %v4567, 4294901760
    %v4569 = vsub.f32 %v4567, %v4568
    %v4570 = vand.u32 %v4569, 4294901760
    %4571 = vmatpush.msra.mxu0 %v4570
    %v4572 = vand.u32 %v3030, 4294901760
    %v4573 = vsub.f32 %v3030, %v4572
    %v4574 = vand.u32 %v4573, 4294901760
    %v4575 = vsub.f32 %v4573, %v4574
    %v4576 = vand.u32 %v4575, 4294901760
    %4577 = vmatpush.msra.mxu0 %v4576
    %v4578 = vand.u32 %v3029, 4294901760
    %v4579 = vsub.f32 %v3029, %v4578
    %v4580 = vand.u32 %v4579, 4294901760
    %v4581 = vsub.f32 %v4579, %v4580
    %v4582 = vand.u32 %v4581, 4294901760
    %4583 = vmatpush.msra.mxu0 %v4582
    %v4584 = vand.u32 %v3028, 4294901760
    %v4585 = vsub.f32 %v3028, %v4584
    %v4586 = vand.u32 %v4585, 4294901760
    %v4587 = vsub.f32 %v4585, %v4586
    %v4588 = vand.u32 %v4587, 4294901760
    %4589 = vmatpush.msra.mxu0 %v4588
    %v4590 = vand.u32 %v3027, 4294901760
    %v4591 = vsub.f32 %v3027, %v4590
    %v4592 = vand.u32 %v4591, 4294901760
    %v4593 = vsub.f32 %v4591, %v4592
    %v4594 = vand.u32 %v4593, 4294901760
    %4595 = vmatpush.msra.mxu0 %v4594
    %v4596 = vand.u32 %v2959, 4294901760
    %4597 = vmatmul.f32.gmra.mxu0 %v4596
    %v4598 = vpop.f32.mrf.mxu0
    %v4599 = vadd.f32 %v4498, %v4598
    %4600 = vdwg.mxu0
    %v4601 = vand.u32 %v3042, 4294901760
    %v4602 = vsub.f32 %v3042, %v4601
    %4603 = vmatpush.msra.mxu0 %v4602
    %v4604 = vand.u32 %v3041, 4294901760
    %v4605 = vsub.f32 %v3041, %v4604
    %4606 = vmatpush.msra.mxu0 %v4605
    %v4607 = vand.u32 %v3040, 4294901760
    %v4608 = vsub.f32 %v3040, %v4607
    %4609 = vmatpush.msra.mxu0 %v4608
    %v4610 = vand.u32 %v3039, 4294901760
    %v4611 = vsub.f32 %v3039, %v4610
    %4612 = vmatpush.msra.mxu0 %v4611
    %v4613 = vand.u32 %v3038, 4294901760
    %v4614 = vsub.f32 %v3038, %v4613
    %4615 = vmatpush.msra.mxu0 %v4614
    %v4616 = vand.u32 %v3037, 4294901760
    %v4617 = vsub.f32 %v3037, %v4616
    %4618 = vmatpush.msra.mxu0 %v4617
    %v4619 = vand.u32 %v3036, 4294901760
    %v4620 = vsub.f32 %v3036, %v4619
    %4621 = vmatpush.msra.mxu0 %v4620
    %v4622 = vand.u32 %v3035, 4294901760
    %v4623 = vsub.f32 %v3035, %v4622
    %4624 = vmatpush.msra.mxu0 %v4623
    %v4625 = vand.u32 %v3034, 4294901760
    %v4626 = vsub.f32 %v3034, %v4625
    %4627 = vmatpush.msra.mxu0 %v4626
    %v4628 = vand.u32 %v3033, 4294901760
    %v4629 = vsub.f32 %v3033, %v4628
    %4630 = vmatpush.msra.mxu0 %v4629
    %v4631 = vand.u32 %v3032, 4294901760
    %v4632 = vsub.f32 %v3032, %v4631
    %4633 = vmatpush.msra.mxu0 %v4632
    %v4634 = vand.u32 %v3031, 4294901760
    %v4635 = vsub.f32 %v3031, %v4634
    %4636 = vmatpush.msra.mxu0 %v4635
    %v4637 = vand.u32 %v3030, 4294901760
    %v4638 = vsub.f32 %v3030, %v4637
    %4639 = vmatpush.msra.mxu0 %v4638
    %v4640 = vand.u32 %v3029, 4294901760
    %v4641 = vsub.f32 %v3029, %v4640
    %4642 = vmatpush.msra.mxu0 %v4641
    %v4643 = vand.u32 %v3028, 4294901760
    %v4644 = vsub.f32 %v3028, %v4643
    %4645 = vmatpush.msra.mxu0 %v4644
    %v4646 = vand.u32 %v3027, 4294901760
    %v4647 = vsub.f32 %v3027, %v4646
    %4648 = vmatpush.msra.mxu0 %v4647
    %v4649 = vand.u32 %v2959, 4294901760
    %v4650 = vsub.f32 %v2959, %v4649
    %4651 = vmatmul.f32.gmra.mxu0 %v4650
    %v4652 = vpop.f32.mrf.mxu0
    %v4653 = vadd.f32 %v4599, %v4652
    %4654 = vdwg.mxu0
    %v4655 = vand.u32 %v3042, 4294901760
    %4656 = vmatpush.msra.mxu0 %v4655
    %v4657 = vand.u32 %v3041, 4294901760
    %4658 = vmatpush.msra.mxu0 %v4657
    %v4659 = vand.u32 %v3040, 4294901760
    %4660 = vmatpush.msra.mxu0 %v4659
    %v4661 = vand.u32 %v3039, 4294901760
    %4662 = vmatpush.msra.mxu0 %v4661
    %v4663 = vand.u32 %v3038, 4294901760
    %4664 = vmatpush.msra.mxu0 %v4663
    %v4665 = vand.u32 %v3037, 4294901760
    %4666 = vmatpush.msra.mxu0 %v4665
    %v4667 = vand.u32 %v3036, 4294901760
    %4668 = vmatpush.msra.mxu0 %v4667
    %v4669 = vand.u32 %v3035, 4294901760
    %4670 = vmatpush.msra.mxu0 %v4669
    %v4671 = vand.u32 %v3034, 4294901760
    %4672 = vmatpush.msra.mxu0 %v4671
    %v4673 = vand.u32 %v3033, 4294901760
    %4674 = vmatpush.msra.mxu0 %v4673
    %v4675 = vand.u32 %v3032, 4294901760
    %4676 = vmatpush.msra.mxu0 %v4675
    %v4677 = vand.u32 %v3031, 4294901760
    %4678 = vmatpush.msra.mxu0 %v4677
    %v4679 = vand.u32 %v3030, 4294901760
    %4680 = vmatpush.msra.mxu0 %v4679
    %v4681 = vand.u32 %v3029, 4294901760
    %4682 = vmatpush.msra.mxu0 %v4681
    %v4683 = vand.u32 %v3028, 4294901760
    %4684 = vmatpush.msra.mxu0 %v4683
    %v4685 = vand.u32 %v3027, 4294901760
    %4686 = vmatpush.msra.mxu0 %v4685
    %v4687 = vand.u32 %v2959, 4294901760
    %v4688 = vsub.f32 %v2959, %v4687
    %v4689 = vand.u32 %v4688, 4294901760
    %4690 = vmatmul.f32.gmra.mxu0 %v4689
    %v4691 = vpop.f32.mrf.mxu0
    %v4692 = vadd.f32 %v4653, %v4691
    %4693 = vdwg.mxu0
    %v4694 = vand.u32 %v3042, 4294901760
    %v4695 = vsub.f32 %v3042, %v4694
    %v4696 = vand.u32 %v4695, 4294901760
    %4697 = vmatpush.msra.mxu0 %v4696
    %v4698 = vand.u32 %v3041, 4294901760
    %v4699 = vsub.f32 %v3041, %v4698
    %v4700 = vand.u32 %v4699, 4294901760
    %4701 = vmatpush.msra.mxu0 %v4700
    %v4702 = vand.u32 %v3040, 4294901760
    %v4703 = vsub.f32 %v3040, %v4702
    %v4704 = vand.u32 %v4703, 4294901760
    %4705 = vmatpush.msra.mxu0 %v4704
    %v4706 = vand.u32 %v3039, 4294901760
    %v4707 = vsub.f32 %v3039, %v4706
    %v4708 = vand.u32 %v4707, 4294901760
    %4709 = vmatpush.msra.mxu0 %v4708
    %v4710 = vand.u32 %v3038, 4294901760
    %v4711 = vsub.f32 %v3038, %v4710
    %v4712 = vand.u32 %v4711, 4294901760
    %4713 = vmatpush.msra.mxu0 %v4712
    %v4714 = vand.u32 %v3037, 4294901760
    %v4715 = vsub.f32 %v3037, %v4714
    %v4716 = vand.u32 %v4715, 4294901760
    %4717 = vmatpush.msra.mxu0 %v4716
    %v4718 = vand.u32 %v3036, 4294901760
    %v4719 = vsub.f32 %v3036, %v4718
    %v4720 = vand.u32 %v4719, 4294901760
    %4721 = vmatpush.msra.mxu0 %v4720
    %v4722 = vand.u32 %v3035, 4294901760
    %v4723 = vsub.f32 %v3035, %v4722
    %v4724 = vand.u32 %v4723, 4294901760
    %4725 = vmatpush.msra.mxu0 %v4724
    %v4726 = vand.u32 %v3034, 4294901760
    %v4727 = vsub.f32 %v3034, %v4726
    %v4728 = vand.u32 %v4727, 4294901760
    %4729 = vmatpush.msra.mxu0 %v4728
    %v4730 = vand.u32 %v3033, 4294901760
    %v4731 = vsub.f32 %v3033, %v4730
    %v4732 = vand.u32 %v4731, 4294901760
    %4733 = vmatpush.msra.mxu0 %v4732
    %v4734 = vand.u32 %v3032, 4294901760
    %v4735 = vsub.f32 %v3032, %v4734
    %v4736 = vand.u32 %v4735, 4294901760
    %4737 = vmatpush.msra.mxu0 %v4736
    %v4738 = vand.u32 %v3031, 4294901760
    %v4739 = vsub.f32 %v3031, %v4738
    %v4740 = vand.u32 %v4739, 4294901760
    %4741 = vmatpush.msra.mxu0 %v4740
    %v4742 = vand.u32 %v3030, 4294901760
    %v4743 = vsub.f32 %v3030, %v4742
    %v4744 = vand.u32 %v4743, 4294901760
    %4745 = vmatpush.msra.mxu0 %v4744
    %v4746 = vand.u32 %v3029, 4294901760
    %v4747 = vsub.f32 %v3029, %v4746
    %v4748 = vand.u32 %v4747, 4294901760
    %4749 = vmatpush.msra.mxu0 %v4748
    %v4750 = vand.u32 %v3028, 4294901760
    %v4751 = vsub.f32 %v3028, %v4750
    %v4752 = vand.u32 %v4751, 4294901760
    %4753 = vmatpush.msra.mxu0 %v4752
    %v4754 = vand.u32 %v3027, 4294901760
    %v4755 = vsub.f32 %v3027, %v4754
    %v4756 = vand.u32 %v4755, 4294901760
    %4757 = vmatpush.msra.mxu0 %v4756
    %v4758 = vand.u32 %v2959, 4294901760
    %4759 = vmatmul.f32.gmra.mxu0 %v4758
    %v4760 = vpop.f32.mrf.mxu0
    %v4761 = vadd.f32 %v4692, %v4760
    %4762 = vdwg.mxu0
    %v4763 = vand.u32 %v3042, 4294901760
    %4764 = vmatpush.msra.mxu0 %v4763
    %v4765 = vand.u32 %v3041, 4294901760
    %4766 = vmatpush.msra.mxu0 %v4765
    %v4767 = vand.u32 %v3040, 4294901760
    %4768 = vmatpush.msra.mxu0 %v4767
    %v4769 = vand.u32 %v3039, 4294901760
    %4770 = vmatpush.msra.mxu0 %v4769
    %v4771 = vand.u32 %v3038, 4294901760
    %4772 = vmatpush.msra.mxu0 %v4771
    %v4773 = vand.u32 %v3037, 4294901760
    %4774 = vmatpush.msra.mxu0 %v4773
    %v4775 = vand.u32 %v3036, 4294901760
    %4776 = vmatpush.msra.mxu0 %v4775
    %v4777 = vand.u32 %v3035, 4294901760
    %4778 = vmatpush.msra.mxu0 %v4777
    %v4779 = vand.u32 %v3034, 4294901760
    %4780 = vmatpush.msra.mxu0 %v4779
    %v4781 = vand.u32 %v3033, 4294901760
    %4782 = vmatpush.msra.mxu0 %v4781
    %v4783 = vand.u32 %v3032, 4294901760
    %4784 = vmatpush.msra.mxu0 %v4783
    %v4785 = vand.u32 %v3031, 4294901760
    %4786 = vmatpush.msra.mxu0 %v4785
    %v4787 = vand.u32 %v3030, 4294901760
    %4788 = vmatpush.msra.mxu0 %v4787
    %v4789 = vand.u32 %v3029, 4294901760
    %4790 = vmatpush.msra.mxu0 %v4789
    %v4791 = vand.u32 %v3028, 4294901760
    %4792 = vmatpush.msra.mxu0 %v4791
    %v4793 = vand.u32 %v3027, 4294901760
    %4794 = vmatpush.msra.mxu0 %v4793
    %v4795 = vand.u32 %v2959, 4294901760
    %4796 = vmatmul.f32.gmra.mxu0 %v4795
    %v4797 = vpop.f32.mrf.mxu0
    %v4798 = vadd.f32 %v4761, %v4797
    %4799 = vdwg.mxu0
    %v4800 = vand.u32 %v3058, 4294901760
    %4801 = vmatpush.msra.mxu0 %v4800
    %v4802 = vand.u32 %v3057, 4294901760
    %4803 = vmatpush.msra.mxu0 %v4802
    %v4804 = vand.u32 %v3056, 4294901760
    %4805 = vmatpush.msra.mxu0 %v4804
    %v4806 = vand.u32 %v3055, 4294901760
    %4807 = vmatpush.msra.mxu0 %v4806
    %v4808 = vand.u32 %v3054, 4294901760
    %4809 = vmatpush.msra.mxu0 %v4808
    %v4810 = vand.u32 %v3053, 4294901760
    %4811 = vmatpush.msra.mxu0 %v4810
    %v4812 = vand.u32 %v3052, 4294901760
    %4813 = vmatpush.msra.mxu0 %v4812
    %v4814 = vand.u32 %v3051, 4294901760
    %4815 = vmatpush.msra.mxu0 %v4814
    %v4816 = vand.u32 %v3050, 4294901760
    %4817 = vmatpush.msra.mxu0 %v4816
    %v4818 = vand.u32 %v3049, 4294901760
    %4819 = vmatpush.msra.mxu0 %v4818
    %v4820 = vand.u32 %v3048, 4294901760
    %4821 = vmatpush.msra.mxu0 %v4820
    %v4822 = vand.u32 %v3047, 4294901760
    %4823 = vmatpush.msra.mxu0 %v4822
    %v4824 = vand.u32 %v3046, 4294901760
    %4825 = vmatpush.msra.mxu0 %v4824
    %v4826 = vand.u32 %v3045, 4294901760
    %4827 = vmatpush.msra.mxu0 %v4826
    %v4828 = vand.u32 %v3044, 4294901760
    %4829 = vmatpush.msra.mxu0 %v4828
    %v4830 = vand.u32 %v3043, 4294901760
    %4831 = vmatpush.msra.mxu0 %v4830
    %v4832 = vand.u32 %v2960, 4294901760
    %v4833 = vsub.f32 %v2960, %v4832
    %v4834 = vand.u32 %v4833, 4294901760
    %v4835 = vsub.f32 %v4833, %v4834
    %v4836 = vand.u32 %v4835, 4294901760
    %4837 = vmatmul.f32.gmra.mxu0 %v4836
    %v4838 = vpop.f32.mrf.mxu0
    %v4839 = vadd.f32 %v4798, %v4838
    %4840 = vdwg.mxu0
    %v4841 = vand.u32 %v3058, 4294901760
    %v4842 = vsub.f32 %v3058, %v4841
    %v4843 = vand.u32 %v4842, 4294901760
    %v4844 = vsub.f32 %v4842, %v4843
    %v4845 = vand.u32 %v4844, 4294901760
    %4846 = vmatpush.msra.mxu0 %v4845
    %v4847 = vand.u32 %v3057, 4294901760
    %v4848 = vsub.f32 %v3057, %v4847
    %v4849 = vand.u32 %v4848, 4294901760
    %v4850 = vsub.f32 %v4848, %v4849
    %v4851 = vand.u32 %v4850, 4294901760
    %4852 = vmatpush.msra.mxu0 %v4851
    %v4853 = vand.u32 %v3056, 4294901760
    %v4854 = vsub.f32 %v3056, %v4853
    %v4855 = vand.u32 %v4854, 4294901760
    %v4856 = vsub.f32 %v4854, %v4855
    %v4857 = vand.u32 %v4856, 4294901760
    %4858 = vmatpush.msra.mxu0 %v4857
    %v4859 = vand.u32 %v3055, 4294901760
    %v4860 = vsub.f32 %v3055, %v4859
    %v4861 = vand.u32 %v4860, 4294901760
    %v4862 = vsub.f32 %v4860, %v4861
    %v4863 = vand.u32 %v4862, 4294901760
    %4864 = vmatpush.msra.mxu0 %v4863
    %v4865 = vand.u32 %v3054, 4294901760
    %v4866 = vsub.f32 %v3054, %v4865
    %v4867 = vand.u32 %v4866, 4294901760
    %v4868 = vsub.f32 %v4866, %v4867
    %v4869 = vand.u32 %v4868, 4294901760
    %4870 = vmatpush.msra.mxu0 %v4869
    %v4871 = vand.u32 %v3053, 4294901760
    %v4872 = vsub.f32 %v3053, %v4871
    %v4873 = vand.u32 %v4872, 4294901760
    %v4874 = vsub.f32 %v4872, %v4873
    %v4875 = vand.u32 %v4874, 4294901760
    %4876 = vmatpush.msra.mxu0 %v4875
    %v4877 = vand.u32 %v3052, 4294901760
    %v4878 = vsub.f32 %v3052, %v4877
    %v4879 = vand.u32 %v4878, 4294901760
    %v4880 = vsub.f32 %v4878, %v4879
    %v4881 = vand.u32 %v4880, 4294901760
    %4882 = vmatpush.msra.mxu0 %v4881
    %v4883 = vand.u32 %v3051, 4294901760
    %v4884 = vsub.f32 %v3051, %v4883
    %v4885 = vand.u32 %v4884, 4294901760
    %v4886 = vsub.f32 %v4884, %v4885
    %v4887 = vand.u32 %v4886, 4294901760
    %4888 = vmatpush.msra.mxu0 %v4887
    %v4889 = vand.u32 %v3050, 4294901760
    %v4890 = vsub.f32 %v3050, %v4889
    %v4891 = vand.u32 %v4890, 4294901760
    %v4892 = vsub.f32 %v4890, %v4891
    %v4893 = vand.u32 %v4892, 4294901760
    %4894 = vmatpush.msra.mxu0 %v4893
    %v4895 = vand.u32 %v3049, 4294901760
    %v4896 = vsub.f32 %v3049, %v4895
    %v4897 = vand.u32 %v4896, 4294901760
    %v4898 = vsub.f32 %v4896, %v4897
    %v4899 = vand.u32 %v4898, 4294901760
    %4900 = vmatpush.msra.mxu0 %v4899
    %v4901 = vand.u32 %v3048, 4294901760
    %v4902 = vsub.f32 %v3048, %v4901
    %v4903 = vand.u32 %v4902, 4294901760
    %v4904 = vsub.f32 %v4902, %v4903
    %v4905 = vand.u32 %v4904, 4294901760
    %4906 = vmatpush.msra.mxu0 %v4905
    %v4907 = vand.u32 %v3047, 4294901760
    %v4908 = vsub.f32 %v3047, %v4907
    %v4909 = vand.u32 %v4908, 4294901760
    %v4910 = vsub.f32 %v4908, %v4909
    %v4911 = vand.u32 %v4910, 4294901760
    %4912 = vmatpush.msra.mxu0 %v4911
    %v4913 = vand.u32 %v3046, 4294901760
    %v4914 = vsub.f32 %v3046, %v4913
    %v4915 = vand.u32 %v4914, 4294901760
    %v4916 = vsub.f32 %v4914, %v4915
    %v4917 = vand.u32 %v4916, 4294901760
    %4918 = vmatpush.msra.mxu0 %v4917
    %v4919 = vand.u32 %v3045, 4294901760
    %v4920 = vsub.f32 %v3045, %v4919
    %v4921 = vand.u32 %v4920, 4294901760
    %v4922 = vsub.f32 %v4920, %v4921
    %v4923 = vand.u32 %v4922, 4294901760
    %4924 = vmatpush.msra.mxu0 %v4923
    %v4925 = vand.u32 %v3044, 4294901760
    %v4926 = vsub.f32 %v3044, %v4925
    %v4927 = vand.u32 %v4926, 4294901760
    %v4928 = vsub.f32 %v4926, %v4927
    %v4929 = vand.u32 %v4928, 4294901760
    %4930 = vmatpush.msra.mxu0 %v4929
    %v4931 = vand.u32 %v3043, 4294901760
    %v4932 = vsub.f32 %v3043, %v4931
    %v4933 = vand.u32 %v4932, 4294901760
    %v4934 = vsub.f32 %v4932, %v4933
    %v4935 = vand.u32 %v4934, 4294901760
    %4936 = vmatpush.msra.mxu0 %v4935
    %v4937 = vand.u32 %v2960, 4294901760
    %4938 = vmatmul.f32.gmra.mxu0 %v4937
    %v4939 = vpop.f32.mrf.mxu0
    %v4940 = vadd.f32 %v4839, %v4939
    %4941 = vdwg.mxu0
    %v4942 = vand.u32 %v3058, 4294901760
    %v4943 = vsub.f32 %v3058, %v4942
    %4944 = vmatpush.msra.mxu0 %v4943
    %v4945 = vand.u32 %v3057, 4294901760
    %v4946 = vsub.f32 %v3057, %v4945
    %4947 = vmatpush.msra.mxu0 %v4946
    %v4948 = vand.u32 %v3056, 4294901760
    %v4949 = vsub.f32 %v3056, %v4948
    %4950 = vmatpush.msra.mxu0 %v4949
    %v4951 = vand.u32 %v3055, 4294901760
    %v4952 = vsub.f32 %v3055, %v4951
    %4953 = vmatpush.msra.mxu0 %v4952
    %v4954 = vand.u32 %v3054, 4294901760
    %v4955 = vsub.f32 %v3054, %v4954
    %4956 = vmatpush.msra.mxu0 %v4955
    %v4957 = vand.u32 %v3053, 4294901760
    %v4958 = vsub.f32 %v3053, %v4957
    %4959 = vmatpush.msra.mxu0 %v4958
    %v4960 = vand.u32 %v3052, 4294901760
    %v4961 = vsub.f32 %v3052, %v4960
    %4962 = vmatpush.msra.mxu0 %v4961
    %v4963 = vand.u32 %v3051, 4294901760
    %v4964 = vsub.f32 %v3051, %v4963
    %4965 = vmatpush.msra.mxu0 %v4964
    %v4966 = vand.u32 %v3050, 4294901760
    %v4967 = vsub.f32 %v3050, %v4966
    %4968 = vmatpush.msra.mxu0 %v4967
    %v4969 = vand.u32 %v3049, 4294901760
    %v4970 = vsub.f32 %v3049, %v4969
    %4971 = vmatpush.msra.mxu0 %v4970
    %v4972 = vand.u32 %v3048, 4294901760
    %v4973 = vsub.f32 %v3048, %v4972
    %4974 = vmatpush.msra.mxu0 %v4973
    %v4975 = vand.u32 %v3047, 4294901760
    %v4976 = vsub.f32 %v3047, %v4975
    %4977 = vmatpush.msra.mxu0 %v4976
    %v4978 = vand.u32 %v3046, 4294901760
    %v4979 = vsub.f32 %v3046, %v4978
    %4980 = vmatpush.msra.mxu0 %v4979
    %v4981 = vand.u32 %v3045, 4294901760
    %v4982 = vsub.f32 %v3045, %v4981
    %4983 = vmatpush.msra.mxu0 %v4982
    %v4984 = vand.u32 %v3044, 4294901760
    %v4985 = vsub.f32 %v3044, %v4984
    %4986 = vmatpush.msra.mxu0 %v4985
    %v4987 = vand.u32 %v3043, 4294901760
    %v4988 = vsub.f32 %v3043, %v4987
    %4989 = vmatpush.msra.mxu0 %v4988
    %v4990 = vand.u32 %v2960, 4294901760
    %v4991 = vsub.f32 %v2960, %v4990
    %4992 = vmatmul.f32.gmra.mxu0 %v4991
    %v4993 = vpop.f32.mrf.mxu0
    %v4994 = vadd.f32 %v4940, %v4993
    %4995 = vdwg.mxu0
    %v4996 = vand.u32 %v3058, 4294901760
    %4997 = vmatpush.msra.mxu0 %v4996
    %v4998 = vand.u32 %v3057, 4294901760
    %4999 = vmatpush.msra.mxu0 %v4998
    %v5000 = vand.u32 %v3056, 4294901760
    %5001 = vmatpush.msra.mxu0 %v5000
    %v5002 = vand.u32 %v3055, 4294901760
    %5003 = vmatpush.msra.mxu0 %v5002
    %v5004 = vand.u32 %v3054, 4294901760
    %5005 = vmatpush.msra.mxu0 %v5004
    %v5006 = vand.u32 %v3053, 4294901760
    %5007 = vmatpush.msra.mxu0 %v5006
    %v5008 = vand.u32 %v3052, 4294901760
    %5009 = vmatpush.msra.mxu0 %v5008
    %v5010 = vand.u32 %v3051, 4294901760
    %5011 = vmatpush.msra.mxu0 %v5010
    %v5012 = vand.u32 %v3050, 4294901760
    %5013 = vmatpush.msra.mxu0 %v5012
    %v5014 = vand.u32 %v3049, 4294901760
    %5015 = vmatpush.msra.mxu0 %v5014
    %v5016 = vand.u32 %v3048, 4294901760
    %5017 = vmatpush.msra.mxu0 %v5016
    %v5018 = vand.u32 %v3047, 4294901760
    %5019 = vmatpush.msra.mxu0 %v5018
    %v5020 = vand.u32 %v3046, 4294901760
    %5021 = vmatpush.msra.mxu0 %v5020
    %v5022 = vand.u32 %v3045, 4294901760
    %5023 = vmatpush.msra.mxu0 %v5022
    %v5024 = vand.u32 %v3044, 4294901760
    %5025 = vmatpush.msra.mxu0 %v5024
    %v5026 = vand.u32 %v3043, 4294901760
    %5027 = vmatpush.msra.mxu0 %v5026
    %v5028 = vand.u32 %v2960, 4294901760
    %v5029 = vsub.f32 %v2960, %v5028
    %v5030 = vand.u32 %v5029, 4294901760
    %5031 = vmatmul.f32.gmra.mxu0 %v5030
    %v5032 = vpop.f32.mrf.mxu0
    %v5033 = vadd.f32 %v4994, %v5032
    %5034 = vdwg.mxu0
    %v5035 = vand.u32 %v3058, 4294901760
    %v5036 = vsub.f32 %v3058, %v5035
    %v5037 = vand.u32 %v5036, 4294901760
    %5038 = vmatpush.msra.mxu0 %v5037
    %v5039 = vand.u32 %v3057, 4294901760
    %v5040 = vsub.f32 %v3057, %v5039
    %v5041 = vand.u32 %v5040, 4294901760
    %5042 = vmatpush.msra.mxu0 %v5041
    %v5043 = vand.u32 %v3056, 4294901760
    %v5044 = vsub.f32 %v3056, %v5043
    %v5045 = vand.u32 %v5044, 4294901760
    %5046 = vmatpush.msra.mxu0 %v5045
    %v5047 = vand.u32 %v3055, 4294901760
    %v5048 = vsub.f32 %v3055, %v5047
    %v5049 = vand.u32 %v5048, 4294901760
    %5050 = vmatpush.msra.mxu0 %v5049
    %v5051 = vand.u32 %v3054, 4294901760
    %v5052 = vsub.f32 %v3054, %v5051
    %v5053 = vand.u32 %v5052, 4294901760
    %5054 = vmatpush.msra.mxu0 %v5053
    %v5055 = vand.u32 %v3053, 4294901760
    %v5056 = vsub.f32 %v3053, %v5055
    %v5057 = vand.u32 %v5056, 4294901760
    %5058 = vmatpush.msra.mxu0 %v5057
    %v5059 = vand.u32 %v3052, 4294901760
    %v5060 = vsub.f32 %v3052, %v5059
    %v5061 = vand.u32 %v5060, 4294901760
    %5062 = vmatpush.msra.mxu0 %v5061
    %v5063 = vand.u32 %v3051, 4294901760
    %v5064 = vsub.f32 %v3051, %v5063
    %v5065 = vand.u32 %v5064, 4294901760
    %5066 = vmatpush.msra.mxu0 %v5065
    %v5067 = vand.u32 %v3050, 4294901760
    %v5068 = vsub.f32 %v3050, %v5067
    %v5069 = vand.u32 %v5068, 4294901760
    %5070 = vmatpush.msra.mxu0 %v5069
    %v5071 = vand.u32 %v3049, 4294901760
    %v5072 = vsub.f32 %v3049, %v5071
    %v5073 = vand.u32 %v5072, 4294901760
    %5074 = vmatpush.msra.mxu0 %v5073
    %v5075 = vand.u32 %v3048, 4294901760
    %v5076 = vsub.f32 %v3048, %v5075
    %v5077 = vand.u32 %v5076, 4294901760
    %5078 = vmatpush.msra.mxu0 %v5077
    %v5079 = vand.u32 %v3047, 4294901760
    %v5080 = vsub.f32 %v3047, %v5079
    %v5081 = vand.u32 %v5080, 4294901760
    %5082 = vmatpush.msra.mxu0 %v5081
    %v5083 = vand.u32 %v3046, 4294901760
    %v5084 = vsub.f32 %v3046, %v5083
    %v5085 = vand.u32 %v5084, 4294901760
    %5086 = vmatpush.msra.mxu0 %v5085
    %v5087 = vand.u32 %v3045, 4294901760
    %v5088 = vsub.f32 %v3045, %v5087
    %v5089 = vand.u32 %v5088, 4294901760
    %5090 = vmatpush.msra.mxu0 %v5089
    %v5091 = vand.u32 %v3044, 4294901760
    %v5092 = vsub.f32 %v3044, %v5091
    %v5093 = vand.u32 %v5092, 4294901760
    %5094 = vmatpush.msra.mxu0 %v5093
    %v5095 = vand.u32 %v3043, 4294901760
    %v5096 = vsub.f32 %v3043, %v5095
    %v5097 = vand.u32 %v5096, 4294901760
    %5098 = vmatpush.msra.mxu0 %v5097
    %v5099 = vand.u32 %v2960, 4294901760
    %5100 = vmatmul.f32.gmra.mxu0 %v5099
    %v5101 = vpop.f32.mrf.mxu0
    %v5102 = vadd.f32 %v5033, %v5101
    %5103 = vdwg.mxu0
    %v5104 = vand.u32 %v3058, 4294901760
    %5105 = vmatpush.msra.mxu0 %v5104
    %v5106 = vand.u32 %v3057, 4294901760
    %5107 = vmatpush.msra.mxu0 %v5106
    %v5108 = vand.u32 %v3056, 4294901760
    %5109 = vmatpush.msra.mxu0 %v5108
    %v5110 = vand.u32 %v3055, 4294901760
    %5111 = vmatpush.msra.mxu0 %v5110
    %v5112 = vand.u32 %v3054, 4294901760
    %5113 = vmatpush.msra.mxu0 %v5112
    %v5114 = vand.u32 %v3053, 4294901760
    %5115 = vmatpush.msra.mxu0 %v5114
    %v5116 = vand.u32 %v3052, 4294901760
    %5117 = vmatpush.msra.mxu0 %v5116
    %v5118 = vand.u32 %v3051, 4294901760
    %5119 = vmatpush.msra.mxu0 %v5118
    %v5120 = vand.u32 %v3050, 4294901760
    %5121 = vmatpush.msra.mxu0 %v5120
    %v5122 = vand.u32 %v3049, 4294901760
    %5123 = vmatpush.msra.mxu0 %v5122
    %v5124 = vand.u32 %v3048, 4294901760
    %5125 = vmatpush.msra.mxu0 %v5124
    %v5126 = vand.u32 %v3047, 4294901760
    %5127 = vmatpush.msra.mxu0 %v5126
    %v5128 = vand.u32 %v3046, 4294901760
    %5129 = vmatpush.msra.mxu0 %v5128
    %v5130 = vand.u32 %v3045, 4294901760
    %5131 = vmatpush.msra.mxu0 %v5130
    %v5132 = vand.u32 %v3044, 4294901760
    %5133 = vmatpush.msra.mxu0 %v5132
    %v5134 = vand.u32 %v3043, 4294901760
    %5135 = vmatpush.msra.mxu0 %v5134
    %v5136 = vand.u32 %v2960, 4294901760
    %5137 = vmatmul.f32.gmra.mxu0 %v5136
    %v5138 = vpop.f32.mrf.mxu0
    %v5139 = vadd.f32 %v5102, %v5138
    %5140 = vdwg.mxu0
    %v5141 = vand.u32 %v3074, 4294901760
    %5142 = vmatpush.msra.mxu0 %v5141
    %v5143 = vand.u32 %v3073, 4294901760
    %5144 = vmatpush.msra.mxu0 %v5143
    %v5145 = vand.u32 %v3072, 4294901760
    %5146 = vmatpush.msra.mxu0 %v5145
    %v5147 = vand.u32 %v3071, 4294901760
    %5148 = vmatpush.msra.mxu0 %v5147
    %v5149 = vand.u32 %v3070, 4294901760
    %5150 = vmatpush.msra.mxu0 %v5149
    %v5151 = vand.u32 %v3069, 4294901760
    %5152 = vmatpush.msra.mxu0 %v5151
    %v5153 = vand.u32 %v3068, 4294901760
    %5154 = vmatpush.msra.mxu0 %v5153
    %v5155 = vand.u32 %v3067, 4294901760
    %5156 = vmatpush.msra.mxu0 %v5155
    %v5157 = vand.u32 %v3066, 4294901760
    %5158 = vmatpush.msra.mxu0 %v5157
    %v5159 = vand.u32 %v3065, 4294901760
    %5160 = vmatpush.msra.mxu0 %v5159
    %v5161 = vand.u32 %v3064, 4294901760
    %5162 = vmatpush.msra.mxu0 %v5161
    %v5163 = vand.u32 %v3063, 4294901760
    %5164 = vmatpush.msra.mxu0 %v5163
    %v5165 = vand.u32 %v3062, 4294901760
    %5166 = vmatpush.msra.mxu0 %v5165
    %v5167 = vand.u32 %v3061, 4294901760
    %5168 = vmatpush.msra.mxu0 %v5167
    %v5169 = vand.u32 %v3060, 4294901760
    %5170 = vmatpush.msra.mxu0 %v5169
    %v5171 = vand.u32 %v3059, 4294901760
    %5172 = vmatpush.msra.mxu0 %v5171
    %v5173 = vand.u32 %v2961, 4294901760
    %v5174 = vsub.f32 %v2961, %v5173
    %v5175 = vand.u32 %v5174, 4294901760
    %v5176 = vsub.f32 %v5174, %v5175
    %v5177 = vand.u32 %v5176, 4294901760
    %5178 = vmatmul.f32.gmra.mxu0 %v5177
    %v5179 = vpop.f32.mrf.mxu0
    %v5180 = vadd.f32 %v5139, %v5179
    %5181 = vdwg.mxu0
    %v5182 = vand.u32 %v3074, 4294901760
    %v5183 = vsub.f32 %v3074, %v5182
    %v5184 = vand.u32 %v5183, 4294901760
    %v5185 = vsub.f32 %v5183, %v5184
    %v5186 = vand.u32 %v5185, 4294901760
    %5187 = vmatpush.msra.mxu0 %v5186
    %v5188 = vand.u32 %v3073, 4294901760
    %v5189 = vsub.f32 %v3073, %v5188
    %v5190 = vand.u32 %v5189, 4294901760
    %v5191 = vsub.f32 %v5189, %v5190
    %v5192 = vand.u32 %v5191, 4294901760
    %5193 = vmatpush.msra.mxu0 %v5192
    %v5194 = vand.u32 %v3072, 4294901760
    %v5195 = vsub.f32 %v3072, %v5194
    %v5196 = vand.u32 %v5195, 4294901760
    %v5197 = vsub.f32 %v5195, %v5196
    %v5198 = vand.u32 %v5197, 4294901760
    %5199 = vmatpush.msra.mxu0 %v5198
    %v5200 = vand.u32 %v3071, 4294901760
    %v5201 = vsub.f32 %v3071, %v5200
    %v5202 = vand.u32 %v5201, 4294901760
    %v5203 = vsub.f32 %v5201, %v5202
    %v5204 = vand.u32 %v5203, 4294901760
    %5205 = vmatpush.msra.mxu0 %v5204
    %v5206 = vand.u32 %v3070, 4294901760
    %v5207 = vsub.f32 %v3070, %v5206
    %v5208 = vand.u32 %v5207, 4294901760
    %v5209 = vsub.f32 %v5207, %v5208
    %v5210 = vand.u32 %v5209, 4294901760
    %5211 = vmatpush.msra.mxu0 %v5210
    %v5212 = vand.u32 %v3069, 4294901760
    %v5213 = vsub.f32 %v3069, %v5212
    %v5214 = vand.u32 %v5213, 4294901760
    %v5215 = vsub.f32 %v5213, %v5214
    %v5216 = vand.u32 %v5215, 4294901760
    %5217 = vmatpush.msra.mxu0 %v5216
    %v5218 = vand.u32 %v3068, 4294901760
    %v5219 = vsub.f32 %v3068, %v5218
    %v5220 = vand.u32 %v5219, 4294901760
    %v5221 = vsub.f32 %v5219, %v5220
    %v5222 = vand.u32 %v5221, 4294901760
    %5223 = vmatpush.msra.mxu0 %v5222
    %v5224 = vand.u32 %v3067, 4294901760
    %v5225 = vsub.f32 %v3067, %v5224
    %v5226 = vand.u32 %v5225, 4294901760
    %v5227 = vsub.f32 %v5225, %v5226
    %v5228 = vand.u32 %v5227, 4294901760
    %5229 = vmatpush.msra.mxu0 %v5228
    %v5230 = vand.u32 %v3066, 4294901760
    %v5231 = vsub.f32 %v3066, %v5230
    %v5232 = vand.u32 %v5231, 4294901760
    %v5233 = vsub.f32 %v5231, %v5232
    %v5234 = vand.u32 %v5233, 4294901760
    %5235 = vmatpush.msra.mxu0 %v5234
    %v5236 = vand.u32 %v3065, 4294901760
    %v5237 = vsub.f32 %v3065, %v5236
    %v5238 = vand.u32 %v5237, 4294901760
    %v5239 = vsub.f32 %v5237, %v5238
    %v5240 = vand.u32 %v5239, 4294901760
    %5241 = vmatpush.msra.mxu0 %v5240
    %v5242 = vand.u32 %v3064, 4294901760
    %v5243 = vsub.f32 %v3064, %v5242
    %v5244 = vand.u32 %v5243, 4294901760
    %v5245 = vsub.f32 %v5243, %v5244
    %v5246 = vand.u32 %v5245, 4294901760
    %5247 = vmatpush.msra.mxu0 %v5246
    %v5248 = vand.u32 %v3063, 4294901760
    %v5249 = vsub.f32 %v3063, %v5248
    %v5250 = vand.u32 %v5249, 4294901760
    %v5251 = vsub.f32 %v5249, %v5250
    %v5252 = vand.u32 %v5251, 4294901760
    %5253 = vmatpush.msra.mxu0 %v5252
    %v5254 = vand.u32 %v3062, 4294901760
    %v5255 = vsub.f32 %v3062, %v5254
    %v5256 = vand.u32 %v5255, 4294901760
    %v5257 = vsub.f32 %v5255, %v5256
    %v5258 = vand.u32 %v5257, 4294901760
    %5259 = vmatpush.msra.mxu0 %v5258
    %v5260 = vand.u32 %v3061, 4294901760
    %v5261 = vsub.f32 %v3061, %v5260
    %v5262 = vand.u32 %v5261, 4294901760
    %v5263 = vsub.f32 %v5261, %v5262
    %v5264 = vand.u32 %v5263, 4294901760
    %5265 = vmatpush.msra.mxu0 %v5264
    %v5266 = vand.u32 %v3060, 4294901760
    %v5267 = vsub.f32 %v3060, %v5266
    %v5268 = vand.u32 %v5267, 4294901760
    %v5269 = vsub.f32 %v5267, %v5268
    %v5270 = vand.u32 %v5269, 4294901760
    %5271 = vmatpush.msra.mxu0 %v5270
    %v5272 = vand.u32 %v3059, 4294901760
    %v5273 = vsub.f32 %v3059, %v5272
    %v5274 = vand.u32 %v5273, 4294901760
    %v5275 = vsub.f32 %v5273, %v5274
    %v5276 = vand.u32 %v5275, 4294901760
    %5277 = vmatpush.msra.mxu0 %v5276
    %v5278 = vand.u32 %v2961, 4294901760
    %5279 = vmatmul.f32.gmra.mxu0 %v5278
    %v5280 = vpop.f32.mrf.mxu0
    %v5281 = vadd.f32 %v5180, %v5280
    %5282 = vdwg.mxu0
    %v5283 = vand.u32 %v3074, 4294901760
    %v5284 = vsub.f32 %v3074, %v5283
    %5285 = vmatpush.msra.mxu0 %v5284
    %v5286 = vand.u32 %v3073, 4294901760
    %v5287 = vsub.f32 %v3073, %v5286
    %5288 = vmatpush.msra.mxu0 %v5287
    %v5289 = vand.u32 %v3072, 4294901760
    %v5290 = vsub.f32 %v3072, %v5289
    %5291 = vmatpush.msra.mxu0 %v5290
    %v5292 = vand.u32 %v3071, 4294901760
    %v5293 = vsub.f32 %v3071, %v5292
    %5294 = vmatpush.msra.mxu0 %v5293
    %v5295 = vand.u32 %v3070, 4294901760
    %v5296 = vsub.f32 %v3070, %v5295
    %5297 = vmatpush.msra.mxu0 %v5296
    %v5298 = vand.u32 %v3069, 4294901760
    %v5299 = vsub.f32 %v3069, %v5298
    %5300 = vmatpush.msra.mxu0 %v5299
    %v5301 = vand.u32 %v3068, 4294901760
    %v5302 = vsub.f32 %v3068, %v5301
    %5303 = vmatpush.msra.mxu0 %v5302
    %v5304 = vand.u32 %v3067, 4294901760
    %v5305 = vsub.f32 %v3067, %v5304
    %5306 = vmatpush.msra.mxu0 %v5305
    %v5307 = vand.u32 %v3066, 4294901760
    %v5308 = vsub.f32 %v3066, %v5307
    %5309 = vmatpush.msra.mxu0 %v5308
    %v5310 = vand.u32 %v3065, 4294901760
    %v5311 = vsub.f32 %v3065, %v5310
    %5312 = vmatpush.msra.mxu0 %v5311
    %v5313 = vand.u32 %v3064, 4294901760
    %v5314 = vsub.f32 %v3064, %v5313
    %5315 = vmatpush.msra.mxu0 %v5314
    %v5316 = vand.u32 %v3063, 4294901760
    %v5317 = vsub.f32 %v3063, %v5316
    %5318 = vmatpush.msra.mxu0 %v5317
    %v5319 = vand.u32 %v3062, 4294901760
    %v5320 = vsub.f32 %v3062, %v5319
    %5321 = vmatpush.msra.mxu0 %v5320
    %v5322 = vand.u32 %v3061, 4294901760
    %v5323 = vsub.f32 %v3061, %v5322
    %5324 = vmatpush.msra.mxu0 %v5323
    %v5325 = vand.u32 %v3060, 4294901760
    %v5326 = vsub.f32 %v3060, %v5325
    %5327 = vmatpush.msra.mxu0 %v5326
    %v5328 = vand.u32 %v3059, 4294901760
    %v5329 = vsub.f32 %v3059, %v5328
    %5330 = vmatpush.msra.mxu0 %v5329
    %v5331 = vand.u32 %v2961, 4294901760
    %v5332 = vsub.f32 %v2961, %v5331
    %5333 = vmatmul.f32.gmra.mxu0 %v5332
    %v5334 = vpop.f32.mrf.mxu0
    %v5335 = vadd.f32 %v5281, %v5334
    %5336 = vdwg.mxu0
    %v5337 = vand.u32 %v3074, 4294901760
    %5338 = vmatpush.msra.mxu0 %v5337
    %v5339 = vand.u32 %v3073, 4294901760
    %5340 = vmatpush.msra.mxu0 %v5339
    %v5341 = vand.u32 %v3072, 4294901760
    %5342 = vmatpush.msra.mxu0 %v5341
    %v5343 = vand.u32 %v3071, 4294901760
    %5344 = vmatpush.msra.mxu0 %v5343
    %v5345 = vand.u32 %v3070, 4294901760
    %5346 = vmatpush.msra.mxu0 %v5345
    %v5347 = vand.u32 %v3069, 4294901760
    %5348 = vmatpush.msra.mxu0 %v5347
    %v5349 = vand.u32 %v3068, 4294901760
    %5350 = vmatpush.msra.mxu0 %v5349
    %v5351 = vand.u32 %v3067, 4294901760
    %5352 = vmatpush.msra.mxu0 %v5351
    %v5353 = vand.u32 %v3066, 4294901760
    %5354 = vmatpush.msra.mxu0 %v5353
    %v5355 = vand.u32 %v3065, 4294901760
    %5356 = vmatpush.msra.mxu0 %v5355
    %v5357 = vand.u32 %v3064, 4294901760
    %5358 = vmatpush.msra.mxu0 %v5357
    %v5359 = vand.u32 %v3063, 4294901760
    %5360 = vmatpush.msra.mxu0 %v5359
    %v5361 = vand.u32 %v3062, 4294901760
    %5362 = vmatpush.msra.mxu0 %v5361
    %v5363 = vand.u32 %v3061, 4294901760
    %5364 = vmatpush.msra.mxu0 %v5363
    %v5365 = vand.u32 %v3060, 4294901760
    %5366 = vmatpush.msra.mxu0 %v5365
    %v5367 = vand.u32 %v3059, 4294901760
    %5368 = vmatpush.msra.mxu0 %v5367
    %v5369 = vand.u32 %v2961, 4294901760
    %v5370 = vsub.f32 %v2961, %v5369
    %v5371 = vand.u32 %v5370, 4294901760
    %5372 = vmatmul.f32.gmra.mxu0 %v5371
    %v5373 = vpop.f32.mrf.mxu0
    %v5374 = vadd.f32 %v5335, %v5373
    %5375 = vdwg.mxu0
    %v5376 = vand.u32 %v3074, 4294901760
    %v5377 = vsub.f32 %v3074, %v5376
    %v5378 = vand.u32 %v5377, 4294901760
    %5379 = vmatpush.msra.mxu0 %v5378
    %v5380 = vand.u32 %v3073, 4294901760
    %v5381 = vsub.f32 %v3073, %v5380
    %v5382 = vand.u32 %v5381, 4294901760
    %5383 = vmatpush.msra.mxu0 %v5382
    %v5384 = vand.u32 %v3072, 4294901760
    %v5385 = vsub.f32 %v3072, %v5384
    %v5386 = vand.u32 %v5385, 4294901760
    %5387 = vmatpush.msra.mxu0 %v5386
    %v5388 = vand.u32 %v3071, 4294901760
    %v5389 = vsub.f32 %v3071, %v5388
    %v5390 = vand.u32 %v5389, 4294901760
    %5391 = vmatpush.msra.mxu0 %v5390
    %v5392 = vand.u32 %v3070, 4294901760
    %v5393 = vsub.f32 %v3070, %v5392
    %v5394 = vand.u32 %v5393, 4294901760
    %5395 = vmatpush.msra.mxu0 %v5394
    %v5396 = vand.u32 %v3069, 4294901760
    %v5397 = vsub.f32 %v3069, %v5396
    %v5398 = vand.u32 %v5397, 4294901760
    %5399 = vmatpush.msra.mxu0 %v5398
    %v5400 = vand.u32 %v3068, 4294901760
    %v5401 = vsub.f32 %v3068, %v5400
    %v5402 = vand.u32 %v5401, 4294901760
    %5403 = vmatpush.msra.mxu0 %v5402
    %v5404 = vand.u32 %v3067, 4294901760
    %v5405 = vsub.f32 %v3067, %v5404
    %v5406 = vand.u32 %v5405, 4294901760
    %5407 = vmatpush.msra.mxu0 %v5406
    %v5408 = vand.u32 %v3066, 4294901760
    %v5409 = vsub.f32 %v3066, %v5408
    %v5410 = vand.u32 %v5409, 4294901760
    %5411 = vmatpush.msra.mxu0 %v5410
    %v5412 = vand.u32 %v3065, 4294901760
    %v5413 = vsub.f32 %v3065, %v5412
    %v5414 = vand.u32 %v5413, 4294901760
    %5415 = vmatpush.msra.mxu0 %v5414
    %v5416 = vand.u32 %v3064, 4294901760
    %v5417 = vsub.f32 %v3064, %v5416
    %v5418 = vand.u32 %v5417, 4294901760
    %5419 = vmatpush.msra.mxu0 %v5418
    %v5420 = vand.u32 %v3063, 4294901760
    %v5421 = vsub.f32 %v3063, %v5420
    %v5422 = vand.u32 %v5421, 4294901760
    %5423 = vmatpush.msra.mxu0 %v5422
    %v5424 = vand.u32 %v3062, 4294901760
    %v5425 = vsub.f32 %v3062, %v5424
    %v5426 = vand.u32 %v5425, 4294901760
    %5427 = vmatpush.msra.mxu0 %v5426
    %v5428 = vand.u32 %v3061, 4294901760
    %v5429 = vsub.f32 %v3061, %v5428
    %v5430 = vand.u32 %v5429, 4294901760
    %5431 = vmatpush.msra.mxu0 %v5430
    %v5432 = vand.u32 %v3060, 4294901760
    %v5433 = vsub.f32 %v3060, %v5432
    %v5434 = vand.u32 %v5433, 4294901760
    %5435 = vmatpush.msra.mxu0 %v5434
    %v5436 = vand.u32 %v3059, 4294901760
    %v5437 = vsub.f32 %v3059, %v5436
    %v5438 = vand.u32 %v5437, 4294901760
    %5439 = vmatpush.msra.mxu0 %v5438
    %v5440 = vand.u32 %v2961, 4294901760
    %5441 = vmatmul.f32.gmra.mxu0 %v5440
    %v5442 = vpop.f32.mrf.mxu0
    %v5443 = vadd.f32 %v5374, %v5442
    %5444 = vdwg.mxu0
    %v5445 = vand.u32 %v3074, 4294901760
    %5446 = vmatpush.msra.mxu0 %v5445
    %v5447 = vand.u32 %v3073, 4294901760
    %5448 = vmatpush.msra.mxu0 %v5447
    %v5449 = vand.u32 %v3072, 4294901760
    %5450 = vmatpush.msra.mxu0 %v5449
    %v5451 = vand.u32 %v3071, 4294901760
    %5452 = vmatpush.msra.mxu0 %v5451
    %v5453 = vand.u32 %v3070, 4294901760
    %5454 = vmatpush.msra.mxu0 %v5453
    %v5455 = vand.u32 %v3069, 4294901760
    %5456 = vmatpush.msra.mxu0 %v5455
    %v5457 = vand.u32 %v3068, 4294901760
    %5458 = vmatpush.msra.mxu0 %v5457
    %v5459 = vand.u32 %v3067, 4294901760
    %5460 = vmatpush.msra.mxu0 %v5459
    %v5461 = vand.u32 %v3066, 4294901760
    %5462 = vmatpush.msra.mxu0 %v5461
    %v5463 = vand.u32 %v3065, 4294901760
    %5464 = vmatpush.msra.mxu0 %v5463
    %v5465 = vand.u32 %v3064, 4294901760
    %5466 = vmatpush.msra.mxu0 %v5465
    %v5467 = vand.u32 %v3063, 4294901760
    %5468 = vmatpush.msra.mxu0 %v5467
    %v5469 = vand.u32 %v3062, 4294901760
    %5470 = vmatpush.msra.mxu0 %v5469
    %v5471 = vand.u32 %v3061, 4294901760
    %5472 = vmatpush.msra.mxu0 %v5471
    %v5473 = vand.u32 %v3060, 4294901760
    %5474 = vmatpush.msra.mxu0 %v5473
    %v5475 = vand.u32 %v3059, 4294901760
    %5476 = vmatpush.msra.mxu0 %v5475
    %v5477 = vand.u32 %v2961, 4294901760
    %5478 = vmatmul.f32.gmra.mxu0 %v5477
    %v5479 = vpop.f32.mrf.mxu0
    %v5480 = vadd.f32 %v5443, %v5479
    %5481 = vdwg.mxu0
    %v5482 = vand.u32 %v3090, 4294901760
    %5483 = vmatpush.msra.mxu0 %v5482
    %v5484 = vand.u32 %v3089, 4294901760
    %5485 = vmatpush.msra.mxu0 %v5484
    %v5486 = vand.u32 %v3088, 4294901760
    %5487 = vmatpush.msra.mxu0 %v5486
    %v5488 = vand.u32 %v3087, 4294901760
    %5489 = vmatpush.msra.mxu0 %v5488
    %v5490 = vand.u32 %v3086, 4294901760
    %5491 = vmatpush.msra.mxu0 %v5490
    %v5492 = vand.u32 %v3085, 4294901760
    %5493 = vmatpush.msra.mxu0 %v5492
    %v5494 = vand.u32 %v3084, 4294901760
    %5495 = vmatpush.msra.mxu0 %v5494
    %v5496 = vand.u32 %v3083, 4294901760
    %5497 = vmatpush.msra.mxu0 %v5496
    %v5498 = vand.u32 %v3082, 4294901760
    %5499 = vmatpush.msra.mxu0 %v5498
    %v5500 = vand.u32 %v3081, 4294901760
    %5501 = vmatpush.msra.mxu0 %v5500
    %v5502 = vand.u32 %v3080, 4294901760
    %5503 = vmatpush.msra.mxu0 %v5502
    %v5504 = vand.u32 %v3079, 4294901760
    %5505 = vmatpush.msra.mxu0 %v5504
    %v5506 = vand.u32 %v3078, 4294901760
    %5507 = vmatpush.msra.mxu0 %v5506
    %v5508 = vand.u32 %v3077, 4294901760
    %5509 = vmatpush.msra.mxu0 %v5508
    %v5510 = vand.u32 %v3076, 4294901760
    %5511 = vmatpush.msra.mxu0 %v5510
    %v5512 = vand.u32 %v3075, 4294901760
    %5513 = vmatpush.msra.mxu0 %v5512
    %v5514 = vand.u32 %v2962, 4294901760
    %v5515 = vsub.f32 %v2962, %v5514
    %v5516 = vand.u32 %v5515, 4294901760
    %v5517 = vsub.f32 %v5515, %v5516
    %v5518 = vand.u32 %v5517, 4294901760
    %5519 = vmatmul.f32.gmra.mxu0 %v5518
    %v5520 = vpop.f32.mrf.mxu0
    %v5521 = vadd.f32 %v5480, %v5520
    %5522 = vdwg.mxu0
    %v5523 = vand.u32 %v3090, 4294901760
    %v5524 = vsub.f32 %v3090, %v5523
    %v5525 = vand.u32 %v5524, 4294901760
    %v5526 = vsub.f32 %v5524, %v5525
    %v5527 = vand.u32 %v5526, 4294901760
    %5528 = vmatpush.msra.mxu0 %v5527
    %v5529 = vand.u32 %v3089, 4294901760
    %v5530 = vsub.f32 %v3089, %v5529
    %v5531 = vand.u32 %v5530, 4294901760
    %v5532 = vsub.f32 %v5530, %v5531
    %v5533 = vand.u32 %v5532, 4294901760
    %5534 = vmatpush.msra.mxu0 %v5533
    %v5535 = vand.u32 %v3088, 4294901760
    %v5536 = vsub.f32 %v3088, %v5535
    %v5537 = vand.u32 %v5536, 4294901760
    %v5538 = vsub.f32 %v5536, %v5537
    %v5539 = vand.u32 %v5538, 4294901760
    %5540 = vmatpush.msra.mxu0 %v5539
    %v5541 = vand.u32 %v3087, 4294901760
    %v5542 = vsub.f32 %v3087, %v5541
    %v5543 = vand.u32 %v5542, 4294901760
    %v5544 = vsub.f32 %v5542, %v5543
    %v5545 = vand.u32 %v5544, 4294901760
    %5546 = vmatpush.msra.mxu0 %v5545
    %v5547 = vand.u32 %v3086, 4294901760
    %v5548 = vsub.f32 %v3086, %v5547
    %v5549 = vand.u32 %v5548, 4294901760
    %v5550 = vsub.f32 %v5548, %v5549
    %v5551 = vand.u32 %v5550, 4294901760
    %5552 = vmatpush.msra.mxu0 %v5551
    %v5553 = vand.u32 %v3085, 4294901760
    %v5554 = vsub.f32 %v3085, %v5553
    %v5555 = vand.u32 %v5554, 4294901760
    %v5556 = vsub.f32 %v5554, %v5555
    %v5557 = vand.u32 %v5556, 4294901760
    %5558 = vmatpush.msra.mxu0 %v5557
    %v5559 = vand.u32 %v3084, 4294901760
    %v5560 = vsub.f32 %v3084, %v5559
    %v5561 = vand.u32 %v5560, 4294901760
    %v5562 = vsub.f32 %v5560, %v5561
    %v5563 = vand.u32 %v5562, 4294901760
    %5564 = vmatpush.msra.mxu0 %v5563
    %v5565 = vand.u32 %v3083, 4294901760
    %v5566 = vsub.f32 %v3083, %v5565
    %v5567 = vand.u32 %v5566, 4294901760
    %v5568 = vsub.f32 %v5566, %v5567
    %v5569 = vand.u32 %v5568, 4294901760
    %5570 = vmatpush.msra.mxu0 %v5569
    %v5571 = vand.u32 %v3082, 4294901760
    %v5572 = vsub.f32 %v3082, %v5571
    %v5573 = vand.u32 %v5572, 4294901760
    %v5574 = vsub.f32 %v5572, %v5573
    %v5575 = vand.u32 %v5574, 4294901760
    %5576 = vmatpush.msra.mxu0 %v5575
    %v5577 = vand.u32 %v3081, 4294901760
    %v5578 = vsub.f32 %v3081, %v5577
    %v5579 = vand.u32 %v5578, 4294901760
    %v5580 = vsub.f32 %v5578, %v5579
    %v5581 = vand.u32 %v5580, 4294901760
    %5582 = vmatpush.msra.mxu0 %v5581
    %v5583 = vand.u32 %v3080, 4294901760
    %v5584 = vsub.f32 %v3080, %v5583
    %v5585 = vand.u32 %v5584, 4294901760
    %v5586 = vsub.f32 %v5584, %v5585
    %v5587 = vand.u32 %v5586, 4294901760
    %5588 = vmatpush.msra.mxu0 %v5587
    %v5589 = vand.u32 %v3079, 4294901760
    %v5590 = vsub.f32 %v3079, %v5589
    %v5591 = vand.u32 %v5590, 4294901760
    %v5592 = vsub.f32 %v5590, %v5591
    %v5593 = vand.u32 %v5592, 4294901760
    %5594 = vmatpush.msra.mxu0 %v5593
    %v5595 = vand.u32 %v3078, 4294901760
    %v5596 = vsub.f32 %v3078, %v5595
    %v5597 = vand.u32 %v5596, 4294901760
    %v5598 = vsub.f32 %v5596, %v5597
    %v5599 = vand.u32 %v5598, 4294901760
    %5600 = vmatpush.msra.mxu0 %v5599
    %v5601 = vand.u32 %v3077, 4294901760
    %v5602 = vsub.f32 %v3077, %v5601
    %v5603 = vand.u32 %v5602, 4294901760
    %v5604 = vsub.f32 %v5602, %v5603
    %v5605 = vand.u32 %v5604, 4294901760
    %5606 = vmatpush.msra.mxu0 %v5605
    %v5607 = vand.u32 %v3076, 4294901760
    %v5608 = vsub.f32 %v3076, %v5607
    %v5609 = vand.u32 %v5608, 4294901760
    %v5610 = vsub.f32 %v5608, %v5609
    %v5611 = vand.u32 %v5610, 4294901760
    %5612 = vmatpush.msra.mxu0 %v5611
    %v5613 = vand.u32 %v3075, 4294901760
    %v5614 = vsub.f32 %v3075, %v5613
    %v5615 = vand.u32 %v5614, 4294901760
    %v5616 = vsub.f32 %v5614, %v5615
    %v5617 = vand.u32 %v5616, 4294901760
    %5618 = vmatpush.msra.mxu0 %v5617
    %v5619 = vand.u32 %v2962, 4294901760
    %5620 = vmatmul.f32.gmra.mxu0 %v5619
    %v5621 = vpop.f32.mrf.mxu0
    %v5622 = vadd.f32 %v5521, %v5621
    %5623 = vdwg.mxu0
    %v5624 = vand.u32 %v3090, 4294901760
    %v5625 = vsub.f32 %v3090, %v5624
    %5626 = vmatpush.msra.mxu0 %v5625
    %v5627 = vand.u32 %v3089, 4294901760
    %v5628 = vsub.f32 %v3089, %v5627
    %5629 = vmatpush.msra.mxu0 %v5628
    %v5630 = vand.u32 %v3088, 4294901760
    %v5631 = vsub.f32 %v3088, %v5630
    %5632 = vmatpush.msra.mxu0 %v5631
    %v5633 = vand.u32 %v3087, 4294901760
    %v5634 = vsub.f32 %v3087, %v5633
    %5635 = vmatpush.msra.mxu0 %v5634
    %v5636 = vand.u32 %v3086, 4294901760
    %v5637 = vsub.f32 %v3086, %v5636
    %5638 = vmatpush.msra.mxu0 %v5637
    %v5639 = vand.u32 %v3085, 4294901760
    %v5640 = vsub.f32 %v3085, %v5639
    %5641 = vmatpush.msra.mxu0 %v5640
    %v5642 = vand.u32 %v3084, 4294901760
    %v5643 = vsub.f32 %v3084, %v5642
    %5644 = vmatpush.msra.mxu0 %v5643
    %v5645 = vand.u32 %v3083, 4294901760
    %v5646 = vsub.f32 %v3083, %v5645
    %5647 = vmatpush.msra.mxu0 %v5646
    %v5648 = vand.u32 %v3082, 4294901760
    %v5649 = vsub.f32 %v3082, %v5648
    %5650 = vmatpush.msra.mxu0 %v5649
    %v5651 = vand.u32 %v3081, 4294901760
    %v5652 = vsub.f32 %v3081, %v5651
    %5653 = vmatpush.msra.mxu0 %v5652
    %v5654 = vand.u32 %v3080, 4294901760
    %v5655 = vsub.f32 %v3080, %v5654
    %5656 = vmatpush.msra.mxu0 %v5655
    %v5657 = vand.u32 %v3079, 4294901760
    %v5658 = vsub.f32 %v3079, %v5657
    %5659 = vmatpush.msra.mxu0 %v5658
    %v5660 = vand.u32 %v3078, 4294901760
    %v5661 = vsub.f32 %v3078, %v5660
    %5662 = vmatpush.msra.mxu0 %v5661
    %v5663 = vand.u32 %v3077, 4294901760
    %v5664 = vsub.f32 %v3077, %v5663
    %5665 = vmatpush.msra.mxu0 %v5664
    %v5666 = vand.u32 %v3076, 4294901760
    %v5667 = vsub.f32 %v3076, %v5666
    %5668 = vmatpush.msra.mxu0 %v5667
    %v5669 = vand.u32 %v3075, 4294901760
    %v5670 = vsub.f32 %v3075, %v5669
    %5671 = vmatpush.msra.mxu0 %v5670
    %v5672 = vand.u32 %v2962, 4294901760
    %v5673 = vsub.f32 %v2962, %v5672
    %5674 = vmatmul.f32.gmra.mxu0 %v5673
    %v5675 = vpop.f32.mrf.mxu0
    %v5676 = vadd.f32 %v5622, %v5675
    %5677 = vdwg.mxu0
    %v5678 = vand.u32 %v3090, 4294901760
    %5679 = vmatpush.msra.mxu0 %v5678
    %v5680 = vand.u32 %v3089, 4294901760
    %5681 = vmatpush.msra.mxu0 %v5680
    %v5682 = vand.u32 %v3088, 4294901760
    %5683 = vmatpush.msra.mxu0 %v5682
    %v5684 = vand.u32 %v3087, 4294901760
    %5685 = vmatpush.msra.mxu0 %v5684
    %v5686 = vand.u32 %v3086, 4294901760
    %5687 = vmatpush.msra.mxu0 %v5686
    %v5688 = vand.u32 %v3085, 4294901760
    %5689 = vmatpush.msra.mxu0 %v5688
    %v5690 = vand.u32 %v3084, 4294901760
    %5691 = vmatpush.msra.mxu0 %v5690
    %v5692 = vand.u32 %v3083, 4294901760
    %5693 = vmatpush.msra.mxu0 %v5692
    %v5694 = vand.u32 %v3082, 4294901760
    %5695 = vmatpush.msra.mxu0 %v5694
    %v5696 = vand.u32 %v3081, 4294901760
    %5697 = vmatpush.msra.mxu0 %v5696
    %v5698 = vand.u32 %v3080, 4294901760
    %5699 = vmatpush.msra.mxu0 %v5698
    %v5700 = vand.u32 %v3079, 4294901760
    %5701 = vmatpush.msra.mxu0 %v5700
    %v5702 = vand.u32 %v3078, 4294901760
    %5703 = vmatpush.msra.mxu0 %v5702
    %v5704 = vand.u32 %v3077, 4294901760
    %5705 = vmatpush.msra.mxu0 %v5704
    %v5706 = vand.u32 %v3076, 4294901760
    %5707 = vmatpush.msra.mxu0 %v5706
    %v5708 = vand.u32 %v3075, 4294901760
    %5709 = vmatpush.msra.mxu0 %v5708
    %v5710 = vand.u32 %v2962, 4294901760
    %v5711 = vsub.f32 %v2962, %v5710
    %v5712 = vand.u32 %v5711, 4294901760
    %5713 = vmatmul.f32.gmra.mxu0 %v5712
    %v5714 = vpop.f32.mrf.mxu0
    %v5715 = vadd.f32 %v5676, %v5714
    %5716 = vdwg.mxu0
    %v5717 = vand.u32 %v3090, 4294901760
    %v5718 = vsub.f32 %v3090, %v5717
    %v5719 = vand.u32 %v5718, 4294901760
    %5720 = vmatpush.msra.mxu0 %v5719
    %v5721 = vand.u32 %v3089, 4294901760
    %v5722 = vsub.f32 %v3089, %v5721
    %v5723 = vand.u32 %v5722, 4294901760
    %5724 = vmatpush.msra.mxu0 %v5723
    %v5725 = vand.u32 %v3088, 4294901760
    %v5726 = vsub.f32 %v3088, %v5725
    %v5727 = vand.u32 %v5726, 4294901760
    %5728 = vmatpush.msra.mxu0 %v5727
    %v5729 = vand.u32 %v3087, 4294901760
    %v5730 = vsub.f32 %v3087, %v5729
    %v5731 = vand.u32 %v5730, 4294901760
    %5732 = vmatpush.msra.mxu0 %v5731
    %v5733 = vand.u32 %v3086, 4294901760
    %v5734 = vsub.f32 %v3086, %v5733
    %v5735 = vand.u32 %v5734, 4294901760
    %5736 = vmatpush.msra.mxu0 %v5735
    %v5737 = vand.u32 %v3085, 4294901760
    %v5738 = vsub.f32 %v3085, %v5737
    %v5739 = vand.u32 %v5738, 4294901760
    %5740 = vmatpush.msra.mxu0 %v5739
    %v5741 = vand.u32 %v3084, 4294901760
    %v5742 = vsub.f32 %v3084, %v5741
    %v5743 = vand.u32 %v5742, 4294901760
    %5744 = vmatpush.msra.mxu0 %v5743
    %v5745 = vand.u32 %v3083, 4294901760
    %v5746 = vsub.f32 %v3083, %v5745
    %v5747 = vand.u32 %v5746, 4294901760
    %5748 = vmatpush.msra.mxu0 %v5747
    %v5749 = vand.u32 %v3082, 4294901760
    %v5750 = vsub.f32 %v3082, %v5749
    %v5751 = vand.u32 %v5750, 4294901760
    %5752 = vmatpush.msra.mxu0 %v5751
    %v5753 = vand.u32 %v3081, 4294901760
    %v5754 = vsub.f32 %v3081, %v5753
    %v5755 = vand.u32 %v5754, 4294901760
    %5756 = vmatpush.msra.mxu0 %v5755
    %v5757 = vand.u32 %v3080, 4294901760
    %v5758 = vsub.f32 %v3080, %v5757
    %v5759 = vand.u32 %v5758, 4294901760
    %5760 = vmatpush.msra.mxu0 %v5759
    %v5761 = vand.u32 %v3079, 4294901760
    %v5762 = vsub.f32 %v3079, %v5761
    %v5763 = vand.u32 %v5762, 4294901760
    %5764 = vmatpush.msra.mxu0 %v5763
    %v5765 = vand.u32 %v3078, 4294901760
    %v5766 = vsub.f32 %v3078, %v5765
    %v5767 = vand.u32 %v5766, 4294901760
    %5768 = vmatpush.msra.mxu0 %v5767
    %v5769 = vand.u32 %v3077, 4294901760
    %v5770 = vsub.f32 %v3077, %v5769
    %v5771 = vand.u32 %v5770, 4294901760
    %5772 = vmatpush.msra.mxu0 %v5771
    %v5773 = vand.u32 %v3076, 4294901760
    %v5774 = vsub.f32 %v3076, %v5773
    %v5775 = vand.u32 %v5774, 4294901760
    %5776 = vmatpush.msra.mxu0 %v5775
    %v5777 = vand.u32 %v3075, 4294901760
    %v5778 = vsub.f32 %v3075, %v5777
    %v5779 = vand.u32 %v5778, 4294901760
    %5780 = vmatpush.msra.mxu0 %v5779
    %v5781 = vand.u32 %v2962, 4294901760
    %5782 = vmatmul.f32.gmra.mxu0 %v5781
    %v5783 = vpop.f32.mrf.mxu0
    %v5784 = vadd.f32 %v5715, %v5783
    %5785 = vdwg.mxu0
    %v5786 = vand.u32 %v3090, 4294901760
    %5787 = vmatpush.msra.mxu0 %v5786
    %v5788 = vand.u32 %v3089, 4294901760
    %5789 = vmatpush.msra.mxu0 %v5788
    %v5790 = vand.u32 %v3088, 4294901760
    %5791 = vmatpush.msra.mxu0 %v5790
    %v5792 = vand.u32 %v3087, 4294901760
    %5793 = vmatpush.msra.mxu0 %v5792
    %v5794 = vand.u32 %v3086, 4294901760
    %5795 = vmatpush.msra.mxu0 %v5794
    %v5796 = vand.u32 %v3085, 4294901760
    %5797 = vmatpush.msra.mxu0 %v5796
    %v5798 = vand.u32 %v3084, 4294901760
    %5799 = vmatpush.msra.mxu0 %v5798
    %v5800 = vand.u32 %v3083, 4294901760
    %5801 = vmatpush.msra.mxu0 %v5800
    %v5802 = vand.u32 %v3082, 4294901760
    %5803 = vmatpush.msra.mxu0 %v5802
    %v5804 = vand.u32 %v3081, 4294901760
    %5805 = vmatpush.msra.mxu0 %v5804
    %v5806 = vand.u32 %v3080, 4294901760
    %5807 = vmatpush.msra.mxu0 %v5806
    %v5808 = vand.u32 %v3079, 4294901760
    %5809 = vmatpush.msra.mxu0 %v5808
    %v5810 = vand.u32 %v3078, 4294901760
    %5811 = vmatpush.msra.mxu0 %v5810
    %v5812 = vand.u32 %v3077, 4294901760
    %5813 = vmatpush.msra.mxu0 %v5812
    %v5814 = vand.u32 %v3076, 4294901760
    %5815 = vmatpush.msra.mxu0 %v5814
    %v5816 = vand.u32 %v3075, 4294901760
    %5817 = vmatpush.msra.mxu0 %v5816
    %v5818 = vand.u32 %v2962, 4294901760
    %5819 = vmatmul.f32.gmra.mxu0 %v5818
    %v5820 = vpop.f32.mrf.mxu0
    %v5821 = vadd.f32 %v5784, %v5820
    %5822 = vdwg.mxu0
    %v5823 = vmax.f32 %v5821, 0.0
    %5824 = vst [vmem:[#allocation10] sm:$0xff] %v5823
    // Predicated region
    $region38: #{tpu_custom_call.1} parent=1 // pred_check
      _
    $region39: #{tpu_custom_call.1} parent=1 // pred_check_branch
      %5826 = sbr.rel (0) target = $region41
    $region40: #{tpu_custom_call.1} parent=1 // pred_region
      %5828 = vsyncadd [#allocation4], 0
      %s5830 = sshll.u32 [#allocation10], 4
      %s5831 = int_to_ptr.vmem [resolvable:$true] %s5830
      %s5832 = sshll.u32 %s5, 4
      %s5833 = int_to_ptr.hbm [resolvable:$true] %s5832
      %5835 = dma.vmem_to_hbm [thread:$0]  %s5831, 128, %s5833, [#allocation4]
    $region41: #{tpu_custom_call.1} parent=1 // pred_fallthru
      _
    // Predicated region
    $region42: #{tpu_custom_call.1} parent=1 // pred_check
      _
    $region43: #{tpu_custom_call.1} parent=1 // pred_check_branch
      %5837 = sbr.rel (0) target = $region45
    $region44: #{tpu_custom_call.1} parent=1 // pred_region
      %5839 = dma.done [#allocation4], 128
    $region45: #{tpu_custom_call.1} parent=1 // pred_fallthru
      _
    %5840 = vsyncpa [#allocation3], 1
    %5841 = vsyncpa [#allocation6], 1
    %5842 = vsyncpa [#allocation9], 1
    %5843 = vsyncpa [#allocation4], 1

</llo_original>
